<compile_context>
chip_gen: v6e
topology: v6e:2x2x1
jax: 0.10.0
libtpu: 0.0.40
codegen_flags: <defaults>
</compile_context>

<pallas_src>
import jax
import jax.numpy as jnp
from jax import lax
from jax.experimental import pallas as pl
from jax.experimental.pallas import tpu as pltpu

EPS = 1e-5
_SROWS = 8  # sublane-aligned per-tile stats block: row 0 = sum, row 1 = sum of squares


def _partial_stats(h):
    """h: (rows, C) f32 -> (1, 8, C) block: row0 = column sums, row1 = column sum-of-squares."""
    c = h.shape[-1]
    s = jnp.sum(h, axis=0, keepdims=True)
    ss = jnp.sum(h * h, axis=0, keepdims=True)
    rows = lax.broadcasted_iota(jnp.int32, (_SROWS, c), 0)
    st = jnp.where(rows == 0, jnp.broadcast_to(s, (_SROWS, c)),
                   jnp.where(rows == 1, jnp.broadcast_to(ss, (_SROWS, c)),
                             jnp.zeros((_SROWS, c), jnp.float32)))
    return st.reshape(1, _SROWS, c)


# --------------------------------- kernels ------------------------------------------
def conv1_stats_kernel(x_ref, w_ref, h_ref, st_ref):
    """Row tile of conv1 (1x1): h = x @ w1 (bf16 operands, f32 acc) + BN1 partial stats."""
    h = jnp.dot(x_ref[...].astype(jnp.bfloat16), w_ref[...],
                preferred_element_type=jnp.float32)
    h_ref[...] = h
    st_ref[...] = _partial_stats(h)


def conv2_stats_kernel(h1_ref, sc_ref, sh_ref, w_ref, h2_ref, st_ref, pad_ref):
    """Per-image BN1+ReLU -> 3x3 conv (stride 1, pad 1) as ONE wide-K im2col matmul,
    plus BN2 partial stats."""
    _, H, W, C = h1_ref.shape
    bf16 = jnp.bfloat16

    # BN1 (pre-folded per-channel scale/shift) + ReLU, f32.
    h = jnp.maximum(h1_ref[...] * sc_ref[...] + sh_ref[...], 0.0)

    # W-direction zero padding through a small f32 scratch (1, H, W+2, C).  Halo columns
    # are re-zeroed every step so the batch grid axis can stay "parallel" across cores.
    pad_ref[:, :, 0:1, :] = jnp.zeros((1, H, 1, C), jnp.float32)
    pad_ref[:, :, W + 1:W + 2, :] = jnp.zeros((1, H, 1, C), jnp.float32)
    pad_ref[:, :, 1:W + 1, :] = h

    # Three W-shift variants, cast to bf16 once each (3 casts instead of 9 per-tap casts).
    v = (pad_ref[:, :, 0:W, :].astype(bf16),        # input column x-1
         h.astype(bf16),                            # input column x
         pad_ref[:, :, 2:W + 2, :].astype(bf16))    # input column x+1

    # H-direction zero padding via concatenation along the cheap non-layout H axis.
    zrow = jnp.zeros((1, 1, W, C), bf16)
    vpad = [jnp.concatenate([zrow, vi, zrow], axis=1) for vi in v]     # (1, H+2, W, C)

    # im2col: 9 taps concatenated along the lane axis (C % 128 == 0 -> lane-dense),
    # then a single wide-K (9*C) MXU matmul.
    taps = [vpad[dx][:, dy:dy + H, :, :] for dy in range(3) for dx in range(3)]
    col = jnp.concatenate(taps, axis=-1).reshape(H * W, 9 * C)
    h2 = jnp.dot(col, w_ref[...], preferred_element_type=jnp.float32)

    h2_ref[...] = h2.reshape(1, H, W, C)
    st_ref[...] = _partial_stats(h2)


def conv3_stats_kernel(h2_ref, sc_ref, sh_ref, w_ref, h3_ref, st_ref):
    """Row tile of BN2+ReLU -> conv3 (1x1, expansion) + BN3 partial stats."""
    a = jnp.maximum(h2_ref[...] * sc_ref[...] + sh_ref[...], 0.0).astype(jnp.bfloat16)
    h3 = jnp.dot(a, w_ref[...], preferred_element_type=jnp.float32)
    h3_ref[...] = h3
    st_ref[...] = _partial_stats(h3)


def bn3_residual_kernel(h3_ref, x_ref, sc_ref, sh_ref, out_ref):
    """Row tile of BN3 + identity residual + ReLU."""
    y = h3_ref[...] * sc_ref[...] + sh_ref[...] + x_ref[...]
    out_ref[...] = jnp.maximum(y, 0.0).astype(out_ref.dtype)


# --------------------------------- wrapper ------------------------------------------
def _pick_tile_rows(m):
    """Largest row tile (multiple of 8, <=256) dividing m with >=2 grid steps when
    possible (pipelining + both v7x TensorCores); falls back to a single full tile."""
    for cand in (256, 128, 64, 32, 16, 8):
        if cand < m and m % cand == 0:
            return cand
    return m


def _finalize_bn(partial, m_total, gamma, beta):
    """Combine per-tile sum/sumsq partials into global BN scale/shift (tiny per-channel math)."""
    s = jnp.sum(partial[:, 0, :], axis=0)
    ss = jnp.sum(partial[:, 1, :], axis=0)
    mu = s / m_total
    var = jnp.maximum(ss / m_total - mu * mu, 0.0)   # biased variance; clamp vs cancellation
    scale = gamma.reshape(-1) * lax.rsqrt(var + EPS)
    shift = beta.reshape(-1) - mu * scale
    return scale.reshape(1, -1), shift.reshape(1, -1)


@jax.jit
def bottleneck_forward(x_nhwc, params):
    """x_nhwc: (N,H,W,Cin) f32.  params: (w1,g1,b1,w2,g2,b2,w3,g3,b3), f32."""
    w1, g1, b1, w2, g2, b2, w3, g3, b3 = params
    N, H, W, Cin = x_nhwc.shape
    Cmid = w1.shape[1]
    Cout = w3.shape[1]
    if Cin != Cout:
        raise ValueError("Fused kernels implement the identity-residual path "
                         "(stride=1, downsample=None); requires Cin == Cout.")
    M = N * H * W
    TM = _pick_tile_rows(M)
    G = M // TM
    f32 = jnp.float32
    parallel = pltpu.CompilerParams(dimension_semantics=("parallel",))

    # bf16 operands for the MXU; f32 accumulation happens inside the kernels.
    w1b = w1.astype(jnp.bfloat16)                           # (Cin, Cmid)
    w2b = w2.reshape(9 * Cmid, Cmid).astype(jnp.bfloat16)   # HWIO -> (9*Cmid, Cmid)
    w3b = w3.astype(jnp.bfloat16)                           # (Cmid, Cout)
    x2d = x_nhwc.reshape(M, Cin)

    # ---- pass 1: conv1 (1x1) + BN1 partial stats -------------------------------------
    h1, st1 = pl.pallas_call(
        conv1_stats_kernel,
        out_shape=(jax.ShapeDtypeStruct((M, Cmid), f32),
                   jax.ShapeDtypeStruct((G, _SROWS, Cmid), f32)),
        grid_spec=pltpu.PrefetchScalarGridSpec(
            num_scalar_prefetch=0, grid=(G,),
            in_specs=[pl.BlockSpec((TM, Cin), lambda i: (i, 0)),
                      pl.BlockSpec((Cin, Cmid), lambda i: (0, 0))],
            out_specs=(pl.BlockSpec((TM, Cmid), lambda i: (i, 0)),
                       pl.BlockSpec((1, _SROWS, Cmid), lambda i: (i, 0, 0)))),
        compiler_params=parallel,
        cost_estimate=pl.CostEstimate(flops=2 * M * Cin * Cmid, transcendentals=0,
                                      bytes_accessed=4 * M * (Cin + Cmid) + 2 * Cin * Cmid),
    )(x2d, w1b)
    sc1, sh1 = _finalize_bn(st1, M, g1, b1)

    # ---- pass 2: BN1+ReLU -> conv2 (3x3) + BN2 partial stats (per-image tiles) -------
    h2, st2 = pl.pallas_call(
        conv2_stats_kernel,
        out_shape=(jax.ShapeDtypeStruct((N, H, W, Cmid), f32),
                   jax.ShapeDtypeStruct((N, _SROWS, Cmid), f32)),
        grid_spec=pltpu.PrefetchScalarGridSpec(
            num_scalar_prefetch=0, grid=(N,),
            in_specs=[pl.BlockSpec((1, H, W, Cmid), lambda n: (n, 0, 0, 0)),
                      pl.BlockSpec((1, Cmid), lambda n: (0, 0)),
                      pl.BlockSpec((1, Cmid), lambda n: (0, 0)),
                      pl.BlockSpec((9 * Cmid, Cmid), lambda n: (0, 0))],
            out_specs=(pl.BlockSpec((1, H, W, Cmid), lambda n: (n, 0, 0, 0)),
                       pl.BlockSpec((1, _SROWS, Cmid), lambda n: (n, 0, 0))),
            scratch_shapes=[pltpu.VMEM((1, H, W + 2, Cmid), f32)]),
        compiler_params=parallel,
        cost_estimate=pl.CostEstimate(flops=2 * M * 9 * Cmid * Cmid, transcendentals=0,
                                      bytes_accessed=8 * M * Cmid + 2 * 9 * Cmid * Cmid),
    )(h1.reshape(N, H, W, Cmid), sc1, sh1, w2b)
    sc2, sh2 = _finalize_bn(st2, M, g2, b2)

    # ---- pass 3: BN2+ReLU -> conv3 (1x1, expansion) + BN3 partial stats --------------
    h3, st3 = pl.pallas_call(
        conv3_stats_kernel,
        out_shape=(jax.ShapeDtypeStruct((M, Cout), f32),
                   jax.ShapeDtypeStruct((G, _SROWS, Cout), f32)),
        grid_spec=pltpu.PrefetchScalarGridSpec(
            num_scalar_prefetch=0, grid=(G,),
            in_specs=[pl.BlockSpec((TM, Cmid), lambda i: (i, 0)),
                      pl.BlockSpec((1, Cmid), lambda i: (0, 0)),
                      pl.BlockSpec((1, Cmid), lambda i: (0, 0)),
                      pl.BlockSpec((Cmid, Cout), lambda i: (0, 0))],
            out_specs=(pl.BlockSpec((TM, Cout), lambda i: (i, 0)),
                       pl.BlockSpec((1, _SROWS, Cout), lambda i: (i, 0, 0)))),
        compiler_params=parallel,
        cost_estimate=pl.CostEstimate(flops=2 * M * Cmid * Cout, transcendentals=0,
                                      bytes_accessed=4 * M * (Cmid + Cout) + 2 * Cmid * Cout),
    )(h2.reshape(M, Cmid), sc2, sh2, w3b)
    sc3, sh3 = _finalize_bn(st3, M, g3, b3)

    # ---- pass 4: BN3 + identity residual + ReLU ---------------------------------------
    out2d = pl.pallas_call(
        bn3_residual_kernel,
        out_shape=jax.ShapeDtypeStruct((M, Cout), x_nhwc.dtype),
        grid_spec=pltpu.PrefetchScalarGridSpec(
            num_scalar_prefetch=0, grid=(G,),
            in_specs=[pl.BlockSpec((TM, Cout), lambda i: (i, 0)),
                      pl.BlockSpec((TM, Cout), lambda i: (i, 0)),
                      pl.BlockSpec((1, Cout), lambda i: (0, 0)),
                      pl.BlockSpec((1, Cout), lambda i: (0, 0))],
            out_specs=pl.BlockSpec((TM, Cout), lambda i: (i, 0))),
        compiler_params=parallel,
        cost_estimate=pl.CostEstimate(flops=3 * M * Cout, transcendentals=0,
                                      bytes_accessed=12 * M * Cout),
    )(h3, x2d, sc3, sh3)

    return out2d.reshape(N, H, W, Cout)


# ------------------------------ pure-JAX reference ----------------------------------
def bottleneck_ref(x_nhwc, params):
    """Reference with matching bf16 conv operands / f32 accumulation."""
    w1, g1, b1, w2, g2, b2, w3, g3, b3 = params
    bf16 = jnp.bfloat16

    def conv1x1(h, w):
        return jnp.einsum('nhwc,cd->nhwd', h.astype(bf16), w.astype(bf16),
                          preferred_element_type=jnp.float32)

    def conv3x3(h, w):
        return lax.conv_general_dilated(h.astype(bf16), w.astype(bf16), (1, 1), 'SAME',
                                        dimension_numbers=('NHWC', 'HWIO', 'NHWC'),
                                        preferred_element_type=jnp.float32)

    def bn(h, g, b, relu):
        mu = h.mean(axis=(0, 1, 2), keepdims=True)
        var = ((h - mu) ** 2).mean(axis=(0, 1, 2), keepdims=True)
        y = (h - mu) / jnp.sqrt(var + EPS) * g.reshape(1, 1, 1, -1) + b.reshape(1, 1, 1, -1)
        return jnp.maximum(y, 0.0) if relu else y

    h = bn(conv1x1(x_nhwc, w1), g1, b1, relu=True)
    h = bn(conv3x3(h, w2), g2, b2, relu=True)
    h = bn(conv1x1(h, w3), g3, b3, relu=False)
    return jnp.maximum(h + x_nhwc, 0.0)


if __name__ == "__main__":
    # ResNet layer2 identity Bottleneck: Bottleneck(512, 128), expansion=4, stride=1,
    # downsample=None -> Cin == Cout == 512, Cmid == 128 (lane-dense, MXU-aligned).
    N, H, W = 2, 8, 8
    Cmid = 128
    Cin = Cout = Cmid * 4

    key = jax.random.PRNGKey(0)
    kx, k1, k2, k3 = jax.random.split(key, 4)

    # PyTorch input is NCHW; transpose to the kernels' NHWC layout.
    x_nchw = jax.random.normal(kx, (N, Cin, H, W), dtype=jnp.float32)
    x_nhwc = jnp.transpose(x_nchw, (0, 2, 3, 1))

    # Synthetic conv weights ~ N(0, 0.05); BN gamma=1, beta=0 (PyTorch affine default).
    w1 = 0.05 * jax.random.normal(k1, (Cin, Cmid), dtype=jnp.float32)          # conv1 1x1
    w2 = 0.05 * jax.random.normal(k2, (3, 3, Cmid, Cmid), dtype=jnp.float32)   # conv2 3x3 (HWIO)
    w3 = 0.05 * jax.random.normal(k3, (Cmid, Cout), dtype=jnp.float32)         # conv3 1x1
    g1 = jnp.ones((1, Cmid), jnp.float32);  b1 = jnp.zeros((1, Cmid), jnp.float32)
    g2 = jnp.ones((1, Cmid), jnp.float32);  b2 = jnp.zeros((1, Cmid), jnp.float32)
    g3 = jnp.ones((1, Cout), jnp.float32);  b3 = jnp.zeros((1, Cout), jnp.float32)
    params = (w1, g1, b1, w2, g2, b2, w3, g3, b3)

    out = jax.block_until_ready(bottleneck_forward(x_nhwc, params))
    ref = jax.block_until_ready(bottleneck_ref(x_nhwc, params))

    assert out.shape == (N, H, W, Cout)
    max_err = jnp.max(jnp.abs(out - ref))
    assert jnp.allclose(out, ref, atol=2e-2, rtol=2e-2), f"max abs err = {max_err}"
    print("KERNEL_OK")
</pallas_src>

<mosaic_0001>
module attributes {stable_mosaic.version = 11 : i64} {
  func.func @conv1_stats_kernel(%arg0: i32, %arg1: memref<64x512xf32, #tpu.memory_space<vmem>>, %arg2: memref<512x128xbf16, #tpu.memory_space<vmem>>, %arg3: memref<64x128xf32, #tpu.memory_space<vmem>>, %arg4: memref<1x8x128xf32, #tpu.memory_space<vmem>>) attributes {dimension_semantics = [#tpu.dimension_semantics<parallel>], iteration_bounds = array<i64: 2>, scalar_prefetch = 0 : i64, scratch_operands = 0 : i64, tpu.core_type = #tpu.core_type<tc>, window_params = [{transform_indices = @transform_0, window_bounds = array<i64: 64, 512>}, {pipeline_mode = #tpu.pipeline_mode<synchronous>, transform_indices = @transform_1, window_bounds = array<i64: 512, 128>}, {transform_indices = @transform_2, window_bounds = array<i64: 64, 128>}, {transform_indices = @transform_3, window_bounds = array<i64: 1, 8, 128>}]} {
    %c0 = arith.constant 0 : index
    %c0_0 = arith.constant 0 : index
    %0 = vector.load %arg1[%c0, %c0_0] : memref<64x512xf32, #tpu.memory_space<vmem>>, vector<64x512xf32>
    %1 = arith.truncf %0 : vector<64x512xf32> to vector<64x512xbf16>
    %c0_1 = arith.constant 0 : index
    %c0_2 = arith.constant 0 : index
    %2 = vector.load %arg2[%c0_1, %c0_2] : memref<512x128xbf16, #tpu.memory_space<vmem>>, vector<512x128xbf16>
    %cst = arith.constant dense<0.000000e+00> : vector<64x128xf32>
    %3 = tpu.matmul %1, %2, %cst {dimension_numbers = #tpu.dot_dimension_numbers<[1], [0], [0], [1], [0, 0, 1, 1], [], []>} : vector<64x512xbf16>, vector<512x128xbf16>, vector<64x128xf32> -> vector<64x128xf32>
    %c0_3 = arith.constant 0 : index
    %c0_4 = arith.constant 0 : index
    %4 = vector.load %arg3[%c0_3, %c0_4] : memref<64x128xf32, #tpu.memory_space<vmem>>, vector<64x128xf32>
    tpu.vector_store %arg3[%c0_3, %c0_4], %3 {strides = array<i32>} : memref<64x128xf32, #tpu.memory_space<vmem>>, vector<64x128xf32>,
    %cst_5 = arith.constant dense<0.000000e+00> : vector<128xf32>
    %5 = vector.multi_reduction <add>, %3, %cst_5 [0] : vector<64x128xf32> to vector<128xf32>
    %6 = vector.shape_cast %5 : vector<128xf32> to vector<1x128xf32>
    %7 = arith.mulf %3, %3 : vector<64x128xf32>
    %cst_6 = arith.constant dense<0.000000e+00> : vector<128xf32>
    %8 = vector.multi_reduction <add>, %7, %cst_6 [0] : vector<64x128xf32> to vector<128xf32>
    %9 = vector.shape_cast %8 : vector<128xf32> to vector<1x128xf32>
    %10 = tpu.iota {dimensions = array<i32: 0>} : vector<8x128xi32>
    %c0_i32 = arith.constant 0 : i32
    %11 = vector.broadcast %c0_i32 : i32 to vector<8x128xi32>
    %12 = arith.cmpi eq, %10, %11 : vector<8x128xi32>
    %13 = vector.shape_cast %6 : vector<1x128xf32> to vector<1x128xf32>
    %14 = vector.broadcast %13 : vector<1x128xf32> to vector<8x128xf32>
    %c1_i32 = arith.constant 1 : i32
    %15 = vector.broadcast %c1_i32 : i32 to vector<8x128xi32>
    %16 = arith.cmpi eq, %10, %15 : vector<8x128xi32>
    %17 = vector.shape_cast %9 : vector<1x128xf32> to vector<1x128xf32>
    %18 = vector.broadcast %17 : vector<1x128xf32> to vector<8x128xf32>
    %cst_7 = arith.constant 0.000000e+00 : f32
    %19 = vector.broadcast %cst_7 : f32 to vector<8x128xf32>
    %20 = arith.select %16, %18, %19 : vector<8x128xi1>, vector<8x128xf32>
    %21 = arith.select %12, %14, %20 : vector<8x128xi1>, vector<8x128xf32>
    %22 = vector.shape_cast %21 : vector<8x128xf32> to vector<1x8x128xf32>
    %c0_8 = arith.constant 0 : index
    %c0_9 = arith.constant 0 : index
    %c0_10 = arith.constant 0 : index
    %23 = vector.load %arg4[%c0_8, %c0_9, %c0_10] : memref<1x8x128xf32, #tpu.memory_space<vmem>>, vector<1x8x128xf32>
    tpu.vector_store %arg4[%c0_8, %c0_9, %c0_10], %22 {strides = array<i32>} : memref<1x8x128xf32, #tpu.memory_space<vmem>>, vector<1x8x128xf32>,
    return
  }
  func.func @transform_0(%arg0: i32) -> (i32, i32) {
    %c0_i32 = arith.constant 0 : i32
    %c0_i32_0 = arith.constant 0 : i32
    return %arg0, %c0_i32 : i32, i32
  }
  func.func @transform_1(%arg0: i32) -> (i32, i32) {
    %c0_i32 = arith.constant 0 : i32
    %c0_i32_0 = arith.constant 0 : i32
    %c0_i32_1 = arith.constant 0 : i32
    return %c0_i32, %c0_i32_0 : i32, i32
  }
  func.func @transform_2(%arg0: i32) -> (i32, i32) {
    %c0_i32 = arith.constant 0 : i32
    %c0_i32_0 = arith.constant 0 : i32
    return %arg0, %c0_i32 : i32, i32
  }
  func.func @transform_3(%arg0: i32) -> (i32, i32, i32) {
    %c0_i32 = arith.constant 0 : i32
    %c0_i32_0 = arith.constant 0 : i32
    %c0_i32_1 = arith.constant 0 : i32
    return %arg0, %c0_i32, %c0_i32_0 : i32, i32, i32
  }
}

module attributes {stable_mosaic.version = 11 : i64} {
  func.func @conv2_stats_kernel(%arg0: i32, %arg1: memref<1x8x8x128xf32, #tpu.memory_space<vmem>>, %arg2: memref<1x128xf32, #tpu.memory_space<vmem>>, %arg3: memref<1x128xf32, #tpu.memory_space<vmem>>, %arg4: memref<1152x128xbf16, #tpu.memory_space<vmem>>, %arg5: memref<1x8x8x128xf32, #tpu.memory_space<vmem>>, %arg6: memref<1x8x128xf32, #tpu.memory_space<vmem>>, %arg7: memref<1x8x10x128xf32, #tpu.memory_space<vmem>>) attributes {dimension_semantics = [#tpu.dimension_semantics<parallel>], iteration_bounds = array<i64: 2>, scalar_prefetch = 0 : i64, scratch_operands = 1 : i64, tpu.core_type = #tpu.core_type<tc>, window_params = [{transform_indices = @transform_0, window_bounds = array<i64: 1, 8, 8, 128>}, {pipeline_mode = #tpu.pipeline_mode<synchronous>, transform_indices = @transform_1, window_bounds = array<i64: 1, 128>}, {pipeline_mode = #tpu.pipeline_mode<synchronous>, transform_indices = @transform_2, window_bounds = array<i64: 1, 128>}, {pipeline_mode = #tpu.pipeline_mode<synchronous>, transform_indices = @transform_3, window_bounds = array<i64: 1152, 128>}, {transform_indices = @transform_4, window_bounds = array<i64: 1, 8, 8, 128>}, {transform_indices = @transform_5, window_bounds = array<i64: 1, 8, 128>}]} {
    %c0 = arith.constant 0 : index
    %c0_0 = arith.constant 0 : index
    %c0_1 = arith.constant 0 : index
    %c0_2 = arith.constant 0 : index
    %0 = vector.load %arg1[%c0, %c0_0, %c0_1, %c0_2] : memref<1x8x8x128xf32, #tpu.memory_space<vmem>>, vector<1x8x8x128xf32>
    %c0_3 = arith.constant 0 : index
    %c0_4 = arith.constant 0 : index
    %1 = vector.load %arg2[%c0_3, %c0_4] : memref<1x128xf32, #tpu.memory_space<vmem>>, vector<1x128xf32>
    %2 = vector.shape_cast %1 : vector<1x128xf32> to vector<1x1x1x128xf32>
    %3 = vector.broadcast %2 : vector<1x1x1x128xf32> to vector<1x8x8x128xf32>
    %4 = arith.mulf %0, %3 : vector<1x8x8x128xf32>
    %c0_5 = arith.constant 0 : index
    %c0_6 = arith.constant 0 : index
    %5 = vector.load %arg3[%c0_5, %c0_6] : memref<1x128xf32, #tpu.memory_space<vmem>>, vector<1x128xf32>
    %6 = vector.shape_cast %5 : vector<1x128xf32> to vector<1x1x1x128xf32>
    %7 = vector.broadcast %6 : vector<1x1x1x128xf32> to vector<1x8x8x128xf32>
    %8 = arith.addf %4, %7 : vector<1x8x8x128xf32>
    %cst = arith.constant 0.000000e+00 : f32
    %9 = vector.broadcast %cst : f32 to vector<1x8x8x128xf32>
    %10 = arith.maximumf %8, %9 : vector<1x8x8x128xf32>
    %cst_7 = arith.constant 0.000000e+00 : f32
    %11 = vector.broadcast %cst_7 : f32 to vector<1x8x1x128xf32>
    %c0_8 = arith.constant 0 : index
    %c0_9 = arith.constant 0 : index
    %c0_10 = arith.constant 0 : index
    %c0_11 = arith.constant 0 : index
    %12 = vector.load %arg7[%c0_8, %c0_9, %c0_10, %c0_11] : memref<1x8x10x128xf32, #tpu.memory_space<vmem>>, vector<1x8x1x128xf32>
    tpu.vector_store %arg7[%c0_8, %c0_9, %c0_10, %c0_11], %11 {strides = array<i32>} : memref<1x8x10x128xf32, #tpu.memory_space<vmem>>, vector<1x8x1x128xf32>,
    %cst_12 = arith.constant 0.000000e+00 : f32
    %13 = vector.broadcast %cst_12 : f32 to vector<1x8x1x128xf32>
    %c0_13 = arith.constant 0 : index
    %c0_14 = arith.constant 0 : index
    %c9 = arith.constant 9 : index
    %c0_15 = arith.constant 0 : index
    %14 = vector.load %arg7[%c0_13, %c0_14, %c9, %c0_15] : memref<1x8x10x128xf32, #tpu.memory_space<vmem>>, vector<1x8x1x128xf32>
    tpu.vector_store %arg7[%c0_13, %c0_14, %c9, %c0_15], %13 {strides = array<i32>} : memref<1x8x10x128xf32, #tpu.memory_space<vmem>>, vector<1x8x1x128xf32>,
    %c0_16 = arith.constant 0 : index
    %c0_17 = arith.constant 0 : index
    %c1 = arith.constant 1 : index
    %c0_18 = arith.constant 0 : index
    %15 = vector.load %arg7[%c0_16, %c0_17, %c1, %c0_18] : memref<1x8x10x128xf32, #tpu.memory_space<vmem>>, vector<1x8x8x128xf32>
    tpu.vector_store %arg7[%c0_16, %c0_17, %c1, %c0_18], %10 {strides = array<i32>} : memref<1x8x10x128xf32, #tpu.memory_space<vmem>>, vector<1x8x8x128xf32>,
    %c0_19 = arith.constant 0 : index
    %c0_20 = arith.constant 0 : index
    %c0_21 = arith.constant 0 : index
    %c0_22 = arith.constant 0 : index
    %16 = vector.load %arg7[%c0_19, %c0_20, %c0_21, %c0_22] : memref<1x8x10x128xf32, #tpu.memory_space<vmem>>, vector<1x8x8x128xf32>
    %17 = arith.truncf %16 : vector<1x8x8x128xf32> to vector<1x8x8x128xbf16>
    %18 = arith.truncf %10 : vector<1x8x8x128xf32> to vector<1x8x8x128xbf16>
    %c0_23 = arith.constant 0 : index
    %c0_24 = arith.constant 0 : index
    %c2 = arith.constant 2 : index
    %c0_25 = arith.constant 0 : index
    %19 = vector.load %arg7[%c0_23, %c0_24, %c2, %c0_25] : memref<1x8x10x128xf32, #tpu.memory_space<vmem>>, vector<1x8x8x128xf32>
    %20 = arith.truncf %19 : vector<1x8x8x128xf32> to vector<1x8x8x128xbf16>
    %cst_26 = arith.constant 0.000000e+00 : bf16
    %21 = vector.broadcast %cst_26 : bf16 to vector<1x1x8x128xbf16>
    %22 = tpu.concatenate %21, %17, %21 in 1 : vector<1x1x8x128xbf16>, vector<1x8x8x128xbf16>, vector<1x1x8x128xbf16> -> vector<1x10x8x128xbf16>
    %23 = tpu.concatenate %21, %18, %21 in 1 : vector<1x1x8x128xbf16>, vector<1x8x8x128xbf16>, vector<1x1x8x128xbf16> -> vector<1x10x8x128xbf16>
    %24 = tpu.concatenate %21, %20, %21 in 1 : vector<1x1x8x128xbf16>, vector<1x8x8x128xbf16>, vector<1x1x8x128xbf16> -> vector<1x10x8x128xbf16>
    %25 = vector.extract_strided_slice %22 {offsets = [0, 0, 0, 0], sizes = [1, 8, 8, 128], strides = [1, 1, 1, 1]} : vector<1x10x8x128xbf16> to vector<1x8x8x128xbf16>
    %26 = vector.extract_strided_slice %23 {offsets = [0, 0, 0, 0], sizes = [1, 8, 8, 128], strides = [1, 1, 1, 1]} : vector<1x10x8x128xbf16> to vector<1x8x8x128xbf16>
    %27 = vector.extract_strided_slice %24 {offsets = [0, 0, 0, 0], sizes = [1, 8, 8, 128], strides = [1, 1, 1, 1]} : vector<1x10x8x128xbf16> to vector<1x8x8x128xbf16>
    %28 = vector.extract_strided_slice %22 {offsets = [0, 1, 0, 0], sizes = [1, 8, 8, 128], strides = [1, 1, 1, 1]} : vector<1x10x8x128xbf16> to vector<1x8x8x128xbf16>
    %29 = vector.extract_strided_slice %23 {offsets = [0, 1, 0, 0], sizes = [1, 8, 8, 128], strides = [1, 1, 1, 1]} : vector<1x10x8x128xbf16> to vector<1x8x8x128xbf16>
    %30 = vector.extract_strided_slice %24 {offsets = [0, 1, 0, 0], sizes = [1, 8, 8, 128], strides = [1, 1, 1, 1]} : vector<1x10x8x128xbf16> to vector<1x8x8x128xbf16>
    %31 = vector.extract_strided_slice %22 {offsets = [0, 2, 0, 0], sizes = [1, 8, 8, 128], strides = [1, 1, 1, 1]} : vector<1x10x8x128xbf16> to vector<1x8x8x128xbf16>
    %32 = vector.extract_strided_slice %23 {offsets = [0, 2, 0, 0], sizes = [1, 8, 8, 128], strides = [1, 1, 1, 1]} : vector<1x10x8x128xbf16> to vector<1x8x8x128xbf16>
    %33 = vector.extract_strided_slice %24 {offsets = [0, 2, 0, 0], sizes = [1, 8, 8, 128], strides = [1, 1, 1, 1]} : vector<1x10x8x128xbf16> to vector<1x8x8x128xbf16>
    %34 = tpu.concatenate %25, %26, %27, %28, %29, %30, %31, %32, %33 in 3 : vector<1x8x8x128xbf16>, vector<1x8x8x128xbf16>, vector<1x8x8x128xbf16>, vector<1x8x8x128xbf16>, vector<1x8x8x128xbf16>, vector<1x8x8x128xbf16>, vector<1x8x8x128xbf16>, vector<1x8x8x128xbf16>, vector<1x8x8x128xbf16> -> vector<1x8x8x1152xbf16>
    %35 = vector.shape_cast %34 : vector<1x8x8x1152xbf16> to vector<64x1152xbf16>
    %c0_27 = arith.constant 0 : index
    %c0_28 = arith.constant 0 : index
    %36 = vector.load %arg4[%c0_27, %c0_28] : memref<1152x128xbf16, #tpu.memory_space<vmem>>, vector<1152x128xbf16>
    %cst_29 = arith.constant dense<0.000000e+00> : vector<64x128xf32>
    %37 = tpu.matmul %35, %36, %cst_29 {dimension_numbers = #tpu.dot_dimension_numbers<[1], [0], [0], [1], [0, 0, 1, 1], [], []>} : vector<64x1152xbf16>, vector<1152x128xbf16>, vector<64x128xf32> -> vector<64x128xf32>
    %38 = vector.shape_cast %37 : vector<64x128xf32> to vector<1x8x8x128xf32>
    %c0_30 = arith.constant 0 : index
    %c0_31 = arith.constant 0 : index
    %c0_32 = arith.constant 0 : index
    %c0_33 = arith.constant 0 : index
    %39 = vector.load %arg5[%c0_30, %c0_31, %c0_32, %c0_33] : memref<1x8x8x128xf32, #tpu.memory_space<vmem>>, vector<1x8x8x128xf32>
    tpu.vector_store %arg5[%c0_30, %c0_31, %c0_32, %c0_33], %38 {strides = array<i32>} : memref<1x8x8x128xf32, #tpu.memory_space<vmem>>, vector<1x8x8x128xf32>,
    %cst_34 = arith.constant dense<0.000000e+00> : vector<128xf32>
    %40 = vector.multi_reduction <add>, %37, %cst_34 [0] : vector<64x128xf32> to vector<128xf32>
    %41 = vector.shape_cast %40 : vector<128xf32> to vector<1x128xf32>
    %42 = arith.mulf %37, %37 : vector<64x128xf32>
    %cst_35 = arith.constant dense<0.000000e+00> : vector<128xf32>
    %43 = vector.multi_reduction <add>, %42, %cst_35 [0] : vector<64x128xf32> to vector<128xf32>
    %44 = vector.shape_cast %43 : vector<128xf32> to vector<1x128xf32>
    %45 = tpu.iota {dimensions = array<i32: 0>} : vector<8x128xi32>
    %c0_i32 = arith.constant 0 : i32
    %46 = vector.broadcast %c0_i32 : i32 to vector<8x128xi32>
    %47 = arith.cmpi eq, %45, %46 : vector<8x128xi32>
    %48 = vector.shape_cast %41 : vector<1x128xf32> to vector<1x128xf32>
    %49 = vector.broadcast %48 : vector<1x128xf32> to vector<8x128xf32>
    %c1_i32 = arith.constant 1 : i32
    %50 = vector.broadcast %c1_i32 : i32 to vector<8x128xi32>
    %51 = arith.cmpi eq, %45, %50 : vector<8x128xi32>
    %52 = vector.shape_cast %44 : vector<1x128xf32> to vector<1x128xf32>
    %53 = vector.broadcast %52 : vector<1x128xf32> to vector<8x128xf32>
    %cst_36 = arith.constant 0.000000e+00 : f32
    %54 = vector.broadcast %cst_36 : f32 to vector<8x128xf32>
    %55 = arith.select %51, %53, %54 : vector<8x128xi1>, vector<8x128xf32>
    %56 = arith.select %47, %49, %55 : vector<8x128xi1>, vector<8x128xf32>
    %57 = vector.shape_cast %56 : vector<8x128xf32> to vector<1x8x128xf32>
    %c0_37 = arith.constant 0 : index
    %c0_38 = arith.constant 0 : index
    %c0_39 = arith.constant 0 : index
    %58 = vector.load %arg6[%c0_37, %c0_38, %c0_39] : memref<1x8x128xf32, #tpu.memory_space<vmem>>, vector<1x8x128xf32>
    tpu.vector_store %arg6[%c0_37, %c0_38, %c0_39], %57 {strides = array<i32>} : memref<1x8x128xf32, #tpu.memory_space<vmem>>, vector<1x8x128xf32>,
    return
  }
  func.func @transform_0(%arg0: i32) -> (i32, i32, i32, i32) {
    %c0_i32 = arith.constant 0 : i32
    %c0_i32_0 = arith.constant 0 : i32
    %c0_i32_1 = arith.constant 0 : i32
    %c0_i32_2 = arith.constant 0 : i32
    return %arg0, %c0_i32, %c0_i32_0, %c0_i32_1 : i32, i32, i32, i32
  }
  func.func @transform_1(%arg0: i32) -> (i32, i32) {
    %c0_i32 = arith.constant 0 : i32
    %c0_i32_0 = arith.constant 0 : i32
    %c0_i32_1 = arith.constant 0 : i32
    return %c0_i32, %c0_i32_0 : i32, i32
  }
  func.func @transform_2(%arg0: i32) -> (i32, i32) {
    %c0_i32 = arith.constant 0 : i32
    %c0_i32_0 = arith.constant 0 : i32
    %c0_i32_1 = arith.constant 0 : i32
    return %c0_i32, %c0_i32_0 : i32, i32
  }
  func.func @transform_3(%arg0: i32) -> (i32, i32) {
    %c0_i32 = arith.constant 0 : i32
    %c0_i32_0 = arith.constant 0 : i32
    %c0_i32_1 = arith.constant 0 : i32
    return %c0_i32, %c0_i32_0 : i32, i32
  }
  func.func @transform_4(%arg0: i32) -> (i32, i32, i32, i32) {
    %c0_i32 = arith.constant 0 : i32
    %c0_i32_0 = arith.constant 0 : i32
    %c0_i32_1 = arith.constant 0 : i32
    %c0_i32_2 = arith.constant 0 : i32
    return %arg0, %c0_i32, %c0_i32_0, %c0_i32_1 : i32, i32, i32, i32
  }
  func.func @transform_5(%arg0: i32) -> (i32, i32, i32) {
    %c0_i32 = arith.constant 0 : i32
    %c0_i32_0 = arith.constant 0 : i32
    %c0_i32_1 = arith.constant 0 : i32
    return %arg0, %c0_i32, %c0_i32_0 : i32, i32, i32
  }
}

module attributes {stable_mosaic.version = 11 : i64} {
  func.func @conv3_stats_kernel(%arg0: i32, %arg1: memref<64x128xf32, #tpu.memory_space<vmem>>, %arg2: memref<1x128xf32, #tpu.memory_space<vmem>>, %arg3: memref<1x128xf32, #tpu.memory_space<vmem>>, %arg4: memref<128x512xbf16, #tpu.memory_space<vmem>>, %arg5: memref<64x512xf32, #tpu.memory_space<vmem>>, %arg6: memref<1x8x512xf32, #tpu.memory_space<vmem>>) attributes {dimension_semantics = [#tpu.dimension_semantics<parallel>], iteration_bounds = array<i64: 2>, scalar_prefetch = 0 : i64, scratch_operands = 0 : i64, tpu.core_type = #tpu.core_type<tc>, window_params = [{transform_indices = @transform_0, window_bounds = array<i64: 64, 128>}, {pipeline_mode = #tpu.pipeline_mode<synchronous>, transform_indices = @transform_1, window_bounds = array<i64: 1, 128>}, {pipeline_mode = #tpu.pipeline_mode<synchronous>, transform_indices = @transform_2, window_bounds = array<i64: 1, 128>}, {pipeline_mode = #tpu.pipeline_mode<synchronous>, transform_indices = @transform_3, window_bounds = array<i64: 128, 512>}, {transform_indices = @transform_4, window_bounds = array<i64: 64, 512>}, {transform_indices = @transform_5, window_bounds = array<i64: 1, 8, 512>}]} {
    %c0 = arith.constant 0 : index
    %c0_0 = arith.constant 0 : index
    %0 = vector.load %arg1[%c0, %c0_0] : memref<64x128xf32, #tpu.memory_space<vmem>>, vector<64x128xf32>
    %c0_1 = arith.constant 0 : index
    %c0_2 = arith.constant 0 : index
    %1 = vector.load %arg2[%c0_1, %c0_2] : memref<1x128xf32, #tpu.memory_space<vmem>>, vector<1x128xf32>
    %2 = vector.broadcast %1 : vector<1x128xf32> to vector<64x128xf32>
    %3 = arith.mulf %0, %2 : vector<64x128xf32>
    %c0_3 = arith.constant 0 : index
    %c0_4 = arith.constant 0 : index
    %4 = vector.load %arg3[%c0_3, %c0_4] : memref<1x128xf32, #tpu.memory_space<vmem>>, vector<1x128xf32>
    %5 = vector.broadcast %4 : vector<1x128xf32> to vector<64x128xf32>
    %6 = arith.addf %3, %5 : vector<64x128xf32>
    %cst = arith.constant 0.000000e+00 : f32
    %7 = vector.broadcast %cst : f32 to vector<64x128xf32>
    %8 = arith.maximumf %6, %7 : vector<64x128xf32>
    %9 = arith.truncf %8 : vector<64x128xf32> to vector<64x128xbf16>
    %c0_5 = arith.constant 0 : index
    %c0_6 = arith.constant 0 : index
    %10 = vector.load %arg4[%c0_5, %c0_6] : memref<128x512xbf16, #tpu.memory_space<vmem>>, vector<128x512xbf16>
    %cst_7 = arith.constant dense<0.000000e+00> : vector<64x512xf32>
    %11 = tpu.matmul %9, %10, %cst_7 {dimension_numbers = #tpu.dot_dimension_numbers<[1], [0], [0], [1], [0, 0, 1, 1], [], []>} : vector<64x128xbf16>, vector<128x512xbf16>, vector<64x512xf32> -> vector<64x512xf32>
    %c0_8 = arith.constant 0 : index
    %c0_9 = arith.constant 0 : index
    %12 = vector.load %arg5[%c0_8, %c0_9] : memref<64x512xf32, #tpu.memory_space<vmem>>, vector<64x512xf32>
    tpu.vector_store %arg5[%c0_8, %c0_9], %11 {strides = array<i32>} : memref<64x512xf32, #tpu.memory_space<vmem>>, vector<64x512xf32>,
    %cst_10 = arith.constant dense<0.000000e+00> : vector<512xf32>
    %13 = vector.multi_reduction <add>, %11, %cst_10 [0] : vector<64x512xf32> to vector<512xf32>
    %14 = vector.shape_cast %13 : vector<512xf32> to vector<1x512xf32>
    %15 = arith.mulf %11, %11 : vector<64x512xf32>
    %cst_11 = arith.constant dense<0.000000e+00> : vector<512xf32>
    %16 = vector.multi_reduction <add>, %15, %cst_11 [0] : vector<64x512xf32> to vector<512xf32>
    %17 = vector.shape_cast %16 : vector<512xf32> to vector<1x512xf32>
    %18 = tpu.iota {dimensions = array<i32: 0>} : vector<8x512xi32>
    %c0_i32 = arith.constant 0 : i32
    %19 = vector.broadcast %c0_i32 : i32 to vector<8x512xi32>
    %20 = arith.cmpi eq, %18, %19 : vector<8x512xi32>
    %21 = vector.shape_cast %14 : vector<1x512xf32> to vector<1x512xf32>
    %22 = vector.broadcast %21 : vector<1x512xf32> to vector<8x512xf32>
    %c1_i32 = arith.constant 1 : i32
    %23 = vector.broadcast %c1_i32 : i32 to vector<8x512xi32>
    %24 = arith.cmpi eq, %18, %23 : vector<8x512xi32>
    %25 = vector.shape_cast %17 : vector<1x512xf32> to vector<1x512xf32>
    %26 = vector.broadcast %25 : vector<1x512xf32> to vector<8x512xf32>
    %cst_12 = arith.constant 0.000000e+00 : f32
    %27 = vector.broadcast %cst_12 : f32 to vector<8x512xf32>
    %28 = arith.select %24, %26, %27 : vector<8x512xi1>, vector<8x512xf32>
    %29 = arith.select %20, %22, %28 : vector<8x512xi1>, vector<8x512xf32>
    %30 = vector.shape_cast %29 : vector<8x512xf32> to vector<1x8x512xf32>
    %c0_13 = arith.constant 0 : index
    %c0_14 = arith.constant 0 : index
    %c0_15 = arith.constant 0 : index
    %31 = vector.load %arg6[%c0_13, %c0_14, %c0_15] : memref<1x8x512xf32, #tpu.memory_space<vmem>>, vector<1x8x512xf32>
    tpu.vector_store %arg6[%c0_13, %c0_14, %c0_15], %30 {strides = array<i32>} : memref<1x8x512xf32, #tpu.memory_space<vmem>>, vector<1x8x512xf32>,
    return
  }
  func.func @transform_0(%arg0: i32) -> (i32, i32) {
    %c0_i32 = arith.constant 0 : i32
    %c0_i32_0 = arith.constant 0 : i32
    return %arg0, %c0_i32 : i32, i32
  }
  func.func @transform_1(%arg0: i32) -> (i32, i32) {
    %c0_i32 = arith.constant 0 : i32
    %c0_i32_0 = arith.constant 0 : i32
    %c0_i32_1 = arith.constant 0 : i32
    return %c0_i32, %c0_i32_0 : i32, i32
  }
  func.func @transform_2(%arg0: i32) -> (i32, i32) {
    %c0_i32 = arith.constant 0 : i32
    %c0_i32_0 = arith.constant 0 : i32
    %c0_i32_1 = arith.constant 0 : i32
    return %c0_i32, %c0_i32_0 : i32, i32
  }
  func.func @transform_3(%arg0: i32) -> (i32, i32) {
    %c0_i32 = arith.constant 0 : i32
    %c0_i32_0 = arith.constant 0 : i32
    %c0_i32_1 = arith.constant 0 : i32
    return %c0_i32, %c0_i32_0 : i32, i32
  }
  func.func @transform_4(%arg0: i32) -> (i32, i32) {
    %c0_i32 = arith.constant 0 : i32
    %c0_i32_0 = arith.constant 0 : i32
    return %arg0, %c0_i32 : i32, i32
  }
  func.func @transform_5(%arg0: i32) -> (i32, i32, i32) {
    %c0_i32 = arith.constant 0 : i32
    %c0_i32_0 = arith.constant 0 : i32
    %c0_i32_1 = arith.constant 0 : i32
    return %arg0, %c0_i32, %c0_i32_0 : i32, i32, i32
  }
}

module attributes {stable_mosaic.version = 11 : i64} {
  func.func @bn3_residual_kernel(%arg0: i32, %arg1: memref<64x512xf32, #tpu.memory_space<vmem>>, %arg2: memref<64x512xf32, #tpu.memory_space<vmem>>, %arg3: memref<1x512xf32, #tpu.memory_space<vmem>>, %arg4: memref<1x512xf32, #tpu.memory_space<vmem>>, %arg5: memref<64x512xf32, #tpu.memory_space<vmem>>) attributes {dimension_semantics = [#tpu.dimension_semantics<parallel>], iteration_bounds = array<i64: 2>, scalar_prefetch = 0 : i64, scratch_operands = 0 : i64, tpu.core_type = #tpu.core_type<tc>, window_params = [{transform_indices = @transform_0, window_bounds = array<i64: 64, 512>}, {transform_indices = @transform_1, window_bounds = array<i64: 64, 512>}, {pipeline_mode = #tpu.pipeline_mode<synchronous>, transform_indices = @transform_2, window_bounds = array<i64: 1, 512>}, {pipeline_mode = #tpu.pipeline_mode<synchronous>, transform_indices = @transform_3, window_bounds = array<i64: 1, 512>}, {transform_indices = @transform_4, window_bounds = array<i64: 64, 512>}]} {
    %c0 = arith.constant 0 : index
    %c0_0 = arith.constant 0 : index
    %0 = vector.load %arg1[%c0, %c0_0] : memref<64x512xf32, #tpu.memory_space<vmem>>, vector<64x512xf32>
    %c0_1 = arith.constant 0 : index
    %c0_2 = arith.constant 0 : index
    %1 = vector.load %arg3[%c0_1, %c0_2] : memref<1x512xf32, #tpu.memory_space<vmem>>, vector<1x512xf32>
    %2 = vector.broadcast %1 : vector<1x512xf32> to vector<64x512xf32>
    %3 = arith.mulf %0, %2 : vector<64x512xf32>
    %c0_3 = arith.constant 0 : index
    %c0_4 = arith.constant 0 : index
    %4 = vector.load %arg4[%c0_3, %c0_4] : memref<1x512xf32, #tpu.memory_space<vmem>>, vector<1x512xf32>
    %5 = vector.broadcast %4 : vector<1x512xf32> to vector<64x512xf32>
    %6 = arith.addf %3, %5 : vector<64x512xf32>
    %c0_5 = arith.constant 0 : index
    %c0_6 = arith.constant 0 : index
    %7 = vector.load %arg2[%c0_5, %c0_6] : memref<64x512xf32, #tpu.memory_space<vmem>>, vector<64x512xf32>
    %8 = arith.addf %6, %7 : vector<64x512xf32>
    %cst = arith.constant 0.000000e+00 : f32
    %9 = vector.broadcast %cst : f32 to vector<64x512xf32>
    %10 = arith.maximumf %8, %9 : vector<64x512xf32>
    %c0_7 = arith.constant 0 : index
    %c0_8 = arith.constant 0 : index
    %11 = vector.load %arg5[%c0_7, %c0_8] : memref<64x512xf32, #tpu.memory_space<vmem>>, vector<64x512xf32>
    tpu.vector_store %arg5[%c0_7, %c0_8], %10 {strides = array<i32>} : memref<64x512xf32, #tpu.memory_space<vmem>>, vector<64x512xf32>,
    return
  }
  func.func @transform_0(%arg0: i32) -> (i32, i32) {
    %c0_i32 = arith.constant 0 : i32
    %c0_i32_0 = arith.constant 0 : i32
    return %arg0, %c0_i32 : i32, i32
  }
  func.func @transform_1(%arg0: i32) -> (i32, i32) {
    %c0_i32 = arith.constant 0 : i32
    %c0_i32_0 = arith.constant 0 : i32
    return %arg0, %c0_i32 : i32, i32
  }
  func.func @transform_2(%arg0: i32) -> (i32, i32) {
    %c0_i32 = arith.constant 0 : i32
    %c0_i32_0 = arith.constant 0 : i32
    %c0_i32_1 = arith.constant 0 : i32
    return %c0_i32, %c0_i32_0 : i32, i32
  }
  func.func @transform_3(%arg0: i32) -> (i32, i32) {
    %c0_i32 = arith.constant 0 : i32
    %c0_i32_0 = arith.constant 0 : i32
    %c0_i32_1 = arith.constant 0 : i32
    return %c0_i32, %c0_i32_0 : i32, i32
  }
  func.func @transform_4(%arg0: i32) -> (i32, i32) {
    %c0_i32 = arith.constant 0 : i32
    %c0_i32_0 = arith.constant 0 : i32
    return %arg0, %c0_i32 : i32, i32
  }
}

</mosaic_0001>

<llo_original>
// kernel: bottleneck_forward.4
$region0: #{bottleneck_forward.4}
  #allocation0 [shape = 'u32[]', space=smem, size = 0x4, offset = 0x4, fixed_abs, tag = 'smem constant byte address 0x4 - core index']
  #allocation1 [shape = 'u32[144,128]{1,0:T(1,128)}', space=vmem, size = 0x12000, scoped, tag = 'internal scratch']
  %s0 = inlined_call_operand.vmem [shape: f32[128,512], index: 0, kind: input, shape index: {}]
  %s1 = inlined_call_operand.vmem [shape: bf16[512,128], index: 1, kind: input, shape index: {}]
  %s2 = inlined_call_operand.vmem [shape: f32[128,128], index: 2, kind: output, shape index: {0}]
  %s3 = inlined_call_operand.vmem [shape: f32[2,8,128], index: 3, kind: output, shape index: {1}]
  %4 = xla_tuple %s2, %s3
  %s5 = sld [smem:[#allocation0]]
  $region49: #{bottleneck_forward.4} parent=0
    _
  %s7 = ssub.s32 1, %s5
  %s8 = scalar_select 0, %s7, %s5
  loop: start=0, step=1, limit=4
  $region2: #{bottleneck_forward.4} parent=0 // loop_pre_header
    _
  $region3: #{bottleneck_forward.4} parent=0 // loop_header
    %s10 = sphi 0, %s14
    %p11 = scmp.ge.s32.totalorder %s10, 4
    %s20 = sphi 0, %s22
    %s23 = sphi 0, %s20
    %s24 = sphi 0, %s23
    %s40 = sphi 0, %s24
    %s44 = sphi 0, %s44
    %s46 = sphi 0, %s44
    %s47 = sphi 0, %s46
    %s61 = sphi 0, %s47
    %s67 = sphi 0, %s69
    %s70 = sphi 0, %s67
    %s71 = sphi 0, %s70
    %s87 = sphi 0, %s71
    %s93 = sphi 0, %s95
    %s96 = sphi 0, %s93
    %s97 = sphi 0, %s96
    %s113 = sphi 0, %s97
  $region4: #{bottleneck_forward.4} parent=0 // loop_header_branch
    %13 = sbr.rel (%p11) target = $region8
  $region5: #{bottleneck_forward.4} parent=0 // loop_body
    %s15 = ssub.s32 %s10, 1
    %s16 = ssub.s32 %s10, 2
    %s17 = sadd.s32 %s10, 1
    %s18 = ssub.s32 %s10, %s17
    %p19 = scmp.eq.s32.totalorder %s18, 0
    %s21 = sadd.s32 %s20, 1
    %s22 = scalar_select %p19, %s20, %s21
    %p25 = pneg %p19
    %p26 = scmp.eq.s32.totalorder %s10, 1
    %p27 = por %p25, %p26
    %p28 = scmp.ne.s32.totalorder %s20, %s23
    %p29 = scmp.eq.s32.totalorder %s10, 0
    %p30 = por %p28, %p29
    %p31 = scmp.ne.s32.totalorder %s20, %s23
    %p32 = scmp.eq.s32.totalorder %s15, 1
    %p33 = por %p31, %p32
    %p34 = scmp.ne.s32.totalorder %s23, %s24
    %p35 = scmp.eq.s32.totalorder %s15, 0
    %p36 = por %p34, %p35
    %p37 = scmp.ne.s32.totalorder %s23, %s24
    %p38 = scmp.eq.s32.totalorder %s16, 1
    %p39 = por %p37, %p38
    %p41 = scmp.ne.s32.totalorder %s24, %s40
    %p42 = scmp.eq.s32.totalorder %s16, 0
    %p43 = por %p41, %p42
    %s45 = sadd.s32 %s44, 1
    %p48 = scmp.eq.s32.totalorder %s10, 1
    %p49 = scmp.ne.s32.totalorder %s44, %s46
    %p50 = scmp.eq.s32.totalorder %s10, 0
    %p51 = por %p49, %p50
    %p52 = scmp.ne.s32.totalorder %s44, %s46
    %p53 = scmp.eq.s32.totalorder %s15, 1
    %p54 = por %p52, %p53
    %p55 = scmp.ne.s32.totalorder %s46, %s47
    %p56 = scmp.eq.s32.totalorder %s15, 0
    %p57 = por %p55, %p56
    %p58 = scmp.ne.s32.totalorder %s46, %s47
    %p59 = scmp.eq.s32.totalorder %s16, 1
    %p60 = por %p58, %p59
    %p62 = scmp.ne.s32.totalorder %s47, %s61
    %p63 = scmp.eq.s32.totalorder %s16, 0
    %p64 = por %p62, %p63
    %s65 = ssub.s32 %s10, %s17
    %p66 = scmp.eq.s32.totalorder %s65, 0
    %s68 = sadd.s32 %s67, 1
    %s69 = scalar_select %p66, %s67, %s68
    %p72 = pneg %p66
    %p73 = scmp.eq.s32.totalorder %s10, 1
    %p74 = por %p72, %p73
    %p75 = scmp.ne.s32.totalorder %s67, %s70
    %p76 = scmp.eq.s32.totalorder %s10, 0
    %p77 = por %p75, %p76
    %p78 = scmp.ne.s32.totalorder %s67, %s70
    %p79 = scmp.eq.s32.totalorder %s15, 1
    %p80 = por %p78, %p79
    %p81 = scmp.ne.s32.totalorder %s70, %s71
    %p82 = scmp.eq.s32.totalorder %s15, 0
    %p83 = por %p81, %p82
    %p84 = scmp.ne.s32.totalorder %s70, %s71
    %p85 = scmp.eq.s32.totalorder %s16, 1
    %p86 = por %p84, %p85
    %p88 = scmp.ne.s32.totalorder %s71, %s87
    %p89 = scmp.eq.s32.totalorder %s16, 0
    %p90 = por %p88, %p89
    %s91 = ssub.s32 %s10, %s17
    %p92 = scmp.eq.s32.totalorder %s91, 0
    %s94 = sadd.s32 %s93, 1
    %s95 = scalar_select %p92, %s93, %s94
    %p98 = pneg %p92
    %p99 = scmp.eq.s32.totalorder %s10, 1
    %p100 = por %p98, %p99
    %p101 = scmp.ne.s32.totalorder %s93, %s96
    %p102 = scmp.eq.s32.totalorder %s10, 0
    %p103 = por %p101, %p102
    %p104 = scmp.ne.s32.totalorder %s93, %s96
    %p105 = scmp.eq.s32.totalorder %s15, 1
    %p106 = por %p104, %p105
    %p107 = scmp.ne.s32.totalorder %s96, %s97
    %p108 = scmp.eq.s32.totalorder %s15, 0
    %p109 = por %p107, %p108
    %p110 = scmp.ne.s32.totalorder %s96, %s97
    %p111 = scmp.eq.s32.totalorder %s16, 1
    %p112 = por %p110, %p111
    %p114 = scmp.ne.s32.totalorder %s97, %s113
    %p115 = scmp.eq.s32.totalorder %s16, 0
    %p116 = por %p114, %p115
    %p117 = scmp.le.s32.totalorder 1, %s10
    %p118 = scmp.lt.s32.totalorder %s10, 3
    %p119 = pnand %p117, %p118
    %p120 = pneg %p119
    // Predicated region
    $region9: #{bottleneck_forward.4} parent=5 // pred_check
      _
    $region10: #{bottleneck_forward.4} parent=5 // pred_check_branch
      %122 = sbr.rel (%p119) target = $region12
    $region11: #{bottleneck_forward.4} parent=5 // pred_region
      %s123 = ssub.s32 %s10, 1
      // Predicated region
      $region13: #{bottleneck_forward.4} parent=11 // pred_check
        %p124 = pneg %p57
      $region14: #{bottleneck_forward.4} parent=11 // pred_check_branch
        %126 = sbr.rel (%p124) target = $region16
      $region15: #{bottleneck_forward.4} parent=11 // pred_region
        _
      $region16: #{bottleneck_forward.4} parent=11 // pred_fallthru
        _
    $region12: #{bottleneck_forward.4} parent=5 // pred_fallthru
      _
    %p127 = scmp.lt.s32.totalorder %s10, 2
    // Predicated region
    $region17: #{bottleneck_forward.4} parent=5 // pred_check
      %p128 = pneg %p127
    $region18: #{bottleneck_forward.4} parent=5 // pred_check_branch
      %130 = sbr.rel (%p128) target = $region20
    $region19: #{bottleneck_forward.4} parent=5 // pred_region
      // Predicated region
      $region21: #{bottleneck_forward.4} parent=19 // pred_check
        %p131 = pneg %p30
      $region22: #{bottleneck_forward.4} parent=19 // pred_check_branch
        %133 = sbr.rel (%p131) target = $region24
      $region23: #{bottleneck_forward.4} parent=19 // pred_region
        %s134 = smul.u32 8, %s10
        %p135 = scmp.lt.s32.totalorder %s134, 15
        %s136 = scalar_select %p135, %s134, 15
        %s137 = smul.addr %s136, 4
        %s138 = smul.addr %s137, 8
        %s139 = scalar_lea.vmem %s0, %s138
        %s140 = smul.u32 8, %s10
      $region24: #{bottleneck_forward.4} parent=19 // pred_fallthru
        _
    $region20: #{bottleneck_forward.4} parent=5 // pred_fallthru
      _
    %p141 = scmp.le.s32.totalorder 1, %s10
    %p142 = scmp.lt.s32.totalorder %s10, 3
    %p143 = pnand %p141, %p142
    %p144 = pneg %p143
    // Predicated region
    $region25: #{bottleneck_forward.4} parent=5 // pred_check
      _
    $region26: #{bottleneck_forward.4} parent=5 // pred_check_branch
      %146 = sbr.rel (%p143) target = $region28
    $region27: #{bottleneck_forward.4} parent=5 // pred_region
      %s147 = ssub.s32 %s10, 1
      %s148 = smul.u32 8, %s15
      %p149 = scmp.lt.s32.totalorder %s148, 15
      %s150 = scalar_select %p149, %s148, 15
      %s151 = smul.addr %s150, 4
      %s152 = smul.addr %s151, 8
      %s153 = scalar_lea.vmem %s0, %s152
      %p154 = pneg %p36
      %p155 = pneg %p33
      %p156 = pneg %p57
      %p157 = pneg %p54
      %p158 = pneg %p83
      %p159 = pneg %p80
      %s160 = smul.u32 8, %s15
      %p161 = scmp.lt.s32.totalorder %s160, 15
      %s162 = scalar_select %p161, %s160, 15
      %s163 = smul.addr %s162, 8
      %s164 = scalar_lea.vmem %s2, %s163
      %p165 = pneg %p109
      %p166 = pneg %p106
      %p167 = scmp.lt.s32.totalorder %s15, 1
      %s168 = scalar_select %p167, %s15, 1
      %s169 = smul.addr %s168, 8
      %s170 = scalar_lea.vmem %s3, %s169
      %s171 = smul.u32 8, %s15
      %p172 = scmp.lt.s32.totalorder %s171, 15
      %s173 = scalar_select %p172, %s171, 15
      %s174 = smul.addr %s173, 4
      %s175 = smul.addr %s174, 8
      %s176 = scalar_lea.vmem %s0, %s175
      %s177 = smul.u32 8, %s15
      %s178 = smul.u32 8, %s15
      %p179 = scmp.lt.s32.totalorder %s178, 15
      %s180 = scalar_select %p179, %s178, 15
      %s181 = smul.addr %s180, 8
      %s182 = scalar_lea.vmem %s2, %s181
      %s183 = smul.u32 8, %s15
      %p184 = scmp.lt.s32.totalorder %s15, 1
      %s185 = scalar_select %p184, %s15, 1
      %s186 = smul.addr %s185, 8
      %s187 = scalar_lea.vmem %s3, %s186
      %v189 = vld [vmem:[%s176] sm:$0xff]
      %v190 = vld [vmem:[%s176 + $0x8] sm:$0xff]
      %v191 = vld [vmem:[%s176 + $0x10] sm:$0xff]
      %v192 = vld [vmem:[%s176 + $0x18] sm:$0xff]
      %v193 = vld [vmem:[%s176 + $0x20] sm:$0xff]
      %v194 = vld [vmem:[%s176 + $0x28] sm:$0xff]
      %v195 = vld [vmem:[%s176 + $0x30] sm:$0xff]
      %v196 = vld [vmem:[%s176 + $0x38] sm:$0xff]
      %v197 = vld [vmem:[%s176 + $0x40] sm:$0xff]
      %v198 = vld [vmem:[%s176 + $0x48] sm:$0xff]
      %v199 = vld [vmem:[%s176 + $0x50] sm:$0xff]
      %v200 = vld [vmem:[%s176 + $0x58] sm:$0xff]
      %v201 = vld [vmem:[%s176 + $0x60] sm:$0xff]
      %v202 = vld [vmem:[%s176 + $0x68] sm:$0xff]
      %v203 = vld [vmem:[%s176 + $0x70] sm:$0xff]
      %v204 = vld [vmem:[%s176 + $0x78] sm:$0xff]
      %v205 = vld [vmem:[%s176 + $0x80] sm:$0xff]
      %v206 = vld [vmem:[%s176 + $0x88] sm:$0xff]
      %v207 = vld [vmem:[%s176 + $0x90] sm:$0xff]
      %v208 = vld [vmem:[%s176 + $0x98] sm:$0xff]
      %v209 = vld [vmem:[%s176 + $0xa0] sm:$0xff]
      %v210 = vld [vmem:[%s176 + $0xa8] sm:$0xff]
      %v211 = vld [vmem:[%s176 + $0xb0] sm:$0xff]
      %v212 = vld [vmem:[%s176 + $0xb8] sm:$0xff]
      %v213 = vld [vmem:[%s176 + $0xc0] sm:$0xff]
      %v214 = vld [vmem:[%s176 + $0xc8] sm:$0xff]
      %v215 = vld [vmem:[%s176 + $0xd0] sm:$0xff]
      %v216 = vld [vmem:[%s176 + $0xd8] sm:$0xff]
      %v217 = vld [vmem:[%s176 + $0xe0] sm:$0xff]
      %v218 = vld [vmem:[%s176 + $0xe8] sm:$0xff]
      %v219 = vld [vmem:[%s176 + $0xf0] sm:$0xff]
      %v220 = vld [vmem:[%s176 + $0xf8] sm:$0xff]
      %v221 = vpack.c.bf16 %v193, %v189
      %v222 = vpack.c.bf16 %v194, %v190
      %v223 = vpack.c.bf16 %v195, %v191
      %v224 = vpack.c.bf16 %v196, %v192
      %v225 = vpack.c.bf16 %v201, %v197
      %v226 = vpack.c.bf16 %v202, %v198
      %v227 = vpack.c.bf16 %v203, %v199
      %v228 = vpack.c.bf16 %v204, %v200
      %v229 = vpack.c.bf16 %v209, %v205
      %v230 = vpack.c.bf16 %v210, %v206
      %v231 = vpack.c.bf16 %v211, %v207
      %v232 = vpack.c.bf16 %v212, %v208
      %v233 = vpack.c.bf16 %v217, %v213
      %v234 = vpack.c.bf16 %v218, %v214
      %v235 = vpack.c.bf16 %v219, %v215
      %v236 = vpack.c.bf16 %v220, %v216
      %v237 = vld [vmem:[%s1] sm:$0xf]
      %v238 = vld [vmem:[%s1 + $0x4] sm:$0xf]
      %v239 = vld [vmem:[%s1 + $0x8] sm:$0xf]
      %v240 = vld [vmem:[%s1 + $0xc] sm:$0xf]
      %v241 = vld [vmem:[%s1 + $0x10] sm:$0xf]
      %v242 = vld [vmem:[%s1 + $0x14] sm:$0xf]
      %v243 = vld [vmem:[%s1 + $0x18] sm:$0xf]
      %v244 = vld [vmem:[%s1 + $0x1c] sm:$0xf]
      %v245 = vld [vmem:[%s1 + $0x20] sm:$0xf]
      %v246 = vld [vmem:[%s1 + $0x24] sm:$0xf]
      %v247 = vld [vmem:[%s1 + $0x28] sm:$0xf]
      %v248 = vld [vmem:[%s1 + $0x2c] sm:$0xf]
      %v249 = vld [vmem:[%s1 + $0x30] sm:$0xf]
      %v250 = vld [vmem:[%s1 + $0x34] sm:$0xf]
      %v251 = vld [vmem:[%s1 + $0x38] sm:$0xf]
      %v252 = vld [vmem:[%s1 + $0x3c] sm:$0xf]
      %v253 = vld [vmem:[%s1 + $0x40] sm:$0xf]
      %v254 = vld [vmem:[%s1 + $0x44] sm:$0xf]
      %v255 = vld [vmem:[%s1 + $0x48] sm:$0xf]
      %v256 = vld [vmem:[%s1 + $0x4c] sm:$0xf]
      %v257 = vld [vmem:[%s1 + $0x50] sm:$0xf]
      %v258 = vld [vmem:[%s1 + $0x54] sm:$0xf]
      %v259 = vld [vmem:[%s1 + $0x58] sm:$0xf]
      %v260 = vld [vmem:[%s1 + $0x5c] sm:$0xf]
      %v261 = vld [vmem:[%s1 + $0x60] sm:$0xf]
      %v262 = vld [vmem:[%s1 + $0x64] sm:$0xf]
      %v263 = vld [vmem:[%s1 + $0x68] sm:$0xf]
      %v264 = vld [vmem:[%s1 + $0x6c] sm:$0xf]
      %v265 = vld [vmem:[%s1 + $0x70] sm:$0xf]
      %v266 = vld [vmem:[%s1 + $0x74] sm:$0xf]
      %v267 = vld [vmem:[%s1 + $0x78] sm:$0xf]
      %v268 = vld [vmem:[%s1 + $0x7c] sm:$0xf]
      %v269 = vld [vmem:[%s1 + $0x80] sm:$0xf]
      %v270 = vld [vmem:[%s1 + $0x84] sm:$0xf]
      %v271 = vld [vmem:[%s1 + $0x88] sm:$0xf]
      %v272 = vld [vmem:[%s1 + $0x8c] sm:$0xf]
      %v273 = vld [vmem:[%s1 + $0x90] sm:$0xf]
      %v274 = vld [vmem:[%s1 + $0x94] sm:$0xf]
      %v275 = vld [vmem:[%s1 + $0x98] sm:$0xf]
      %v276 = vld [vmem:[%s1 + $0x9c] sm:$0xf]
      %v277 = vld [vmem:[%s1 + $0xa0] sm:$0xf]
      %v278 = vld [vmem:[%s1 + $0xa4] sm:$0xf]
      %v279 = vld [vmem:[%s1 + $0xa8] sm:$0xf]
      %v280 = vld [vmem:[%s1 + $0xac] sm:$0xf]
      %v281 = vld [vmem:[%s1 + $0xb0] sm:$0xf]
      %v282 = vld [vmem:[%s1 + $0xb4] sm:$0xf]
      %v283 = vld [vmem:[%s1 + $0xb8] sm:$0xf]
      %v284 = vld [vmem:[%s1 + $0xbc] sm:$0xf]
      %v285 = vld [vmem:[%s1 + $0xc0] sm:$0xf]
      %v286 = vld [vmem:[%s1 + $0xc4] sm:$0xf]
      %v287 = vld [vmem:[%s1 + $0xc8] sm:$0xf]
      %v288 = vld [vmem:[%s1 + $0xcc] sm:$0xf]
      %v289 = vld [vmem:[%s1 + $0xd0] sm:$0xf]
      %v290 = vld [vmem:[%s1 + $0xd4] sm:$0xf]
      %v291 = vld [vmem:[%s1 + $0xd8] sm:$0xf]
      %v292 = vld [vmem:[%s1 + $0xdc] sm:$0xf]
      %v293 = vld [vmem:[%s1 + $0xe0] sm:$0xf]
      %v294 = vld [vmem:[%s1 + $0xe4] sm:$0xf]
      %v295 = vld [vmem:[%s1 + $0xe8] sm:$0xf]
      %v296 = vld [vmem:[%s1 + $0xec] sm:$0xf]
      %v297 = vld [vmem:[%s1 + $0xf0] sm:$0xf]
      %v298 = vld [vmem:[%s1 + $0xf4] sm:$0xf]
      %v299 = vld [vmem:[%s1 + $0xf8] sm:$0xf]
      %v300 = vld [vmem:[%s1 + $0xfc] sm:$0xf]
      %v365 = vunpack.c.l.b16 %v237
      %v366 = vunpack.c.l.b16 %v238
      %v367 = vunpack.c.l.b16 %v239
      %v368 = vunpack.c.l.b16 %v240
      %v369 = vunpack.c.l.b16 %v241
      %v370 = vunpack.c.l.b16 %v242
      %v371 = vunpack.c.l.b16 %v243
      %v372 = vunpack.c.l.b16 %v244
      %v373 = vunpack.c.l.b16 %v245
      %v374 = vunpack.c.l.b16 %v246
      %v375 = vunpack.c.l.b16 %v247
      %v376 = vunpack.c.l.b16 %v248
      %v377 = vunpack.c.l.b16 %v249
      %v378 = vunpack.c.l.b16 %v250
      %v379 = vunpack.c.l.b16 %v251
      %v380 = vunpack.c.l.b16 %v252
      %v381 = vunpack.c.l.b16 %v253
      %v382 = vunpack.c.l.b16 %v254
      %v383 = vunpack.c.l.b16 %v255
      %v384 = vunpack.c.l.b16 %v256
      %v385 = vunpack.c.l.b16 %v257
      %v386 = vunpack.c.l.b16 %v258
      %v387 = vunpack.c.l.b16 %v259
      %v388 = vunpack.c.l.b16 %v260
      %v389 = vunpack.c.l.b16 %v261
      %v390 = vunpack.c.l.b16 %v262
      %v391 = vunpack.c.l.b16 %v263
      %v392 = vunpack.c.l.b16 %v264
      %v393 = vunpack.c.l.b16 %v265
      %v394 = vunpack.c.l.b16 %v266
      %v395 = vunpack.c.l.b16 %v267
      %v396 = vunpack.c.l.b16 %v268
      %v397 = vunpack.c.l.b16 %v269
      %v398 = vunpack.c.l.b16 %v270
      %v399 = vunpack.c.l.b16 %v271
      %v400 = vunpack.c.l.b16 %v272
      %v401 = vunpack.c.l.b16 %v273
      %v402 = vunpack.c.l.b16 %v274
      %v403 = vunpack.c.l.b16 %v275
      %v404 = vunpack.c.l.b16 %v276
      %v405 = vunpack.c.l.b16 %v277
      %v406 = vunpack.c.l.b16 %v278
      %v407 = vunpack.c.l.b16 %v279
      %v408 = vunpack.c.l.b16 %v280
      %v409 = vunpack.c.l.b16 %v281
      %v410 = vunpack.c.l.b16 %v282
      %v411 = vunpack.c.l.b16 %v283
      %v412 = vunpack.c.l.b16 %v284
      %v413 = vunpack.c.l.b16 %v285
      %v414 = vunpack.c.l.b16 %v286
      %v415 = vunpack.c.l.b16 %v287
      %v416 = vunpack.c.l.b16 %v288
      %v417 = vunpack.c.l.b16 %v289
      %v418 = vunpack.c.l.b16 %v290
      %v419 = vunpack.c.l.b16 %v291
      %v420 = vunpack.c.l.b16 %v292
      %v421 = vunpack.c.l.b16 %v293
      %v422 = vunpack.c.l.b16 %v294
      %v423 = vunpack.c.l.b16 %v295
      %v424 = vunpack.c.l.b16 %v296
      %v425 = vunpack.c.l.b16 %v297
      %v426 = vunpack.c.l.b16 %v298
      %v427 = vunpack.c.l.b16 %v299
      %v428 = vunpack.c.l.b16 %v300
      %v429 = vpack.c.b16 %v366, %v365
      %v430 = vpack.c.b16 %v368, %v367
      %v431 = vpack.c.b16 %v370, %v369
      %v432 = vpack.c.b16 %v372, %v371
      %v433 = vpack.c.b16 %v374, %v373
      %v434 = vpack.c.b16 %v376, %v375
      %v435 = vpack.c.b16 %v378, %v377
      %v436 = vpack.c.b16 %v380, %v379
      %v437 = vpack.c.b16 %v382, %v381
      %v438 = vpack.c.b16 %v384, %v383
      %v439 = vpack.c.b16 %v386, %v385
      %v440 = vpack.c.b16 %v388, %v387
      %v441 = vpack.c.b16 %v390, %v389
      %v442 = vpack.c.b16 %v392, %v391
      %v443 = vpack.c.b16 %v394, %v393
      %v444 = vpack.c.b16 %v396, %v395
      %v445 = vpack.c.b16 %v398, %v397
      %v446 = vpack.c.b16 %v400, %v399
      %v447 = vpack.c.b16 %v402, %v401
      %v448 = vpack.c.b16 %v404, %v403
      %v449 = vpack.c.b16 %v406, %v405
      %v450 = vpack.c.b16 %v408, %v407
      %v451 = vpack.c.b16 %v410, %v409
      %v452 = vpack.c.b16 %v412, %v411
      %v453 = vpack.c.b16 %v414, %v413
      %v454 = vpack.c.b16 %v416, %v415
      %v455 = vpack.c.b16 %v418, %v417
      %v456 = vpack.c.b16 %v420, %v419
      %v457 = vpack.c.b16 %v422, %v421
      %v458 = vpack.c.b16 %v424, %v423
      %v459 = vpack.c.b16 %v426, %v425
      %v460 = vpack.c.b16 %v428, %v427
      %493 = vmatprep.subr.bf16.mxu0 0
      %494 = vmatpush1.bf16.msra.mxu0 %v436
      %495 = vmatprep.subr.bf16.mxu0 0
      %496 = vmatpush1.bf16.msra.mxu0 %v435
      %497 = vmatprep.subr.bf16.mxu0 0
      %498 = vmatpush1.bf16.msra.mxu0 %v434
      %499 = vmatprep.subr.bf16.mxu0 0
      %500 = vmatpush1.bf16.msra.mxu0 %v433
      %501 = vmatprep.subr.bf16.mxu0 0
      %502 = vmatpush1.bf16.msra.mxu0 %v432
      %503 = vmatprep.subr.bf16.mxu0 0
      %504 = vmatpush1.bf16.msra.mxu0 %v431
      %505 = vmatprep.subr.bf16.mxu0 0
      %506 = vmatpush1.bf16.msra.mxu0 %v430
      %507 = vmatprep.subr.bf16.mxu0 0
      %508 = vmatpush1.bf16.msra.mxu0 %v429
      %509 = vmatprep.subr.bf16.mxu0 0
      %510 = vmatpush2.bf16.msra.mxu0 %v444
      %511 = vmatprep.subr.bf16.mxu0 0
      %512 = vmatpush2.bf16.msra.mxu0 %v443
      %513 = vmatprep.subr.bf16.mxu0 0
      %514 = vmatpush2.bf16.msra.mxu0 %v442
      %515 = vmatprep.subr.bf16.mxu0 0
      %516 = vmatpush2.bf16.msra.mxu0 %v441
      %517 = vmatprep.subr.bf16.mxu0 0
      %518 = vmatpush2.bf16.msra.mxu0 %v440
      %519 = vmatprep.subr.bf16.mxu0 0
      %520 = vmatpush2.bf16.msra.mxu0 %v439
      %521 = vmatprep.subr.bf16.mxu0 0
      %522 = vmatpush2.bf16.msra.mxu0 %v438
      %523 = vmatprep.subr.bf16.mxu0 0
      %524 = vmatpush2.bf16.msra.mxu0 %v437
      %525 = vmatprep.mubr.bf16.mxu0 %v222
      %526 = vmatmul.mubr.bf16.gmra.mxu0 %v221
      %v527 = vpop.f32.mrf.mxu0
      %v528 = vadd.f32 0.0, %v527
      %v529 = vpop.f32.mrf.mxu0
      %v530 = vpop.f32.mrf.mxu0
      %v531 = vadd.f32 0.0, %v530
      %v532 = vpop.f32.mrf.mxu0
      %533 = vmatprep.mubr.bf16.mxu0 %v226
      %534 = vmatmul.mubr.bf16.gmra.mxu0 %v225
      %v535 = vpop.f32.mrf.mxu0
      %v536 = vadd.f32 0.0, %v535
      %v537 = vpop.f32.mrf.mxu0
      %v538 = vpop.f32.mrf.mxu0
      %v539 = vadd.f32 0.0, %v538
      %v540 = vpop.f32.mrf.mxu0
      %541 = vmatprep.mubr.bf16.mxu0 %v230
      %542 = vmatmul.mubr.bf16.gmra.mxu0 %v229
      %v543 = vpop.f32.mrf.mxu0
      %v544 = vadd.f32 0.0, %v543
      %v545 = vpop.f32.mrf.mxu0
      %v546 = vpop.f32.mrf.mxu0
      %v547 = vadd.f32 0.0, %v546
      %v548 = vpop.f32.mrf.mxu0
      %549 = vmatprep.mubr.bf16.mxu0 %v234
      %550 = vmatmul.mubr.bf16.gmra.mxu0 %v233
      %v551 = vpop.f32.mrf.mxu0
      %v552 = vadd.f32 0.0, %v551
      %v553 = vpop.f32.mrf.mxu0
      %v554 = vpop.f32.mrf.mxu0
      %v555 = vadd.f32 0.0, %v554
      %v556 = vpop.f32.mrf.mxu0
      %557 = vdwg.mxu0
      %558 = vmatprep.subr.bf16.mxu0 0
      %559 = vmatpush1.bf16.msra.mxu0 %v452
      %560 = vmatprep.subr.bf16.mxu0 0
      %561 = vmatpush1.bf16.msra.mxu0 %v451
      %562 = vmatprep.subr.bf16.mxu0 0
      %563 = vmatpush1.bf16.msra.mxu0 %v450
      %564 = vmatprep.subr.bf16.mxu0 0
      %565 = vmatpush1.bf16.msra.mxu0 %v449
      %566 = vmatprep.subr.bf16.mxu0 0
      %567 = vmatpush1.bf16.msra.mxu0 %v448
      %568 = vmatprep.subr.bf16.mxu0 0
      %569 = vmatpush1.bf16.msra.mxu0 %v447
      %570 = vmatprep.subr.bf16.mxu0 0
      %571 = vmatpush1.bf16.msra.mxu0 %v446
      %572 = vmatprep.subr.bf16.mxu0 0
      %573 = vmatpush1.bf16.msra.mxu0 %v445
      %574 = vmatprep.subr.bf16.mxu0 0
      %575 = vmatpush2.bf16.msra.mxu0 %v460
      %576 = vmatprep.subr.bf16.mxu0 0
      %577 = vmatpush2.bf16.msra.mxu0 %v459
      %578 = vmatprep.subr.bf16.mxu0 0
      %579 = vmatpush2.bf16.msra.mxu0 %v458
      %580 = vmatprep.subr.bf16.mxu0 0
      %581 = vmatpush2.bf16.msra.mxu0 %v457
      %582 = vmatprep.subr.bf16.mxu0 0
      %583 = vmatpush2.bf16.msra.mxu0 %v456
      %584 = vmatprep.subr.bf16.mxu0 0
      %585 = vmatpush2.bf16.msra.mxu0 %v455
      %586 = vmatprep.subr.bf16.mxu0 0
      %587 = vmatpush2.bf16.msra.mxu0 %v454
      %588 = vmatprep.subr.bf16.mxu0 0
      %589 = vmatpush2.bf16.msra.mxu0 %v453
      %590 = vmatprep.mubr.bf16.mxu0 %v224
      %591 = vmatmul.mubr.bf16.gmra.mxu0 %v223
      %v592 = vpop.f32.mrf.mxu0
      %v593 = vadd.f32 %v528, %v592
      %v594 = vpop.f32.mrf.mxu0
      %v595 = vpop.f32.mrf.mxu0
      %v596 = vadd.f32 %v531, %v595
      %v597 = vpop.f32.mrf.mxu0
      %598 = vmatprep.mubr.bf16.mxu0 %v228
      %599 = vmatmul.mubr.bf16.gmra.mxu0 %v227
      %v600 = vpop.f32.mrf.mxu0
      %v601 = vadd.f32 %v536, %v600
      %v602 = vpop.f32.mrf.mxu0
      %v603 = vpop.f32.mrf.mxu0
      %v604 = vadd.f32 %v539, %v603
      %v605 = vpop.f32.mrf.mxu0
      %606 = vmatprep.mubr.bf16.mxu0 %v232
      %607 = vmatmul.mubr.bf16.gmra.mxu0 %v231
      %v608 = vpop.f32.mrf.mxu0
      %v609 = vadd.f32 %v544, %v608
      %v610 = vpop.f32.mrf.mxu0
      %v611 = vpop.f32.mrf.mxu0
      %v612 = vadd.f32 %v547, %v611
      %v613 = vpop.f32.mrf.mxu0
      %614 = vmatprep.mubr.bf16.mxu0 %v236
      %615 = vmatmul.mubr.bf16.gmra.mxu0 %v235
      %v616 = vpop.f32.mrf.mxu0
      %v617 = vadd.f32 %v552, %v616
      %v618 = vpop.f32.mrf.mxu0
      %v619 = vpop.f32.mrf.mxu0
      %v620 = vadd.f32 %v555, %v619
      %v621 = vpop.f32.mrf.mxu0
      %622 = vdwg.mxu0
      %623 = vst [vmem:[%s182] sm:$0xff] %v593
      %624 = vst [vmem:[%s182 + $0x8] sm:$0xff] %v596
      %625 = vst [vmem:[%s182 + $0x10] sm:$0xff] %v601
      %626 = vst [vmem:[%s182 + $0x18] sm:$0xff] %v604
      %627 = vst [vmem:[%s182 + $0x20] sm:$0xff] %v609
      %628 = vst [vmem:[%s182 + $0x28] sm:$0xff] %v612
      %629 = vst [vmem:[%s182 + $0x30] sm:$0xff] %v617
      %630 = vst [vmem:[%s182 + $0x38] sm:$0xff] %v620
      %v631 = vadd.f32 %v593, %v596
      %v632 = vadd.f32 %v631, %v601
      %v633 = vadd.f32 %v632, %v604
      %v634 = vadd.f32 %v633, %v609
      %v635 = vadd.f32 %v634, %v612
      %v636 = vadd.f32 %v635, %v617
      %v637 = vadd.f32 %v636, %v620
      %v638 = vrot.slane %v637, 4
      %v639 = vadd.f32 %v637, %v638
      %v640 = vrot.slane %v639, 2
      %v641 = vadd.f32 %v639, %v640
      %v642 = vrot.slane %v641, 1
      %v643 = vadd.f32 %v641, %v642
      %v644 = vmul.f32 %v593, %v593
      %v645 = vmul.f32 %v596, %v596
      %v646 = vmul.f32 %v601, %v601
      %v647 = vmul.f32 %v604, %v604
      %v648 = vmul.f32 %v609, %v609
      %v649 = vmul.f32 %v612, %v612
      %v650 = vmul.f32 %v617, %v617
      %v651 = vmul.f32 %v620, %v620
      %v652 = vadd.f32 %v644, %v645
      %v653 = vadd.f32 %v652, %v646
      %v654 = vadd.f32 %v653, %v647
      %v655 = vadd.f32 %v654, %v648
      %v656 = vadd.f32 %v655, %v649
      %v657 = vadd.f32 %v656, %v650
      %v658 = vadd.f32 %v657, %v651
      %v659 = vrot.slane %v658, 4
      %v660 = vadd.f32 %v658, %v659
      %v661 = vrot.slane %v660, 2
      %v662 = vadd.f32 %v660, %v661
      %v663 = vrot.slane %v662, 1
      %v664 = vadd.f32 %v662, %v663
      %v665 = vlaneseq
      %v666 = vshrl.u32 %v665, 7
      %vm667 = vcmp.eq.s32.totalorder %v666, 0
      %vm668 = vcmp.eq.s32.totalorder %v666, 1
      %v669 = vsel %vm668, %v664, 0.0
      %v670 = vsel %vm667, %v643, %v669
      %671 = vst [vmem:[%s187] sm:$0xff] %v670
      %s672 = smul.u32 8, %s15
      %p673 = scmp.lt.s32.totalorder %s672, 15
      %s674 = scalar_select %p673, %s672, 15
      %s675 = smul.addr %s674, 8
      %s676 = scalar_lea.vmem %s2, %s675
      %p677 = scmp.lt.s32.totalorder %s15, 1
      %s678 = scalar_select %p677, %s15, 1
      %s679 = smul.addr %s678, 8
      %s680 = scalar_lea.vmem %s3, %s679
      // Predicated region
      $region29: #{bottleneck_forward.4} parent=27 // pred_check
        %p681 = pneg %p80
      $region30: #{bottleneck_forward.4} parent=27 // pred_check_branch
        %683 = sbr.rel (%p681) target = $region32
      $region31: #{bottleneck_forward.4} parent=27 // pred_region
        %s684 = smul.u32 8, %s15
      $region32: #{bottleneck_forward.4} parent=27 // pred_fallthru
        _
      // Predicated region
      $region33: #{bottleneck_forward.4} parent=27 // pred_check
        %p685 = pneg %p106
      $region34: #{bottleneck_forward.4} parent=27 // pred_check_branch
        %687 = sbr.rel (%p685) target = $region36
      $region35: #{bottleneck_forward.4} parent=27 // pred_region
        _
      $region36: #{bottleneck_forward.4} parent=27 // pred_fallthru
        _
    $region28: #{bottleneck_forward.4} parent=5 // pred_fallthru
      _
    %p688 = scmp.le.s32.totalorder 2, %s10
    // Predicated region
    $region37: #{bottleneck_forward.4} parent=5 // pred_check
      %p689 = pneg %p688
    $region38: #{bottleneck_forward.4} parent=5 // pred_check_branch
      %691 = sbr.rel (%p689) target = $region40
    $region39: #{bottleneck_forward.4} parent=5 // pred_region
      %s692 = ssub.s32 %s10, 2
      // Predicated region
      $region41: #{bottleneck_forward.4} parent=39 // pred_check
        %p693 = pneg %p86
      $region42: #{bottleneck_forward.4} parent=39 // pred_check_branch
        %695 = sbr.rel (%p693) target = $region44
      $region43: #{bottleneck_forward.4} parent=39 // pred_region
        %s696 = smul.u32 8, %s16
        %p697 = scmp.lt.s32.totalorder %s696, 15
        %s698 = scalar_select %p697, %s696, 15
        %s699 = smul.addr %s698, 8
        %s700 = scalar_lea.vmem %s2, %s699
      $region44: #{bottleneck_forward.4} parent=39 // pred_fallthru
        _
      // Predicated region
      $region45: #{bottleneck_forward.4} parent=39 // pred_check
        %p701 = pneg %p112
      $region46: #{bottleneck_forward.4} parent=39 // pred_check_branch
        %703 = sbr.rel (%p701) target = $region48
      $region47: #{bottleneck_forward.4} parent=39 // pred_region
        %p704 = scmp.lt.s32.totalorder %s16, 1
        %s705 = scalar_select %p704, %s16, 1
        %s706 = smul.addr %s705, 8
        %s707 = scalar_lea.vmem %s3, %s706
      $region48: #{bottleneck_forward.4} parent=39 // pred_fallthru
        _
    $region40: #{bottleneck_forward.4} parent=5 // pred_fallthru
      _
  $region6: #{bottleneck_forward.4} parent=0 // loop_footer
    %s14 = sadd.s32 1, %s10
  $region7: #{bottleneck_forward.4} parent=0 // loop_footer_branch
    %9 = sbr.rel target = $region3
  $region8: #{bottleneck_forward.4} parent=0 // loop_exit
    _

// kernel: bottleneck_forward.6
$region0: #{bottleneck_forward.6}
  #allocation0 [shape = 'u32[]', space=smem, size = 0x4, offset = 0x4, fixed_abs, tag = 'smem constant byte address 0x4 - core index']
  #allocation1 [shape = 'u32[144,128]{1,0:T(1,128)}', space=vmem, size = 0x12000, scoped, tag = 'internal scratch']
  %s0 = inlined_call_operand.vmem [shape: f32[128,128], index: 0, kind: input, shape index: {}]
  %s1 = inlined_call_operand.vmem [shape: f32[1,128], index: 1, kind: input, shape index: {}]
  %s2 = inlined_call_operand.vmem [shape: f32[1,128], index: 2, kind: input, shape index: {}]
  %s3 = inlined_call_operand.vmem [shape: bf16[128,512], index: 3, kind: input, shape index: {}]
  %s4 = inlined_call_operand.vmem [shape: f32[128,512], index: 4, kind: output, shape index: {0}]
  %s5 = inlined_call_operand.vmem [shape: f32[2,8,512], index: 5, kind: output, shape index: {1}]
  %6 = xla_tuple %s4, %s5
  %s7 = sld [smem:[#allocation0]]
  $region57: #{bottleneck_forward.6} parent=0
    _
  %s9 = ssub.s32 1, %s7
  %s10 = scalar_select 0, %s9, %s7
  loop: start=0, step=1, limit=4
  $region2: #{bottleneck_forward.6} parent=0 // loop_pre_header
    _
  $region3: #{bottleneck_forward.6} parent=0 // loop_header
    %s12 = sphi 0, %s16
    %p13 = scmp.ge.s32.totalorder %s12, 4
    %s22 = sphi 0, %s24
    %s25 = sphi 0, %s22
    %s26 = sphi 0, %s25
    %s42 = sphi 0, %s26
    %s46 = sphi 0, %s46
    %s48 = sphi 0, %s46
    %s49 = sphi 0, %s48
    %s63 = sphi 0, %s49
    %s67 = sphi 0, %s67
    %s69 = sphi 0, %s67
    %s70 = sphi 0, %s69
    %s84 = sphi 0, %s70
    %s88 = sphi 0, %s88
    %s90 = sphi 0, %s88
    %s91 = sphi 0, %s90
    %s105 = sphi 0, %s91
    %s111 = sphi 0, %s113
    %s114 = sphi 0, %s111
    %s115 = sphi 0, %s114
    %s131 = sphi 0, %s115
    %s137 = sphi 0, %s139
    %s140 = sphi 0, %s137
    %s141 = sphi 0, %s140
    %s157 = sphi 0, %s141
  $region4: #{bottleneck_forward.6} parent=0 // loop_header_branch
    %15 = sbr.rel (%p13) target = $region8
  $region5: #{bottleneck_forward.6} parent=0 // loop_body
    %s17 = ssub.s32 %s12, 1
    %s18 = ssub.s32 %s12, 2
    %s19 = sadd.s32 %s12, 1
    %s20 = ssub.s32 %s12, %s19
    %p21 = scmp.eq.s32.totalorder %s20, 0
    %s23 = sadd.s32 %s22, 1
    %s24 = scalar_select %p21, %s22, %s23
    %p27 = pneg %p21
    %p28 = scmp.eq.s32.totalorder %s12, 1
    %p29 = por %p27, %p28
    %p30 = scmp.ne.s32.totalorder %s22, %s25
    %p31 = scmp.eq.s32.totalorder %s12, 0
    %p32 = por %p30, %p31
    %p33 = scmp.ne.s32.totalorder %s22, %s25
    %p34 = scmp.eq.s32.totalorder %s17, 1
    %p35 = por %p33, %p34
    %p36 = scmp.ne.s32.totalorder %s25, %s26
    %p37 = scmp.eq.s32.totalorder %s17, 0
    %p38 = por %p36, %p37
    %p39 = scmp.ne.s32.totalorder %s25, %s26
    %p40 = scmp.eq.s32.totalorder %s18, 1
    %p41 = por %p39, %p40
    %p43 = scmp.ne.s32.totalorder %s26, %s42
    %p44 = scmp.eq.s32.totalorder %s18, 0
    %p45 = por %p43, %p44
    %s47 = sadd.s32 %s46, 1
    %p50 = scmp.eq.s32.totalorder %s12, 1
    %p51 = scmp.ne.s32.totalorder %s46, %s48
    %p52 = scmp.eq.s32.totalorder %s12, 0
    %p53 = por %p51, %p52
    %p54 = scmp.ne.s32.totalorder %s46, %s48
    %p55 = scmp.eq.s32.totalorder %s17, 1
    %p56 = por %p54, %p55
    %p57 = scmp.ne.s32.totalorder %s48, %s49
    %p58 = scmp.eq.s32.totalorder %s17, 0
    %p59 = por %p57, %p58
    %p60 = scmp.ne.s32.totalorder %s48, %s49
    %p61 = scmp.eq.s32.totalorder %s18, 1
    %p62 = por %p60, %p61
    %p64 = scmp.ne.s32.totalorder %s49, %s63
    %p65 = scmp.eq.s32.totalorder %s18, 0
    %p66 = por %p64, %p65
    %s68 = sadd.s32 %s67, 1
    %p71 = scmp.eq.s32.totalorder %s12, 1
    %p72 = scmp.ne.s32.totalorder %s67, %s69
    %p73 = scmp.eq.s32.totalorder %s12, 0
    %p74 = por %p72, %p73
    %p75 = scmp.ne.s32.totalorder %s67, %s69
    %p76 = scmp.eq.s32.totalorder %s17, 1
    %p77 = por %p75, %p76
    %p78 = scmp.ne.s32.totalorder %s69, %s70
    %p79 = scmp.eq.s32.totalorder %s17, 0
    %p80 = por %p78, %p79
    %p81 = scmp.ne.s32.totalorder %s69, %s70
    %p82 = scmp.eq.s32.totalorder %s18, 1
    %p83 = por %p81, %p82
    %p85 = scmp.ne.s32.totalorder %s70, %s84
    %p86 = scmp.eq.s32.totalorder %s18, 0
    %p87 = por %p85, %p86
    %s89 = sadd.s32 %s88, 1
    %p92 = scmp.eq.s32.totalorder %s12, 1
    %p93 = scmp.ne.s32.totalorder %s88, %s90
    %p94 = scmp.eq.s32.totalorder %s12, 0
    %p95 = por %p93, %p94
    %p96 = scmp.ne.s32.totalorder %s88, %s90
    %p97 = scmp.eq.s32.totalorder %s17, 1
    %p98 = por %p96, %p97
    %p99 = scmp.ne.s32.totalorder %s90, %s91
    %p100 = scmp.eq.s32.totalorder %s17, 0
    %p101 = por %p99, %p100
    %p102 = scmp.ne.s32.totalorder %s90, %s91
    %p103 = scmp.eq.s32.totalorder %s18, 1
    %p104 = por %p102, %p103
    %p106 = scmp.ne.s32.totalorder %s91, %s105
    %p107 = scmp.eq.s32.totalorder %s18, 0
    %p108 = por %p106, %p107
    %s109 = ssub.s32 %s12, %s19
    %p110 = scmp.eq.s32.totalorder %s109, 0
    %s112 = sadd.s32 %s111, 1
    %s113 = scalar_select %p110, %s111, %s112
    %p116 = pneg %p110
    %p117 = scmp.eq.s32.totalorder %s12, 1
    %p118 = por %p116, %p117
    %p119 = scmp.ne.s32.totalorder %s111, %s114
    %p120 = scmp.eq.s32.totalorder %s12, 0
    %p121 = por %p119, %p120
    %p122 = scmp.ne.s32.totalorder %s111, %s114
    %p123 = scmp.eq.s32.totalorder %s17, 1
    %p124 = por %p122, %p123
    %p125 = scmp.ne.s32.totalorder %s114, %s115
    %p126 = scmp.eq.s32.totalorder %s17, 0
    %p127 = por %p125, %p126
    %p128 = scmp.ne.s32.totalorder %s114, %s115
    %p129 = scmp.eq.s32.totalorder %s18, 1
    %p130 = por %p128, %p129
    %p132 = scmp.ne.s32.totalorder %s115, %s131
    %p133 = scmp.eq.s32.totalorder %s18, 0
    %p134 = por %p132, %p133
    %s135 = ssub.s32 %s12, %s19
    %p136 = scmp.eq.s32.totalorder %s135, 0
    %s138 = sadd.s32 %s137, 1
    %s139 = scalar_select %p136, %s137, %s138
    %p142 = pneg %p136
    %p143 = scmp.eq.s32.totalorder %s12, 1
    %p144 = por %p142, %p143
    %p145 = scmp.ne.s32.totalorder %s137, %s140
    %p146 = scmp.eq.s32.totalorder %s12, 0
    %p147 = por %p145, %p146
    %p148 = scmp.ne.s32.totalorder %s137, %s140
    %p149 = scmp.eq.s32.totalorder %s17, 1
    %p150 = por %p148, %p149
    %p151 = scmp.ne.s32.totalorder %s140, %s141
    %p152 = scmp.eq.s32.totalorder %s17, 0
    %p153 = por %p151, %p152
    %p154 = scmp.ne.s32.totalorder %s140, %s141
    %p155 = scmp.eq.s32.totalorder %s18, 1
    %p156 = por %p154, %p155
    %p158 = scmp.ne.s32.totalorder %s141, %s157
    %p159 = scmp.eq.s32.totalorder %s18, 0
    %p160 = por %p158, %p159
    %p161 = scmp.le.s32.totalorder 1, %s12
    %p162 = scmp.lt.s32.totalorder %s12, 3
    %p163 = pnand %p161, %p162
    %p164 = pneg %p163
    // Predicated region
    $region9: #{bottleneck_forward.6} parent=5 // pred_check
      _
    $region10: #{bottleneck_forward.6} parent=5 // pred_check_branch
      %166 = sbr.rel (%p163) target = $region12
    $region11: #{bottleneck_forward.6} parent=5 // pred_region
      %s167 = ssub.s32 %s12, 1
      // Predicated region
      $region13: #{bottleneck_forward.6} parent=11 // pred_check
        %p168 = pneg %p59
      $region14: #{bottleneck_forward.6} parent=11 // pred_check_branch
        %170 = sbr.rel (%p168) target = $region16
      $region15: #{bottleneck_forward.6} parent=11 // pred_region
        _
      $region16: #{bottleneck_forward.6} parent=11 // pred_fallthru
        _
      // Predicated region
      $region17: #{bottleneck_forward.6} parent=11 // pred_check
        %p171 = pneg %p80
      $region18: #{bottleneck_forward.6} parent=11 // pred_check_branch
        %173 = sbr.rel (%p171) target = $region20
      $region19: #{bottleneck_forward.6} parent=11 // pred_region
        _
      $region20: #{bottleneck_forward.6} parent=11 // pred_fallthru
        _
      // Predicated region
      $region21: #{bottleneck_forward.6} parent=11 // pred_check
        %p174 = pneg %p101
      $region22: #{bottleneck_forward.6} parent=11 // pred_check_branch
        %176 = sbr.rel (%p174) target = $region24
      $region23: #{bottleneck_forward.6} parent=11 // pred_region
        _
      $region24: #{bottleneck_forward.6} parent=11 // pred_fallthru
        _
    $region12: #{bottleneck_forward.6} parent=5 // pred_fallthru
      _
    %p177 = scmp.lt.s32.totalorder %s12, 2
    // Predicated region
    $region25: #{bottleneck_forward.6} parent=5 // pred_check
      %p178 = pneg %p177
    $region26: #{bottleneck_forward.6} parent=5 // pred_check_branch
      %180 = sbr.rel (%p178) target = $region28
    $region27: #{bottleneck_forward.6} parent=5 // pred_region
      // Predicated region
      $region29: #{bottleneck_forward.6} parent=27 // pred_check
        %p181 = pneg %p32
      $region30: #{bottleneck_forward.6} parent=27 // pred_check_branch
        %183 = sbr.rel (%p181) target = $region32
      $region31: #{bottleneck_forward.6} parent=27 // pred_region
        %s184 = smul.u32 8, %s12
        %p185 = scmp.lt.s32.totalorder %s184, 15
        %s186 = scalar_select %p185, %s184, 15
        %s187 = smul.addr %s186, 8
        %s188 = scalar_lea.vmem %s0, %s187
        %s189 = smul.u32 8, %s12
      $region32: #{bottleneck_forward.6} parent=27 // pred_fallthru
        _
    $region28: #{bottleneck_forward.6} parent=5 // pred_fallthru
      _
    %p190 = scmp.le.s32.totalorder 1, %s12
    %p191 = scmp.lt.s32.totalorder %s12, 3
    %p192 = pnand %p190, %p191
    %p193 = pneg %p192
    // Predicated region
    $region33: #{bottleneck_forward.6} parent=5 // pred_check
      _
    $region34: #{bottleneck_forward.6} parent=5 // pred_check_branch
      %195 = sbr.rel (%p192) target = $region36
    $region35: #{bottleneck_forward.6} parent=5 // pred_region
      %s196 = ssub.s32 %s12, 1
      %s197 = smul.u32 8, %s17
      %p198 = scmp.lt.s32.totalorder %s197, 15
      %s199 = scalar_select %p198, %s197, 15
      %s200 = smul.addr %s199, 8
      %s201 = scalar_lea.vmem %s0, %s200
      %p202 = pneg %p38
      %p203 = pneg %p35
      %p204 = pneg %p59
      %p205 = pneg %p56
      %p206 = pneg %p80
      %p207 = pneg %p77
      %p208 = pneg %p101
      %p209 = pneg %p98
      %p210 = pneg %p127
      %p211 = pneg %p124
      %s212 = smul.u32 8, %s17
      %p213 = scmp.lt.s32.totalorder %s212, 15
      %s214 = scalar_select %p213, %s212, 15
      %s215 = smul.addr %s214, 4
      %s216 = smul.addr %s215, 8
      %s217 = scalar_lea.vmem %s4, %s216
      %p218 = pneg %p153
      %p219 = pneg %p150
      %p220 = scmp.lt.s32.totalorder %s17, 1
      %s221 = scalar_select %p220, %s17, 1
      %s222 = smul.addr %s221, 4
      %s223 = smul.addr %s222, 8
      %s224 = scalar_lea.vmem %s5, %s223
      %s225 = smul.u32 8, %s17
      %p226 = scmp.lt.s32.totalorder %s225, 15
      %s227 = scalar_select %p226, %s225, 15
      %s228 = smul.addr %s227, 8
      %s229 = scalar_lea.vmem %s0, %s228
      %s230 = smul.u32 8, %s17
      %s231 = smul.u32 8, %s17
      %p232 = scmp.lt.s32.totalorder %s231, 15
      %s233 = scalar_select %p232, %s231, 15
      %s234 = smul.addr %s233, 4
      %s235 = smul.addr %s234, 8
      %s236 = scalar_lea.vmem %s4, %s235
      %s237 = smul.u32 8, %s17
      %p238 = scmp.lt.s32.totalorder %s17, 1
      %s239 = scalar_select %p238, %s17, 1
      %s240 = smul.addr %s239, 4
      %s241 = smul.addr %s240, 8
      %s242 = scalar_lea.vmem %s5, %s241
      %v244 = vld [vmem:[%s229] sm:$0xff]
      %v245 = vld [vmem:[%s229 + $0x8] sm:$0xff]
      %v246 = vld [vmem:[%s229 + $0x10] sm:$0xff]
      %v247 = vld [vmem:[%s229 + $0x18] sm:$0xff]
      %v248 = vld [vmem:[%s229 + $0x20] sm:$0xff]
      %v249 = vld [vmem:[%s229 + $0x28] sm:$0xff]
      %v250 = vld [vmem:[%s229 + $0x30] sm:$0xff]
      %v251 = vld [vmem:[%s229 + $0x38] sm:$0xff]
      %v252 = vld [vmem:[%s1] sm:$0x1]
      %v254 = vlaneseq
      %v255 = vshrl.u32 %v254, 7
      %v256 = vsub.s32 0, %v255
      %v257 = vrot.slane %v252, %v256
      %v259 = vmul.f32 %v244, %v257
      %v260 = vmul.f32 %v245, %v257
      %v261 = vmul.f32 %v246, %v257
      %v262 = vmul.f32 %v247, %v257
      %v263 = vmul.f32 %v248, %v257
      %v264 = vmul.f32 %v249, %v257
      %v265 = vmul.f32 %v250, %v257
      %v266 = vmul.f32 %v251, %v257
      %v267 = vld [vmem:[%s2] sm:$0x1]
      %v269 = vlaneseq
      %v270 = vshrl.u32 %v269, 7
      %v271 = vsub.s32 0, %v270
      %v272 = vrot.slane %v267, %v271
      %v274 = vadd.f32 %v259, %v272
      %v275 = vadd.f32 %v260, %v272
      %v276 = vadd.f32 %v261, %v272
      %v277 = vadd.f32 %v262, %v272
      %v278 = vadd.f32 %v263, %v272
      %v279 = vadd.f32 %v264, %v272
      %v280 = vadd.f32 %v265, %v272
      %v281 = vadd.f32 %v266, %v272
      %v282 = vmax.f32 %v274, 0.0
      %v283 = vmax.f32 %v275, 0.0
      %v284 = vmax.f32 %v276, 0.0
      %v285 = vmax.f32 %v277, 0.0
      %v286 = vmax.f32 %v278, 0.0
      %v287 = vmax.f32 %v279, 0.0
      %v288 = vmax.f32 %v280, 0.0
      %v289 = vmax.f32 %v281, 0.0
      %v290 = vpack.c.bf16 %v283, %v282
      %v291 = vpack.c.bf16 %v285, %v284
      %v292 = vpack.c.bf16 %v287, %v286
      %v293 = vpack.c.bf16 %v289, %v288
      %v294 = vld [vmem:[%s3] sm:$0xff]
      %v295 = vld [vmem:[%s3 + $0x8] sm:$0xff]
      %v296 = vld [vmem:[%s3 + $0x10] sm:$0xff]
      %v297 = vld [vmem:[%s3 + $0x18] sm:$0xff]
      %v298 = vld [vmem:[%s3 + $0x20] sm:$0xff]
      %v299 = vld [vmem:[%s3 + $0x28] sm:$0xff]
      %v300 = vld [vmem:[%s3 + $0x30] sm:$0xff]
      %v301 = vld [vmem:[%s3 + $0x38] sm:$0xff]
      %v302 = vld [vmem:[%s3 + $0x40] sm:$0xff]
      %v303 = vld [vmem:[%s3 + $0x48] sm:$0xff]
      %v304 = vld [vmem:[%s3 + $0x50] sm:$0xff]
      %v305 = vld [vmem:[%s3 + $0x58] sm:$0xff]
      %v306 = vld [vmem:[%s3 + $0x60] sm:$0xff]
      %v307 = vld [vmem:[%s3 + $0x68] sm:$0xff]
      %v308 = vld [vmem:[%s3 + $0x70] sm:$0xff]
      %v309 = vld [vmem:[%s3 + $0x78] sm:$0xff]
      %v310 = vld [vmem:[%s3 + $0x80] sm:$0xff]
      %v311 = vld [vmem:[%s3 + $0x88] sm:$0xff]
      %v312 = vld [vmem:[%s3 + $0x90] sm:$0xff]
      %v313 = vld [vmem:[%s3 + $0x98] sm:$0xff]
      %v314 = vld [vmem:[%s3 + $0xa0] sm:$0xff]
      %v315 = vld [vmem:[%s3 + $0xa8] sm:$0xff]
      %v316 = vld [vmem:[%s3 + $0xb0] sm:$0xff]
      %v317 = vld [vmem:[%s3 + $0xb8] sm:$0xff]
      %v318 = vld [vmem:[%s3 + $0xc0] sm:$0xff]
      %v319 = vld [vmem:[%s3 + $0xc8] sm:$0xff]
      %v320 = vld [vmem:[%s3 + $0xd0] sm:$0xff]
      %v321 = vld [vmem:[%s3 + $0xd8] sm:$0xff]
      %v322 = vld [vmem:[%s3 + $0xe0] sm:$0xff]
      %v323 = vld [vmem:[%s3 + $0xe8] sm:$0xff]
      %v324 = vld [vmem:[%s3 + $0xf0] sm:$0xff]
      %v325 = vld [vmem:[%s3 + $0xf8] sm:$0xff]
      %v358 = vunpack.c.l.b16 %v294
      %v359 = vunpack.c.h.b16 %v294
      %v360 = vunpack.c.l.b16 %v295
      %v361 = vunpack.c.h.b16 %v295
      %v362 = vunpack.c.l.b16 %v296
      %v363 = vunpack.c.h.b16 %v296
      %v364 = vunpack.c.l.b16 %v297
      %v365 = vunpack.c.h.b16 %v297
      %v366 = vunpack.c.l.b16 %v298
      %v367 = vunpack.c.h.b16 %v298
      %v368 = vunpack.c.l.b16 %v299
      %v369 = vunpack.c.h.b16 %v299
      %v370 = vunpack.c.l.b16 %v300
      %v371 = vunpack.c.h.b16 %v300
      %v372 = vunpack.c.l.b16 %v301
      %v373 = vunpack.c.h.b16 %v301
      %v374 = vunpack.c.l.b16 %v302
      %v375 = vunpack.c.h.b16 %v302
      %v376 = vunpack.c.l.b16 %v303
      %v377 = vunpack.c.h.b16 %v303
      %v378 = vunpack.c.l.b16 %v304
      %v379 = vunpack.c.h.b16 %v304
      %v380 = vunpack.c.l.b16 %v305
      %v381 = vunpack.c.h.b16 %v305
      %v382 = vunpack.c.l.b16 %v306
      %v383 = vunpack.c.h.b16 %v306
      %v384 = vunpack.c.l.b16 %v307
      %v385 = vunpack.c.h.b16 %v307
      %v386 = vunpack.c.l.b16 %v308
      %v387 = vunpack.c.h.b16 %v308
      %v388 = vunpack.c.l.b16 %v309
      %v389 = vunpack.c.h.b16 %v309
      %v390 = vunpack.c.l.b16 %v310
      %v391 = vunpack.c.h.b16 %v310
      %v392 = vunpack.c.l.b16 %v311
      %v393 = vunpack.c.h.b16 %v311
      %v394 = vunpack.c.l.b16 %v312
      %v395 = vunpack.c.h.b16 %v312
      %v396 = vunpack.c.l.b16 %v313
      %v397 = vunpack.c.h.b16 %v313
      %v398 = vunpack.c.l.b16 %v314
      %v399 = vunpack.c.h.b16 %v314
      %v400 = vunpack.c.l.b16 %v315
      %v401 = vunpack.c.h.b16 %v315
      %v402 = vunpack.c.l.b16 %v316
      %v403 = vunpack.c.h.b16 %v316
      %v404 = vunpack.c.l.b16 %v317
      %v405 = vunpack.c.h.b16 %v317
      %v406 = vunpack.c.l.b16 %v318
      %v407 = vunpack.c.h.b16 %v318
      %v408 = vunpack.c.l.b16 %v319
      %v409 = vunpack.c.h.b16 %v319
      %v410 = vunpack.c.l.b16 %v320
      %v411 = vunpack.c.h.b16 %v320
      %v412 = vunpack.c.l.b16 %v321
      %v413 = vunpack.c.h.b16 %v321
      %v414 = vunpack.c.l.b16 %v322
      %v415 = vunpack.c.h.b16 %v322
      %v416 = vunpack.c.l.b16 %v323
      %v417 = vunpack.c.h.b16 %v323
      %v418 = vunpack.c.l.b16 %v324
      %v419 = vunpack.c.h.b16 %v324
      %v420 = vunpack.c.l.b16 %v325
      %v421 = vunpack.c.h.b16 %v325
      %v422 = vpack.c.b16 %v362, %v358
      %v423 = vpack.c.b16 %v363, %v359
      %v424 = vpack.c.b16 %v364, %v360
      %v425 = vpack.c.b16 %v365, %v361
      %v426 = vpack.c.b16 %v370, %v366
      %v427 = vpack.c.b16 %v371, %v367
      %v428 = vpack.c.b16 %v372, %v368
      %v429 = vpack.c.b16 %v373, %v369
      %v430 = vpack.c.b16 %v378, %v374
      %v431 = vpack.c.b16 %v379, %v375
      %v432 = vpack.c.b16 %v380, %v376
      %v433 = vpack.c.b16 %v381, %v377
      %v434 = vpack.c.b16 %v386, %v382
      %v435 = vpack.c.b16 %v387, %v383
      %v436 = vpack.c.b16 %v388, %v384
      %v437 = vpack.c.b16 %v389, %v385
      %v438 = vpack.c.b16 %v394, %v390
      %v439 = vpack.c.b16 %v395, %v391
      %v440 = vpack.c.b16 %v396, %v392
      %v441 = vpack.c.b16 %v397, %v393
      %v442 = vpack.c.b16 %v402, %v398
      %v443 = vpack.c.b16 %v403, %v399
      %v444 = vpack.c.b16 %v404, %v400
      %v445 = vpack.c.b16 %v405, %v401
      %v446 = vpack.c.b16 %v410, %v406
      %v447 = vpack.c.b16 %v411, %v407
      %v448 = vpack.c.b16 %v412, %v408
      %v449 = vpack.c.b16 %v413, %v409
      %v450 = vpack.c.b16 %v418, %v414
      %v451 = vpack.c.b16 %v419, %v415
      %v452 = vpack.c.b16 %v420, %v416
      %v453 = vpack.c.b16 %v421, %v417
      %486 = vmatprep.subr.bf16.mxu0 %v451
      %487 = vmatpush1.bf16.msra.mxu0 %v450
      %488 = vmatprep.subr.bf16.mxu0 %v447
      %489 = vmatpush1.bf16.msra.mxu0 %v446
      %490 = vmatprep.subr.bf16.mxu0 %v443
      %491 = vmatpush1.bf16.msra.mxu0 %v442
      %492 = vmatprep.subr.bf16.mxu0 %v439
      %493 = vmatpush1.bf16.msra.mxu0 %v438
      %494 = vmatprep.subr.bf16.mxu0 %v435
      %495 = vmatpush1.bf16.msra.mxu0 %v434
      %496 = vmatprep.subr.bf16.mxu0 %v431
      %497 = vmatpush1.bf16.msra.mxu0 %v430
      %498 = vmatprep.subr.bf16.mxu0 %v427
      %499 = vmatpush1.bf16.msra.mxu0 %v426
      %500 = vmatprep.subr.bf16.mxu0 %v423
      %501 = vmatpush1.bf16.msra.mxu0 %v422
      %502 = vmatprep.subr.bf16.mxu0 0
      %503 = vmatpush2.bf16.msra.mxu0 0
      %504 = vmatprep.subr.bf16.mxu0 0
      %505 = vmatpush2.bf16.msra.mxu0 0
      %506 = vmatprep.subr.bf16.mxu0 0
      %507 = vmatpush2.bf16.msra.mxu0 0
      %508 = vmatprep.subr.bf16.mxu0 0
      %509 = vmatpush2.bf16.msra.mxu0 0
      %510 = vmatprep.subr.bf16.mxu0 0
      %511 = vmatpush2.bf16.msra.mxu0 0
      %512 = vmatprep.subr.bf16.mxu0 0
      %513 = vmatpush2.bf16.msra.mxu0 0
      %514 = vmatprep.subr.bf16.mxu0 0
      %515 = vmatpush2.bf16.msra.mxu0 0
      %516 = vmatprep.subr.bf16.mxu0 0
      %517 = vmatpush2.bf16.msra.mxu0 0
      %518 = vmatprep.mubr.bf16.mxu0 0
      %519 = vmatmul.mubr.bf16.gmra.mxu0 %v290
      %v520 = vpop.f32.mrf.mxu0
      %v521 = vadd.f32 0.0, %v520
      %v522 = vpop.f32.mrf.mxu0
      %v523 = vadd.f32 0.0, %v522
      %v524 = vpop.f32.mrf.mxu0
      %v525 = vadd.f32 0.0, %v524
      %v526 = vpop.f32.mrf.mxu0
      %v527 = vadd.f32 0.0, %v526
      %528 = vmatprep.mubr.bf16.mxu0 0
      %529 = vmatmul.mubr.bf16.gmra.mxu0 %v291
      %v530 = vpop.f32.mrf.mxu0
      %v531 = vadd.f32 0.0, %v530
      %v532 = vpop.f32.mrf.mxu0
      %v533 = vadd.f32 0.0, %v532
      %v534 = vpop.f32.mrf.mxu0
      %v535 = vadd.f32 0.0, %v534
      %v536 = vpop.f32.mrf.mxu0
      %v537 = vadd.f32 0.0, %v536
      %538 = vmatprep.mubr.bf16.mxu0 0
      %539 = vmatmul.mubr.bf16.gmra.mxu0 %v292
      %v540 = vpop.f32.mrf.mxu0
      %v541 = vadd.f32 0.0, %v540
      %v542 = vpop.f32.mrf.mxu0
      %v543 = vadd.f32 0.0, %v542
      %v544 = vpop.f32.mrf.mxu0
      %v545 = vadd.f32 0.0, %v544
      %v546 = vpop.f32.mrf.mxu0
      %v547 = vadd.f32 0.0, %v546
      %548 = vmatprep.mubr.bf16.mxu0 0
      %549 = vmatmul.mubr.bf16.gmra.mxu0 %v293
      %v550 = vpop.f32.mrf.mxu0
      %v551 = vadd.f32 0.0, %v550
      %v552 = vpop.f32.mrf.mxu0
      %v553 = vadd.f32 0.0, %v552
      %v554 = vpop.f32.mrf.mxu0
      %v555 = vadd.f32 0.0, %v554
      %v556 = vpop.f32.mrf.mxu0
      %v557 = vadd.f32 0.0, %v556
      %558 = vdwg.mxu0
      %559 = vmatprep.subr.bf16.mxu0 %v453
      %560 = vmatpush1.bf16.msra.mxu0 %v452
      %561 = vmatprep.subr.bf16.mxu0 %v449
      %562 = vmatpush1.bf16.msra.mxu0 %v448
      %563 = vmatprep.subr.bf16.mxu0 %v445
      %564 = vmatpush1.bf16.msra.mxu0 %v444
      %565 = vmatprep.subr.bf16.mxu0 %v441
      %566 = vmatpush1.bf16.msra.mxu0 %v440
      %567 = vmatprep.subr.bf16.mxu0 %v437
      %568 = vmatpush1.bf16.msra.mxu0 %v436
      %569 = vmatprep.subr.bf16.mxu0 %v433
      %570 = vmatpush1.bf16.msra.mxu0 %v432
      %571 = vmatprep.subr.bf16.mxu0 %v429
      %572 = vmatpush1.bf16.msra.mxu0 %v428
      %573 = vmatprep.subr.bf16.mxu0 %v425
      %574 = vmatpush1.bf16.msra.mxu0 %v424
      %575 = vmatprep.subr.bf16.mxu0 0
      %576 = vmatpush2.bf16.msra.mxu0 0
      %577 = vmatprep.subr.bf16.mxu0 0
      %578 = vmatpush2.bf16.msra.mxu0 0
      %579 = vmatprep.subr.bf16.mxu0 0
      %580 = vmatpush2.bf16.msra.mxu0 0
      %581 = vmatprep.subr.bf16.mxu0 0
      %582 = vmatpush2.bf16.msra.mxu0 0
      %583 = vmatprep.subr.bf16.mxu0 0
      %584 = vmatpush2.bf16.msra.mxu0 0
      %585 = vmatprep.subr.bf16.mxu0 0
      %586 = vmatpush2.bf16.msra.mxu0 0
      %587 = vmatprep.subr.bf16.mxu0 0
      %588 = vmatpush2.bf16.msra.mxu0 0
      %589 = vmatprep.subr.bf16.mxu0 0
      %590 = vmatpush2.bf16.msra.mxu0 0
      %591 = vmatprep.mubr.bf16.mxu0 0
      %592 = vmatmul.mubr.bf16.gmra.mxu0 %v290
      %v593 = vpop.f32.mrf.mxu0
      %v594 = vadd.f32 0.0, %v593
      %v595 = vpop.f32.mrf.mxu0
      %v596 = vadd.f32 0.0, %v595
      %v597 = vpop.f32.mrf.mxu0
      %v598 = vadd.f32 0.0, %v597
      %v599 = vpop.f32.mrf.mxu0
      %v600 = vadd.f32 0.0, %v599
      %601 = vmatprep.mubr.bf16.mxu0 0
      %602 = vmatmul.mubr.bf16.gmra.mxu0 %v291
      %v603 = vpop.f32.mrf.mxu0
      %v604 = vadd.f32 0.0, %v603
      %v605 = vpop.f32.mrf.mxu0
      %v606 = vadd.f32 0.0, %v605
      %v607 = vpop.f32.mrf.mxu0
      %v608 = vadd.f32 0.0, %v607
      %v609 = vpop.f32.mrf.mxu0
      %v610 = vadd.f32 0.0, %v609
      %611 = vmatprep.mubr.bf16.mxu0 0
      %612 = vmatmul.mubr.bf16.gmra.mxu0 %v292
      %v613 = vpop.f32.mrf.mxu0
      %v614 = vadd.f32 0.0, %v613
      %v615 = vpop.f32.mrf.mxu0
      %v616 = vadd.f32 0.0, %v615
      %v617 = vpop.f32.mrf.mxu0
      %v618 = vadd.f32 0.0, %v617
      %v619 = vpop.f32.mrf.mxu0
      %v620 = vadd.f32 0.0, %v619
      %621 = vmatprep.mubr.bf16.mxu0 0
      %622 = vmatmul.mubr.bf16.gmra.mxu0 %v293
      %v623 = vpop.f32.mrf.mxu0
      %v624 = vadd.f32 0.0, %v623
      %v625 = vpop.f32.mrf.mxu0
      %v626 = vadd.f32 0.0, %v625
      %v627 = vpop.f32.mrf.mxu0
      %v628 = vadd.f32 0.0, %v627
      %v629 = vpop.f32.mrf.mxu0
      %v630 = vadd.f32 0.0, %v629
      %631 = vdwg.mxu0
      %632 = vst [vmem:[%s236] sm:$0xff] %v521
      %633 = vst [vmem:[%s236 + $0x8] sm:$0xff] %v523
      %634 = vst [vmem:[%s236 + $0x10] sm:$0xff] %v594
      %635 = vst [vmem:[%s236 + $0x18] sm:$0xff] %v596
      %636 = vst [vmem:[%s236 + $0x20] sm:$0xff] %v525
      %637 = vst [vmem:[%s236 + $0x28] sm:$0xff] %v527
      %638 = vst [vmem:[%s236 + $0x30] sm:$0xff] %v598
      %639 = vst [vmem:[%s236 + $0x38] sm:$0xff] %v600
      %640 = vst [vmem:[%s236 + $0x40] sm:$0xff] %v531
      %641 = vst [vmem:[%s236 + $0x48] sm:$0xff] %v533
      %642 = vst [vmem:[%s236 + $0x50] sm:$0xff] %v604
      %643 = vst [vmem:[%s236 + $0x58] sm:$0xff] %v606
      %644 = vst [vmem:[%s236 + $0x60] sm:$0xff] %v535
      %645 = vst [vmem:[%s236 + $0x68] sm:$0xff] %v537
      %646 = vst [vmem:[%s236 + $0x70] sm:$0xff] %v608
      %647 = vst [vmem:[%s236 + $0x78] sm:$0xff] %v610
      %648 = vst [vmem:[%s236 + $0x80] sm:$0xff] %v541
      %649 = vst [vmem:[%s236 + $0x88] sm:$0xff] %v543
      %650 = vst [vmem:[%s236 + $0x90] sm:$0xff] %v614
      %651 = vst [vmem:[%s236 + $0x98] sm:$0xff] %v616
      %652 = vst [vmem:[%s236 + $0xa0] sm:$0xff] %v545
      %653 = vst [vmem:[%s236 + $0xa8] sm:$0xff] %v547
      %654 = vst [vmem:[%s236 + $0xb0] sm:$0xff] %v618
      %655 = vst [vmem:[%s236 + $0xb8] sm:$0xff] %v620
      %656 = vst [vmem:[%s236 + $0xc0] sm:$0xff] %v551
      %657 = vst [vmem:[%s236 + $0xc8] sm:$0xff] %v553
      %658 = vst [vmem:[%s236 + $0xd0] sm:$0xff] %v624
      %659 = vst [vmem:[%s236 + $0xd8] sm:$0xff] %v626
      %660 = vst [vmem:[%s236 + $0xe0] sm:$0xff] %v555
      %661 = vst [vmem:[%s236 + $0xe8] sm:$0xff] %v557
      %662 = vst [vmem:[%s236 + $0xf0] sm:$0xff] %v628
      %663 = vst [vmem:[%s236 + $0xf8] sm:$0xff] %v630
      %v664 = vadd.f32 %v521, %v525
      %v665 = vadd.f32 %v664, %v531
      %v666 = vadd.f32 %v665, %v535
      %v667 = vadd.f32 %v666, %v541
      %v668 = vadd.f32 %v667, %v545
      %v669 = vadd.f32 %v668, %v551
      %v670 = vadd.f32 %v669, %v555
      %v671 = vrot.slane %v670, 4
      %v672 = vadd.f32 %v670, %v671
      %v673 = vrot.slane %v672, 2
      %v674 = vadd.f32 %v672, %v673
      %v675 = vrot.slane %v674, 1
      %v676 = vadd.f32 %v674, %v675
      %v677 = vadd.f32 %v523, %v527
      %v678 = vadd.f32 %v677, %v533
      %v679 = vadd.f32 %v678, %v537
      %v680 = vadd.f32 %v679, %v543
      %v681 = vadd.f32 %v680, %v547
      %v682 = vadd.f32 %v681, %v553
      %v683 = vadd.f32 %v682, %v557
      %v684 = vrot.slane %v683, 4
      %v685 = vadd.f32 %v683, %v684
      %v686 = vrot.slane %v685, 2
      %v687 = vadd.f32 %v685, %v686
      %v688 = vrot.slane %v687, 1
      %v689 = vadd.f32 %v687, %v688
      %v690 = vadd.f32 %v594, %v598
      %v691 = vadd.f32 %v690, %v604
      %v692 = vadd.f32 %v691, %v608
      %v693 = vadd.f32 %v692, %v614
      %v694 = vadd.f32 %v693, %v618
      %v695 = vadd.f32 %v694, %v624
      %v696 = vadd.f32 %v695, %v628
      %v697 = vrot.slane %v696, 4
      %v698 = vadd.f32 %v696, %v697
      %v699 = vrot.slane %v698, 2
      %v700 = vadd.f32 %v698, %v699
      %v701 = vrot.slane %v700, 1
      %v702 = vadd.f32 %v700, %v701
      %v703 = vadd.f32 %v596, %v600
      %v704 = vadd.f32 %v703, %v606
      %v705 = vadd.f32 %v704, %v610
      %v706 = vadd.f32 %v705, %v616
      %v707 = vadd.f32 %v706, %v620
      %v708 = vadd.f32 %v707, %v626
      %v709 = vadd.f32 %v708, %v630
      %v710 = vrot.slane %v709, 4
      %v711 = vadd.f32 %v709, %v710
      %v712 = vrot.slane %v711, 2
      %v713 = vadd.f32 %v711, %v712
      %v714 = vrot.slane %v713, 1
      %v715 = vadd.f32 %v713, %v714
      %v716 = vmul.f32 %v521, %v521
      %v717 = vmul.f32 %v523, %v523
      %v718 = vmul.f32 %v594, %v594
      %v719 = vmul.f32 %v596, %v596
      %v720 = vmul.f32 %v525, %v525
      %v721 = vmul.f32 %v527, %v527
      %v722 = vmul.f32 %v598, %v598
      %v723 = vmul.f32 %v600, %v600
      %v724 = vmul.f32 %v531, %v531
      %v725 = vmul.f32 %v533, %v533
      %v726 = vmul.f32 %v604, %v604
      %v727 = vmul.f32 %v606, %v606
      %v728 = vmul.f32 %v535, %v535
      %v729 = vmul.f32 %v537, %v537
      %v730 = vmul.f32 %v608, %v608
      %v731 = vmul.f32 %v610, %v610
      %v732 = vmul.f32 %v541, %v541
      %v733 = vmul.f32 %v543, %v543
      %v734 = vmul.f32 %v614, %v614
      %v735 = vmul.f32 %v616, %v616
      %v736 = vmul.f32 %v545, %v545
      %v737 = vmul.f32 %v547, %v547
      %v738 = vmul.f32 %v618, %v618
      %v739 = vmul.f32 %v620, %v620
      %v740 = vmul.f32 %v551, %v551
      %v741 = vmul.f32 %v553, %v553
      %v742 = vmul.f32 %v624, %v624
      %v743 = vmul.f32 %v626, %v626
      %v744 = vmul.f32 %v555, %v555
      %v745 = vmul.f32 %v557, %v557
      %v746 = vmul.f32 %v628, %v628
      %v747 = vmul.f32 %v630, %v630
      %v748 = vadd.f32 %v716, %v720
      %v749 = vadd.f32 %v748, %v724
      %v750 = vadd.f32 %v749, %v728
      %v751 = vadd.f32 %v750, %v732
      %v752 = vadd.f32 %v751, %v736
      %v753 = vadd.f32 %v752, %v740
      %v754 = vadd.f32 %v753, %v744
      %v755 = vrot.slane %v754, 4
      %v756 = vadd.f32 %v754, %v755
      %v757 = vrot.slane %v756, 2
      %v758 = vadd.f32 %v756, %v757
      %v759 = vrot.slane %v758, 1
      %v760 = vadd.f32 %v758, %v759
      %v761 = vadd.f32 %v717, %v721
      %v762 = vadd.f32 %v761, %v725
      %v763 = vadd.f32 %v762, %v729
      %v764 = vadd.f32 %v763, %v733
      %v765 = vadd.f32 %v764, %v737
      %v766 = vadd.f32 %v765, %v741
      %v767 = vadd.f32 %v766, %v745
      %v768 = vrot.slane %v767, 4
      %v769 = vadd.f32 %v767, %v768
      %v770 = vrot.slane %v769, 2
      %v771 = vadd.f32 %v769, %v770
      %v772 = vrot.slane %v771, 1
      %v773 = vadd.f32 %v771, %v772
      %v774 = vadd.f32 %v718, %v722
      %v775 = vadd.f32 %v774, %v726
      %v776 = vadd.f32 %v775, %v730
      %v777 = vadd.f32 %v776, %v734
      %v778 = vadd.f32 %v777, %v738
      %v779 = vadd.f32 %v778, %v742
      %v780 = vadd.f32 %v779, %v746
      %v781 = vrot.slane %v780, 4
      %v782 = vadd.f32 %v780, %v781
      %v783 = vrot.slane %v782, 2
      %v784 = vadd.f32 %v782, %v783
      %v785 = vrot.slane %v784, 1
      %v786 = vadd.f32 %v784, %v785
      %v787 = vadd.f32 %v719, %v723
      %v788 = vadd.f32 %v787, %v727
      %v789 = vadd.f32 %v788, %v731
      %v790 = vadd.f32 %v789, %v735
      %v791 = vadd.f32 %v790, %v739
      %v792 = vadd.f32 %v791, %v743
      %v793 = vadd.f32 %v792, %v747
      %v794 = vrot.slane %v793, 4
      %v795 = vadd.f32 %v793, %v794
      %v796 = vrot.slane %v795, 2
      %v797 = vadd.f32 %v795, %v796
      %v798 = vrot.slane %v797, 1
      %v799 = vadd.f32 %v797, %v798
      %v800 = vlaneseq
      %v801 = vshrl.u32 %v800, 7
      %vm802 = vcmp.eq.s32.totalorder %v801, 0
      %vm803 = vcmp.eq.s32.totalorder %v801, 1
      %v804 = vsel %vm803, %v760, 0.0
      %v805 = vsel %vm803, %v773, 0.0
      %v806 = vsel %vm803, %v786, 0.0
      %v807 = vsel %vm803, %v799, 0.0
      %v808 = vsel %vm802, %v676, %v804
      %v809 = vsel %vm802, %v689, %v805
      %v810 = vsel %vm802, %v702, %v806
      %v811 = vsel %vm802, %v715, %v807
      %812 = vst [vmem:[%s242] sm:$0xff] %v808
      %813 = vst [vmem:[%s242 + $0x8] sm:$0xff] %v809
      %814 = vst [vmem:[%s242 + $0x10] sm:$0xff] %v810
      %815 = vst [vmem:[%s242 + $0x18] sm:$0xff] %v811
      %s816 = smul.u32 8, %s17
      %p817 = scmp.lt.s32.totalorder %s816, 15
      %s818 = scalar_select %p817, %s816, 15
      %s819 = smul.addr %s818, 4
      %s820 = smul.addr %s819, 8
      %s821 = scalar_lea.vmem %s4, %s820
      %p822 = scmp.lt.s32.totalorder %s17, 1
      %s823 = scalar_select %p822, %s17, 1
      %s824 = smul.addr %s823, 4
      %s825 = smul.addr %s824, 8
      %s826 = scalar_lea.vmem %s5, %s825
      // Predicated region
      $region37: #{bottleneck_forward.6} parent=35 // pred_check
        %p827 = pneg %p124
      $region38: #{bottleneck_forward.6} parent=35 // pred_check_branch
        %829 = sbr.rel (%p827) target = $region40
      $region39: #{bottleneck_forward.6} parent=35 // pred_region
        %s830 = smul.u32 8, %s17
      $region40: #{bottleneck_forward.6} parent=35 // pred_fallthru
        _
      // Predicated region
      $region41: #{bottleneck_forward.6} parent=35 // pred_check
        %p831 = pneg %p150
      $region42: #{bottleneck_forward.6} parent=35 // pred_check_branch
        %833 = sbr.rel (%p831) target = $region44
      $region43: #{bottleneck_forward.6} parent=35 // pred_region
        _
      $region44: #{bottleneck_forward.6} parent=35 // pred_fallthru
        _
    $region36: #{bottleneck_forward.6} parent=5 // pred_fallthru
      _
    %p834 = scmp.le.s32.totalorder 2, %s12
    // Predicated region
    $region45: #{bottleneck_forward.6} parent=5 // pred_check
      %p835 = pneg %p834
    $region46: #{bottleneck_forward.6} parent=5 // pred_check_branch
      %837 = sbr.rel (%p835) target = $region48
    $region47: #{bottleneck_forward.6} parent=5 // pred_region
      %s838 = ssub.s32 %s12, 2
      // Predicated region
      $region49: #{bottleneck_forward.6} parent=47 // pred_check
        %p839 = pneg %p130
      $region50: #{bottleneck_forward.6} parent=47 // pred_check_branch
        %841 = sbr.rel (%p839) target = $region52
      $region51: #{bottleneck_forward.6} parent=47 // pred_region
        %s842 = smul.u32 8, %s18
        %p843 = scmp.lt.s32.totalorder %s842, 15
        %s844 = scalar_select %p843, %s842, 15
        %s845 = smul.addr %s844, 4
        %s846 = smul.addr %s845, 8
        %s847 = scalar_lea.vmem %s4, %s846
      $region52: #{bottleneck_forward.6} parent=47 // pred_fallthru
        _
      // Predicated region
      $region53: #{bottleneck_forward.6} parent=47 // pred_check
        %p848 = pneg %p156
      $region54: #{bottleneck_forward.6} parent=47 // pred_check_branch
        %850 = sbr.rel (%p848) target = $region56
      $region55: #{bottleneck_forward.6} parent=47 // pred_region
        %p851 = scmp.lt.s32.totalorder %s18, 1
        %s852 = scalar_select %p851, %s18, 1
        %s853 = smul.addr %s852, 4
        %s854 = smul.addr %s853, 8
        %s855 = scalar_lea.vmem %s5, %s854
      $region56: #{bottleneck_forward.6} parent=47 // pred_fallthru
        _
    $region48: #{bottleneck_forward.6} parent=5 // pred_fallthru
      _
  $region6: #{bottleneck_forward.6} parent=0 // loop_footer
    %s16 = sadd.s32 1, %s12
  $region7: #{bottleneck_forward.6} parent=0 // loop_footer_branch
    %11 = sbr.rel target = $region3
  $region8: #{bottleneck_forward.6} parent=0 // loop_exit
    _

// kernel: bottleneck_forward.5
$region0: #{bottleneck_forward.5}
  #allocation0 [shape = 'u32[]', space=smem, size = 0x4, offset = 0x4, fixed_abs, tag = 'smem constant byte address 0x4 - core index']
  #allocation1 [shape = 'u32[144,128]{1,0:T(1,128)}', space=vmem, size = 0x12000, scoped, tag = 'internal scratch']
  #allocation2 [shape = 'f32[1,8,10,128]{3,2,1,0:T(8,128)}', space=vmem, size = 0x10000, scoped, tag = 'scratch operand']
  %s0 = inlined_call_operand.vmem [shape: f32[2,8,8,128], index: 0, kind: input, shape index: {}]
  %s1 = inlined_call_operand.vmem [shape: f32[1,128], index: 1, kind: input, shape index: {}]
  %s2 = inlined_call_operand.vmem [shape: f32[1,128], index: 2, kind: input, shape index: {}]
  %s3 = inlined_call_operand.vmem [shape: bf16[1152,128], index: 3, kind: input, shape index: {}]
  %s4 = inlined_call_operand.vmem [shape: f32[2,8,8,128], index: 4, kind: output, shape index: {0}]
  %s5 = inlined_call_operand.vmem [shape: f32[2,8,128], index: 5, kind: output, shape index: {1}]
  %6 = xla_tuple %s4, %s5
  %s7 = sld [smem:[#allocation0]]
  $region57: #{bottleneck_forward.5} parent=0
    _
  %s9 = ssub.s32 1, %s7
  %s10 = scalar_select 0, %s9, %s7
  loop: start=0, step=1, limit=4
  $region2: #{bottleneck_forward.5} parent=0 // loop_pre_header
    _
  $region3: #{bottleneck_forward.5} parent=0 // loop_header
    %s12 = sphi 0, %s16
    %p13 = scmp.ge.s32.totalorder %s12, 4
    %s22 = sphi 0, %s24
    %s25 = sphi 0, %s22
    %s26 = sphi 0, %s25
    %s42 = sphi 0, %s26
    %s46 = sphi 0, %s46
    %s48 = sphi 0, %s46
    %s49 = sphi 0, %s48
    %s63 = sphi 0, %s49
    %s67 = sphi 0, %s67
    %s69 = sphi 0, %s67
    %s70 = sphi 0, %s69
    %s84 = sphi 0, %s70
    %s88 = sphi 0, %s88
    %s90 = sphi 0, %s88
    %s91 = sphi 0, %s90
    %s105 = sphi 0, %s91
    %s111 = sphi 0, %s113
    %s114 = sphi 0, %s111
    %s115 = sphi 0, %s114
    %s131 = sphi 0, %s115
    %s137 = sphi 0, %s139
    %s140 = sphi 0, %s137
    %s141 = sphi 0, %s140
    %s157 = sphi 0, %s141
  $region4: #{bottleneck_forward.5} parent=0 // loop_header_branch
    %15 = sbr.rel (%p13) target = $region8
  $region5: #{bottleneck_forward.5} parent=0 // loop_body
    %s17 = ssub.s32 %s12, 1
    %s18 = ssub.s32 %s12, 2
    %s19 = sadd.s32 %s12, 1
    %s20 = ssub.s32 %s12, %s19
    %p21 = scmp.eq.s32.totalorder %s20, 0
    %s23 = sadd.s32 %s22, 1
    %s24 = scalar_select %p21, %s22, %s23
    %p27 = pneg %p21
    %p28 = scmp.eq.s32.totalorder %s12, 1
    %p29 = por %p27, %p28
    %p30 = scmp.ne.s32.totalorder %s22, %s25
    %p31 = scmp.eq.s32.totalorder %s12, 0
    %p32 = por %p30, %p31
    %p33 = scmp.ne.s32.totalorder %s22, %s25
    %p34 = scmp.eq.s32.totalorder %s17, 1
    %p35 = por %p33, %p34
    %p36 = scmp.ne.s32.totalorder %s25, %s26
    %p37 = scmp.eq.s32.totalorder %s17, 0
    %p38 = por %p36, %p37
    %p39 = scmp.ne.s32.totalorder %s25, %s26
    %p40 = scmp.eq.s32.totalorder %s18, 1
    %p41 = por %p39, %p40
    %p43 = scmp.ne.s32.totalorder %s26, %s42
    %p44 = scmp.eq.s32.totalorder %s18, 0
    %p45 = por %p43, %p44
    %s47 = sadd.s32 %s46, 1
    %p50 = scmp.eq.s32.totalorder %s12, 1
    %p51 = scmp.ne.s32.totalorder %s46, %s48
    %p52 = scmp.eq.s32.totalorder %s12, 0
    %p53 = por %p51, %p52
    %p54 = scmp.ne.s32.totalorder %s46, %s48
    %p55 = scmp.eq.s32.totalorder %s17, 1
    %p56 = por %p54, %p55
    %p57 = scmp.ne.s32.totalorder %s48, %s49
    %p58 = scmp.eq.s32.totalorder %s17, 0
    %p59 = por %p57, %p58
    %p60 = scmp.ne.s32.totalorder %s48, %s49
    %p61 = scmp.eq.s32.totalorder %s18, 1
    %p62 = por %p60, %p61
    %p64 = scmp.ne.s32.totalorder %s49, %s63
    %p65 = scmp.eq.s32.totalorder %s18, 0
    %p66 = por %p64, %p65
    %s68 = sadd.s32 %s67, 1
    %p71 = scmp.eq.s32.totalorder %s12, 1
    %p72 = scmp.ne.s32.totalorder %s67, %s69
    %p73 = scmp.eq.s32.totalorder %s12, 0
    %p74 = por %p72, %p73
    %p75 = scmp.ne.s32.totalorder %s67, %s69
    %p76 = scmp.eq.s32.totalorder %s17, 1
    %p77 = por %p75, %p76
    %p78 = scmp.ne.s32.totalorder %s69, %s70
    %p79 = scmp.eq.s32.totalorder %s17, 0
    %p80 = por %p78, %p79
    %p81 = scmp.ne.s32.totalorder %s69, %s70
    %p82 = scmp.eq.s32.totalorder %s18, 1
    %p83 = por %p81, %p82
    %p85 = scmp.ne.s32.totalorder %s70, %s84
    %p86 = scmp.eq.s32.totalorder %s18, 0
    %p87 = por %p85, %p86
    %s89 = sadd.s32 %s88, 1
    %p92 = scmp.eq.s32.totalorder %s12, 1
    %p93 = scmp.ne.s32.totalorder %s88, %s90
    %p94 = scmp.eq.s32.totalorder %s12, 0
    %p95 = por %p93, %p94
    %p96 = scmp.ne.s32.totalorder %s88, %s90
    %p97 = scmp.eq.s32.totalorder %s17, 1
    %p98 = por %p96, %p97
    %p99 = scmp.ne.s32.totalorder %s90, %s91
    %p100 = scmp.eq.s32.totalorder %s17, 0
    %p101 = por %p99, %p100
    %p102 = scmp.ne.s32.totalorder %s90, %s91
    %p103 = scmp.eq.s32.totalorder %s18, 1
    %p104 = por %p102, %p103
    %p106 = scmp.ne.s32.totalorder %s91, %s105
    %p107 = scmp.eq.s32.totalorder %s18, 0
    %p108 = por %p106, %p107
    %s109 = ssub.s32 %s12, %s19
    %p110 = scmp.eq.s32.totalorder %s109, 0
    %s112 = sadd.s32 %s111, 1
    %s113 = scalar_select %p110, %s111, %s112
    %p116 = pneg %p110
    %p117 = scmp.eq.s32.totalorder %s12, 1
    %p118 = por %p116, %p117
    %p119 = scmp.ne.s32.totalorder %s111, %s114
    %p120 = scmp.eq.s32.totalorder %s12, 0
    %p121 = por %p119, %p120
    %p122 = scmp.ne.s32.totalorder %s111, %s114
    %p123 = scmp.eq.s32.totalorder %s17, 1
    %p124 = por %p122, %p123
    %p125 = scmp.ne.s32.totalorder %s114, %s115
    %p126 = scmp.eq.s32.totalorder %s17, 0
    %p127 = por %p125, %p126
    %p128 = scmp.ne.s32.totalorder %s114, %s115
    %p129 = scmp.eq.s32.totalorder %s18, 1
    %p130 = por %p128, %p129
    %p132 = scmp.ne.s32.totalorder %s115, %s131
    %p133 = scmp.eq.s32.totalorder %s18, 0
    %p134 = por %p132, %p133
    %s135 = ssub.s32 %s12, %s19
    %p136 = scmp.eq.s32.totalorder %s135, 0
    %s138 = sadd.s32 %s137, 1
    %s139 = scalar_select %p136, %s137, %s138
    %p142 = pneg %p136
    %p143 = scmp.eq.s32.totalorder %s12, 1
    %p144 = por %p142, %p143
    %p145 = scmp.ne.s32.totalorder %s137, %s140
    %p146 = scmp.eq.s32.totalorder %s12, 0
    %p147 = por %p145, %p146
    %p148 = scmp.ne.s32.totalorder %s137, %s140
    %p149 = scmp.eq.s32.totalorder %s17, 1
    %p150 = por %p148, %p149
    %p151 = scmp.ne.s32.totalorder %s140, %s141
    %p152 = scmp.eq.s32.totalorder %s17, 0
    %p153 = por %p151, %p152
    %p154 = scmp.ne.s32.totalorder %s140, %s141
    %p155 = scmp.eq.s32.totalorder %s18, 1
    %p156 = por %p154, %p155
    %p158 = scmp.ne.s32.totalorder %s141, %s157
    %p159 = scmp.eq.s32.totalorder %s18, 0
    %p160 = por %p158, %p159
    %p161 = scmp.le.s32.totalorder 1, %s12
    %p162 = scmp.lt.s32.totalorder %s12, 3
    %p163 = pnand %p161, %p162
    %p164 = pneg %p163
    // Predicated region
    $region9: #{bottleneck_forward.5} parent=5 // pred_check
      _
    $region10: #{bottleneck_forward.5} parent=5 // pred_check_branch
      %166 = sbr.rel (%p163) target = $region12
    $region11: #{bottleneck_forward.5} parent=5 // pred_region
      %s167 = ssub.s32 %s12, 1
      // Predicated region
      $region13: #{bottleneck_forward.5} parent=11 // pred_check
        %p168 = pneg %p59
      $region14: #{bottleneck_forward.5} parent=11 // pred_check_branch
        %170 = sbr.rel (%p168) target = $region16
      $region15: #{bottleneck_forward.5} parent=11 // pred_region
        _
      $region16: #{bottleneck_forward.5} parent=11 // pred_fallthru
        _
      // Predicated region
      $region17: #{bottleneck_forward.5} parent=11 // pred_check
        %p171 = pneg %p80
      $region18: #{bottleneck_forward.5} parent=11 // pred_check_branch
        %173 = sbr.rel (%p171) target = $region20
      $region19: #{bottleneck_forward.5} parent=11 // pred_region
        _
      $region20: #{bottleneck_forward.5} parent=11 // pred_fallthru
        _
      // Predicated region
      $region21: #{bottleneck_forward.5} parent=11 // pred_check
        %p174 = pneg %p101
      $region22: #{bottleneck_forward.5} parent=11 // pred_check_branch
        %176 = sbr.rel (%p174) target = $region24
      $region23: #{bottleneck_forward.5} parent=11 // pred_region
        _
      $region24: #{bottleneck_forward.5} parent=11 // pred_fallthru
        _
    $region12: #{bottleneck_forward.5} parent=5 // pred_fallthru
      _
    %p177 = scmp.lt.s32.totalorder %s12, 2
    // Predicated region
    $region25: #{bottleneck_forward.5} parent=5 // pred_check
      %p178 = pneg %p177
    $region26: #{bottleneck_forward.5} parent=5 // pred_check_branch
      %180 = sbr.rel (%p178) target = $region28
    $region27: #{bottleneck_forward.5} parent=5 // pred_region
      // Predicated region
      $region29: #{bottleneck_forward.5} parent=27 // pred_check
        %p181 = pneg %p32
      $region30: #{bottleneck_forward.5} parent=27 // pred_check_branch
        %183 = sbr.rel (%p181) target = $region32
      $region31: #{bottleneck_forward.5} parent=27 // pred_region
        %p184 = scmp.lt.s32.totalorder %s12, 1
        %s185 = scalar_select %p184, %s12, 1
        %s186 = smul.addr %s185, 8
        %s187 = smul.addr %s186, 8
        %s188 = scalar_lea.vmem %s0, %s187
      $region32: #{bottleneck_forward.5} parent=27 // pred_fallthru
        _
    $region28: #{bottleneck_forward.5} parent=5 // pred_fallthru
      _
    %p189 = scmp.le.s32.totalorder 1, %s12
    %p190 = scmp.lt.s32.totalorder %s12, 3
    %p191 = pnand %p189, %p190
    %p192 = pneg %p191
    // Predicated region
    $region33: #{bottleneck_forward.5} parent=5 // pred_check
      _
    $region34: #{bottleneck_forward.5} parent=5 // pred_check_branch
      %194 = sbr.rel (%p191) target = $region36
    $region35: #{bottleneck_forward.5} parent=5 // pred_region
      %s195 = ssub.s32 %s12, 1
      %p196 = scmp.lt.s32.totalorder %s17, 1
      %s197 = scalar_select %p196, %s17, 1
      %s198 = smul.addr %s197, 8
      %s199 = smul.addr %s198, 8
      %s200 = scalar_lea.vmem %s0, %s199
      %p201 = pneg %p38
      %p202 = pneg %p35
      %p203 = pneg %p59
      %p204 = pneg %p56
      %p205 = pneg %p80
      %p206 = pneg %p77
      %p207 = pneg %p101
      %p208 = pneg %p98
      %p209 = pneg %p127
      %p210 = pneg %p124
      %p211 = scmp.lt.s32.totalorder %s17, 1
      %s212 = scalar_select %p211, %s17, 1
      %s213 = smul.addr %s212, 8
      %s214 = smul.addr %s213, 8
      %s215 = scalar_lea.vmem %s4, %s214
      %p216 = pneg %p153
      %p217 = pneg %p150
      %p218 = scmp.lt.s32.totalorder %s17, 1
      %s219 = scalar_select %p218, %s17, 1
      %s220 = smul.addr %s219, 8
      %s221 = scalar_lea.vmem %s5, %s220
      %p222 = scmp.lt.s32.totalorder %s17, 1
      %s223 = scalar_select %p222, %s17, 1
      %s224 = smul.addr %s223, 8
      %s225 = smul.addr %s224, 8
      %s226 = scalar_lea.vmem %s0, %s225
      %p227 = scmp.lt.s32.totalorder %s17, 1
      %s228 = scalar_select %p227, %s17, 1
      %s229 = smul.addr %s228, 8
      %s230 = smul.addr %s229, 8
      %s231 = scalar_lea.vmem %s4, %s230
      %p232 = scmp.lt.s32.totalorder %s17, 1
      %s233 = scalar_select %p232, %s17, 1
      %s234 = smul.addr %s233, 8
      %s235 = scalar_lea.vmem %s5, %s234
      %v237 = vld [vmem:[%s226] sm:$0xff]
      %v238 = vld [vmem:[%s226 + $0x8] sm:$0xff]
      %v239 = vld [vmem:[%s226 + $0x10] sm:$0xff]
      %v240 = vld [vmem:[%s226 + $0x18] sm:$0xff]
      %v241 = vld [vmem:[%s226 + $0x20] sm:$0xff]
      %v242 = vld [vmem:[%s226 + $0x28] sm:$0xff]
      %v243 = vld [vmem:[%s226 + $0x30] sm:$0xff]
      %v244 = vld [vmem:[%s226 + $0x38] sm:$0xff]
      %v245 = vld [vmem:[%s1] sm:$0x1]
      %v247 = vlaneseq
      %v248 = vshrl.u32 %v247, 7
      %v249 = vsub.s32 0, %v248
      %v250 = vrot.slane %v245, %v249
      %v252 = vmul.f32 %v237, %v250
      %v253 = vmul.f32 %v238, %v250
      %v254 = vmul.f32 %v239, %v250
      %v255 = vmul.f32 %v240, %v250
      %v256 = vmul.f32 %v241, %v250
      %v257 = vmul.f32 %v242, %v250
      %v258 = vmul.f32 %v243, %v250
      %v259 = vmul.f32 %v244, %v250
      %v260 = vld [vmem:[%s2] sm:$0x1]
      %v262 = vlaneseq
      %v263 = vshrl.u32 %v262, 7
      %v264 = vsub.s32 0, %v263
      %v265 = vrot.slane %v260, %v264
      %v267 = vadd.f32 %v252, %v265
      %v268 = vadd.f32 %v253, %v265
      %v269 = vadd.f32 %v254, %v265
      %v270 = vadd.f32 %v255, %v265
      %v271 = vadd.f32 %v256, %v265
      %v272 = vadd.f32 %v257, %v265
      %v273 = vadd.f32 %v258, %v265
      %v274 = vadd.f32 %v259, %v265
      %v275 = vmax.f32 %v267, 0.0
      %v276 = vmax.f32 %v268, 0.0
      %v277 = vmax.f32 %v269, 0.0
      %v278 = vmax.f32 %v270, 0.0
      %v279 = vmax.f32 %v271, 0.0
      %v280 = vmax.f32 %v272, 0.0
      %v281 = vmax.f32 %v273, 0.0
      %v282 = vmax.f32 %v274, 0.0
      %283 = vst [vmem:[#allocation2] sm:$0x1] 0.0
      %284 = vst [vmem:[#allocation2 + $0x10] sm:$0x1] 0.0
      %285 = vst [vmem:[#allocation2 + $0x20] sm:$0x1] 0.0
      %286 = vst [vmem:[#allocation2 + $0x30] sm:$0x1] 0.0
      %287 = vst [vmem:[#allocation2 + $0x40] sm:$0x1] 0.0
      %288 = vst [vmem:[#allocation2 + $0x50] sm:$0x1] 0.0
      %289 = vst [vmem:[#allocation2 + $0x60] sm:$0x1] 0.0
      %290 = vst [vmem:[#allocation2 + $0x70] sm:$0x1] 0.0
      %291 = vst [vmem:[#allocation2 + $0x9] sm:$0x1] 0.0
      %292 = vst [vmem:[#allocation2 + $0x19] sm:$0x1] 0.0
      %293 = vst [vmem:[#allocation2 + $0x29] sm:$0x1] 0.0
      %294 = vst [vmem:[#allocation2 + $0x39] sm:$0x1] 0.0
      %295 = vst [vmem:[#allocation2 + $0x49] sm:$0x1] 0.0
      %296 = vst [vmem:[#allocation2 + $0x59] sm:$0x1] 0.0
      %297 = vst [vmem:[#allocation2 + $0x69] sm:$0x1] 0.0
      %298 = vst [vmem:[#allocation2 + $0x79] sm:$0x1] 0.0
      %299 = vst [vmem:[#allocation2 + $0x1] sm:$0xff] %v275
      %300 = vst [vmem:[#allocation2 + $0x11] sm:$0xff] %v276
      %301 = vst [vmem:[#allocation2 + $0x21] sm:$0xff] %v277
      %302 = vst [vmem:[#allocation2 + $0x31] sm:$0xff] %v278
      %303 = vst [vmem:[#allocation2 + $0x41] sm:$0xff] %v279
      %304 = vst [vmem:[#allocation2 + $0x51] sm:$0xff] %v280
      %305 = vst [vmem:[#allocation2 + $0x61] sm:$0xff] %v281
      %306 = vst [vmem:[#allocation2 + $0x71] sm:$0xff] %v282
      %v307 = vld [vmem:[#allocation2] sm:$0xff]
      %v308 = vld [vmem:[#allocation2 + $0x10] sm:$0xff]
      %v309 = vld [vmem:[#allocation2 + $0x20] sm:$0xff]
      %v310 = vld [vmem:[#allocation2 + $0x30] sm:$0xff]
      %v311 = vld [vmem:[#allocation2 + $0x40] sm:$0xff]
      %v312 = vld [vmem:[#allocation2 + $0x50] sm:$0xff]
      %v313 = vld [vmem:[#allocation2 + $0x60] sm:$0xff]
      %v314 = vld [vmem:[#allocation2 + $0x70] sm:$0xff]
      %v315 = vpack.c.bf16 %v307, %v307
      %v316 = vpack.c.bf16 %v308, %v308
      %v317 = vpack.c.bf16 %v309, %v309
      %v318 = vpack.c.bf16 %v310, %v310
      %v319 = vpack.c.bf16 %v311, %v311
      %v320 = vpack.c.bf16 %v312, %v312
      %v321 = vpack.c.bf16 %v313, %v313
      %v322 = vpack.c.bf16 %v314, %v314
      %v323 = vpack.c.bf16 %v275, %v275
      %v324 = vpack.c.bf16 %v276, %v276
      %v325 = vpack.c.bf16 %v277, %v277
      %v326 = vpack.c.bf16 %v278, %v278
      %v327 = vpack.c.bf16 %v279, %v279
      %v328 = vpack.c.bf16 %v280, %v280
      %v329 = vpack.c.bf16 %v281, %v281
      %v330 = vpack.c.bf16 %v282, %v282
      %v331 = vld [vmem:[#allocation2 + $0x2] sm:$0xff]
      %v332 = vld [vmem:[#allocation2 + $0x12] sm:$0xff]
      %v333 = vld [vmem:[#allocation2 + $0x22] sm:$0xff]
      %v334 = vld [vmem:[#allocation2 + $0x32] sm:$0xff]
      %v335 = vld [vmem:[#allocation2 + $0x42] sm:$0xff]
      %v336 = vld [vmem:[#allocation2 + $0x52] sm:$0xff]
      %v337 = vld [vmem:[#allocation2 + $0x62] sm:$0xff]
      %v338 = vld [vmem:[#allocation2 + $0x72] sm:$0xff]
      %v339 = vpack.c.bf16 %v331, %v331
      %v340 = vpack.c.bf16 %v332, %v332
      %v341 = vpack.c.bf16 %v333, %v333
      %v342 = vpack.c.bf16 %v334, %v334
      %v343 = vpack.c.bf16 %v335, %v335
      %v344 = vpack.c.bf16 %v336, %v336
      %v345 = vpack.c.bf16 %v337, %v337
      %v346 = vpack.c.bf16 %v338, %v338
      %v372 = vunpack.c.l.b16 0
      %v373 = vunpack.c.l.b16 %v315
      %v374 = vunpack.c.l.b16 %v323
      %v375 = vunpack.c.l.b16 %v339
      %v376 = vunpack.c.l.b16 %v316
      %v377 = vunpack.c.l.b16 %v324
      %v378 = vunpack.c.l.b16 %v340
      %v379 = vunpack.c.l.b16 %v317
      %v380 = vunpack.c.l.b16 %v325
      %v381 = vunpack.c.l.b16 %v341
      %v382 = vunpack.c.l.b16 %v318
      %v383 = vunpack.c.l.b16 %v326
      %v384 = vunpack.c.l.b16 %v342
      %v385 = vunpack.c.l.b16 %v319
      %v386 = vunpack.c.l.b16 %v327
      %v387 = vunpack.c.l.b16 %v343
      %v388 = vunpack.c.l.b16 %v320
      %v389 = vunpack.c.l.b16 %v328
      %v390 = vunpack.c.l.b16 %v344
      %v391 = vunpack.c.l.b16 %v321
      %v392 = vunpack.c.l.b16 %v329
      %v393 = vunpack.c.l.b16 %v345
      %v394 = vunpack.c.l.b16 %v322
      %v395 = vunpack.c.l.b16 %v330
      %v396 = vunpack.c.l.b16 %v346
      %v397 = vld [vmem:[%s3] sm:$0xf]
      %v398 = vld [vmem:[%s3 + $0x4] sm:$0xf]
      %v399 = vld [vmem:[%s3 + $0x8] sm:$0xf]
      %v400 = vld [vmem:[%s3 + $0xc] sm:$0xf]
      %v401 = vld [vmem:[%s3 + $0x10] sm:$0xf]
      %v402 = vld [vmem:[%s3 + $0x14] sm:$0xf]
      %v403 = vld [vmem:[%s3 + $0x18] sm:$0xf]
      %v404 = vld [vmem:[%s3 + $0x1c] sm:$0xf]
      %v405 = vld [vmem:[%s3 + $0x20] sm:$0xf]
      %v406 = vld [vmem:[%s3 + $0x24] sm:$0xf]
      %v407 = vld [vmem:[%s3 + $0x28] sm:$0xf]
      %v408 = vld [vmem:[%s3 + $0x2c] sm:$0xf]
      %v409 = vld [vmem:[%s3 + $0x30] sm:$0xf]
      %v410 = vld [vmem:[%s3 + $0x34] sm:$0xf]
      %v411 = vld [vmem:[%s3 + $0x38] sm:$0xf]
      %v412 = vld [vmem:[%s3 + $0x3c] sm:$0xf]
      %v413 = vld [vmem:[%s3 + $0x40] sm:$0xf]
      %v414 = vld [vmem:[%s3 + $0x44] sm:$0xf]
      %v415 = vld [vmem:[%s3 + $0x48] sm:$0xf]
      %v416 = vld [vmem:[%s3 + $0x4c] sm:$0xf]
      %v417 = vld [vmem:[%s3 + $0x50] sm:$0xf]
      %v418 = vld [vmem:[%s3 + $0x54] sm:$0xf]
      %v419 = vld [vmem:[%s3 + $0x58] sm:$0xf]
      %v420 = vld [vmem:[%s3 + $0x5c] sm:$0xf]
      %v421 = vld [vmem:[%s3 + $0x60] sm:$0xf]
      %v422 = vld [vmem:[%s3 + $0x64] sm:$0xf]
      %v423 = vld [vmem:[%s3 + $0x68] sm:$0xf]
      %v424 = vld [vmem:[%s3 + $0x6c] sm:$0xf]
      %v425 = vld [vmem:[%s3 + $0x70] sm:$0xf]
      %v426 = vld [vmem:[%s3 + $0x74] sm:$0xf]
      %v427 = vld [vmem:[%s3 + $0x78] sm:$0xf]
      %v428 = vld [vmem:[%s3 + $0x7c] sm:$0xf]
      %v429 = vld [vmem:[%s3 + $0x80] sm:$0xf]
      %v430 = vld [vmem:[%s3 + $0x84] sm:$0xf]
      %v431 = vld [vmem:[%s3 + $0x88] sm:$0xf]
      %v432 = vld [vmem:[%s3 + $0x8c] sm:$0xf]
      %v433 = vld [vmem:[%s3 + $0x90] sm:$0xf]
      %v434 = vld [vmem:[%s3 + $0x94] sm:$0xf]
      %v435 = vld [vmem:[%s3 + $0x98] sm:$0xf]
      %v436 = vld [vmem:[%s3 + $0x9c] sm:$0xf]
      %v437 = vld [vmem:[%s3 + $0xa0] sm:$0xf]
      %v438 = vld [vmem:[%s3 + $0xa4] sm:$0xf]
      %v439 = vld [vmem:[%s3 + $0xa8] sm:$0xf]
      %v440 = vld [vmem:[%s3 + $0xac] sm:$0xf]
      %v441 = vld [vmem:[%s3 + $0xb0] sm:$0xf]
      %v442 = vld [vmem:[%s3 + $0xb4] sm:$0xf]
      %v443 = vld [vmem:[%s3 + $0xb8] sm:$0xf]
      %v444 = vld [vmem:[%s3 + $0xbc] sm:$0xf]
      %v445 = vld [vmem:[%s3 + $0xc0] sm:$0xf]
      %v446 = vld [vmem:[%s3 + $0xc4] sm:$0xf]
      %v447 = vld [vmem:[%s3 + $0xc8] sm:$0xf]
      %v448 = vld [vmem:[%s3 + $0xcc] sm:$0xf]
      %v449 = vld [vmem:[%s3 + $0xd0] sm:$0xf]
      %v450 = vld [vmem:[%s3 + $0xd4] sm:$0xf]
      %v451 = vld [vmem:[%s3 + $0xd8] sm:$0xf]
      %v452 = vld [vmem:[%s3 + $0xdc] sm:$0xf]
      %v453 = vld [vmem:[%s3 + $0xe0] sm:$0xf]
      %v454 = vld [vmem:[%s3 + $0xe4] sm:$0xf]
      %v455 = vld [vmem:[%s3 + $0xe8] sm:$0xf]
      %v456 = vld [vmem:[%s3 + $0xec] sm:$0xf]
      %v457 = vld [vmem:[%s3 + $0xf0] sm:$0xf]
      %v458 = vld [vmem:[%s3 + $0xf4] sm:$0xf]
      %v459 = vld [vmem:[%s3 + $0xf8] sm:$0xf]
      %v460 = vld [vmem:[%s3 + $0xfc] sm:$0xf]
      %v461 = vld [vmem:[%s3 + $0x100] sm:$0xf]
      %v462 = vld [vmem:[%s3 + $0x104] sm:$0xf]
      %v463 = vld [vmem:[%s3 + $0x108] sm:$0xf]
      %v464 = vld [vmem:[%s3 + $0x10c] sm:$0xf]
      %v465 = vld [vmem:[%s3 + $0x110] sm:$0xf]
      %v466 = vld [vmem:[%s3 + $0x114] sm:$0xf]
      %v467 = vld [vmem:[%s3 + $0x118] sm:$0xf]
      %v468 = vld [vmem:[%s3 + $0x11c] sm:$0xf]
      %v469 = vld [vmem:[%s3 + $0x120] sm:$0xf]
      %v470 = vld [vmem:[%s3 + $0x124] sm:$0xf]
      %v471 = vld [vmem:[%s3 + $0x128] sm:$0xf]
      %v472 = vld [vmem:[%s3 + $0x12c] sm:$0xf]
      %v473 = vld [vmem:[%s3 + $0x130] sm:$0xf]
      %v474 = vld [vmem:[%s3 + $0x134] sm:$0xf]
      %v475 = vld [vmem:[%s3 + $0x138] sm:$0xf]
      %v476 = vld [vmem:[%s3 + $0x13c] sm:$0xf]
      %v477 = vld [vmem:[%s3 + $0x140] sm:$0xf]
      %v478 = vld [vmem:[%s3 + $0x144] sm:$0xf]
      %v479 = vld [vmem:[%s3 + $0x148] sm:$0xf]
      %v480 = vld [vmem:[%s3 + $0x14c] sm:$0xf]
      %v481 = vld [vmem:[%s3 + $0x150] sm:$0xf]
      %v482 = vld [vmem:[%s3 + $0x154] sm:$0xf]
      %v483 = vld [vmem:[%s3 + $0x158] sm:$0xf]
      %v484 = vld [vmem:[%s3 + $0x15c] sm:$0xf]
      %v485 = vld [vmem:[%s3 + $0x160] sm:$0xf]
      %v486 = vld [vmem:[%s3 + $0x164] sm:$0xf]
      %v487 = vld [vmem:[%s3 + $0x168] sm:$0xf]
      %v488 = vld [vmem:[%s3 + $0x16c] sm:$0xf]
      %v489 = vld [vmem:[%s3 + $0x170] sm:$0xf]
      %v490 = vld [vmem:[%s3 + $0x174] sm:$0xf]
      %v491 = vld [vmem:[%s3 + $0x178] sm:$0xf]
      %v492 = vld [vmem:[%s3 + $0x17c] sm:$0xf]
      %v493 = vld [vmem:[%s3 + $0x180] sm:$0xf]
      %v494 = vld [vmem:[%s3 + $0x184] sm:$0xf]
      %v495 = vld [vmem:[%s3 + $0x188] sm:$0xf]
      %v496 = vld [vmem:[%s3 + $0x18c] sm:$0xf]
      %v497 = vld [vmem:[%s3 + $0x190] sm:$0xf]
      %v498 = vld [vmem:[%s3 + $0x194] sm:$0xf]
      %v499 = vld [vmem:[%s3 + $0x198] sm:$0xf]
      %v500 = vld [vmem:[%s3 + $0x19c] sm:$0xf]
      %v501 = vld [vmem:[%s3 + $0x1a0] sm:$0xf]
      %v502 = vld [vmem:[%s3 + $0x1a4] sm:$0xf]
      %v503 = vld [vmem:[%s3 + $0x1a8] sm:$0xf]
      %v504 = vld [vmem:[%s3 + $0x1ac] sm:$0xf]
      %v505 = vld [vmem:[%s3 + $0x1b0] sm:$0xf]
      %v506 = vld [vmem:[%s3 + $0x1b4] sm:$0xf]
      %v507 = vld [vmem:[%s3 + $0x1b8] sm:$0xf]
      %v508 = vld [vmem:[%s3 + $0x1bc] sm:$0xf]
      %v509 = vld [vmem:[%s3 + $0x1c0] sm:$0xf]
      %v510 = vld [vmem:[%s3 + $0x1c4] sm:$0xf]
      %v511 = vld [vmem:[%s3 + $0x1c8] sm:$0xf]
      %v512 = vld [vmem:[%s3 + $0x1cc] sm:$0xf]
      %v513 = vld [vmem:[%s3 + $0x1d0] sm:$0xf]
      %v514 = vld [vmem:[%s3 + $0x1d4] sm:$0xf]
      %v515 = vld [vmem:[%s3 + $0x1d8] sm:$0xf]
      %v516 = vld [vmem:[%s3 + $0x1dc] sm:$0xf]
      %v517 = vld [vmem:[%s3 + $0x1e0] sm:$0xf]
      %v518 = vld [vmem:[%s3 + $0x1e4] sm:$0xf]
      %v519 = vld [vmem:[%s3 + $0x1e8] sm:$0xf]
      %v520 = vld [vmem:[%s3 + $0x1ec] sm:$0xf]
      %v521 = vld [vmem:[%s3 + $0x1f0] sm:$0xf]
      %v522 = vld [vmem:[%s3 + $0x1f4] sm:$0xf]
      %v523 = vld [vmem:[%s3 + $0x1f8] sm:$0xf]
      %v524 = vld [vmem:[%s3 + $0x1fc] sm:$0xf]
      %v525 = vld [vmem:[%s3 + $0x200] sm:$0xf]
      %v526 = vld [vmem:[%s3 + $0x204] sm:$0xf]
      %v527 = vld [vmem:[%s3 + $0x208] sm:$0xf]
      %v528 = vld [vmem:[%s3 + $0x20c] sm:$0xf]
      %v529 = vld [vmem:[%s3 + $0x210] sm:$0xf]
      %v530 = vld [vmem:[%s3 + $0x214] sm:$0xf]
      %v531 = vld [vmem:[%s3 + $0x218] sm:$0xf]
      %v532 = vld [vmem:[%s3 + $0x21c] sm:$0xf]
      %v533 = vld [vmem:[%s3 + $0x220] sm:$0xf]
      %v534 = vld [vmem:[%s3 + $0x224] sm:$0xf]
      %v535 = vld [vmem:[%s3 + $0x228] sm:$0xf]
      %v536 = vld [vmem:[%s3 + $0x22c] sm:$0xf]
      %v537 = vld [vmem:[%s3 + $0x230] sm:$0xf]
      %v538 = vld [vmem:[%s3 + $0x234] sm:$0xf]
      %v539 = vld [vmem:[%s3 + $0x238] sm:$0xf]
      %v540 = vld [vmem:[%s3 + $0x23c] sm:$0xf]
      %v541 = vpack.c.b16 %v373, %v372
      %v542 = vpack.c.b16 %v374, %v372
      %v543 = vpack.c.b16 %v375, %v372
      %v544 = vpack.c.b16 %v376, %v373
      %v545 = vpack.c.b16 %v377, %v374
      %v546 = vpack.c.b16 %v378, %v375
      %v547 = vpack.c.b16 %v379, %v376
      %v548 = vpack.c.b16 %v380, %v377
      %v549 = vpack.c.b16 %v381, %v378
      %v550 = vpack.c.b16 %v382, %v379
      %v551 = vpack.c.b16 %v383, %v380
      %v552 = vpack.c.b16 %v384, %v381
      %v553 = vpack.c.b16 %v385, %v382
      %v554 = vpack.c.b16 %v386, %v383
      %v555 = vpack.c.b16 %v387, %v384
      %v556 = vpack.c.b16 %v388, %v385
      %v557 = vpack.c.b16 %v389, %v386
      %v558 = vpack.c.b16 %v390, %v387
      %v559 = vpack.c.b16 %v391, %v388
      %v560 = vpack.c.b16 %v392, %v389
      %v561 = vpack.c.b16 %v393, %v390
      %v562 = vpack.c.b16 %v394, %v391
      %v563 = vpack.c.b16 %v395, %v392
      %v564 = vpack.c.b16 %v396, %v393
      %v565 = vpack.c.b16 %v372, %v394
      %v566 = vpack.c.b16 %v372, %v395
      %v567 = vpack.c.b16 %v372, %v396
      %v739 = vunpack.c.l.b16 %v397
      %v740 = vunpack.c.l.b16 %v398
      %v741 = vunpack.c.l.b16 %v399
      %v742 = vunpack.c.l.b16 %v400
      %v743 = vunpack.c.l.b16 %v401
      %v744 = vunpack.c.l.b16 %v402
      %v745 = vunpack.c.l.b16 %v403
      %v746 = vunpack.c.l.b16 %v404
      %v747 = vunpack.c.l.b16 %v405
      %v748 = vunpack.c.l.b16 %v406
      %v749 = vunpack.c.l.b16 %v407
      %v750 = vunpack.c.l.b16 %v408
      %v751 = vunpack.c.l.b16 %v409
      %v752 = vunpack.c.l.b16 %v410
      %v753 = vunpack.c.l.b16 %v411
      %v754 = vunpack.c.l.b16 %v412
      %v755 = vunpack.c.l.b16 %v413
      %v756 = vunpack.c.l.b16 %v414
      %v757 = vunpack.c.l.b16 %v415
      %v758 = vunpack.c.l.b16 %v416
      %v759 = vunpack.c.l.b16 %v417
      %v760 = vunpack.c.l.b16 %v418
      %v761 = vunpack.c.l.b16 %v419
      %v762 = vunpack.c.l.b16 %v420
      %v763 = vunpack.c.l.b16 %v421
      %v764 = vunpack.c.l.b16 %v422
      %v765 = vunpack.c.l.b16 %v423
      %v766 = vunpack.c.l.b16 %v424
      %v767 = vunpack.c.l.b16 %v425
      %v768 = vunpack.c.l.b16 %v426
      %v769 = vunpack.c.l.b16 %v427
      %v770 = vunpack.c.l.b16 %v428
      %v771 = vunpack.c.l.b16 %v429
      %v772 = vunpack.c.l.b16 %v430
      %v773 = vunpack.c.l.b16 %v431
      %v774 = vunpack.c.l.b16 %v432
      %v775 = vunpack.c.l.b16 %v433
      %v776 = vunpack.c.l.b16 %v434
      %v777 = vunpack.c.l.b16 %v435
      %v778 = vunpack.c.l.b16 %v436
      %v779 = vunpack.c.l.b16 %v437
      %v780 = vunpack.c.l.b16 %v438
      %v781 = vunpack.c.l.b16 %v439
      %v782 = vunpack.c.l.b16 %v440
      %v783 = vunpack.c.l.b16 %v441
      %v784 = vunpack.c.l.b16 %v442
      %v785 = vunpack.c.l.b16 %v443
      %v786 = vunpack.c.l.b16 %v444
      %v787 = vunpack.c.l.b16 %v445
      %v788 = vunpack.c.l.b16 %v446
      %v789 = vunpack.c.l.b16 %v447
      %v790 = vunpack.c.l.b16 %v448
      %v791 = vunpack.c.l.b16 %v449
      %v792 = vunpack.c.l.b16 %v450
      %v793 = vunpack.c.l.b16 %v451
      %v794 = vunpack.c.l.b16 %v452
      %v795 = vunpack.c.l.b16 %v453
      %v796 = vunpack.c.l.b16 %v454
      %v797 = vunpack.c.l.b16 %v455
      %v798 = vunpack.c.l.b16 %v456
      %v799 = vunpack.c.l.b16 %v457
      %v800 = vunpack.c.l.b16 %v458
      %v801 = vunpack.c.l.b16 %v459
      %v802 = vunpack.c.l.b16 %v460
      %v803 = vunpack.c.l.b16 %v461
      %v804 = vunpack.c.l.b16 %v462
      %v805 = vunpack.c.l.b16 %v463
      %v806 = vunpack.c.l.b16 %v464
      %v807 = vunpack.c.l.b16 %v465
      %v808 = vunpack.c.l.b16 %v466
      %v809 = vunpack.c.l.b16 %v467
      %v810 = vunpack.c.l.b16 %v468
      %v811 = vunpack.c.l.b16 %v469
      %v812 = vunpack.c.l.b16 %v470
      %v813 = vunpack.c.l.b16 %v471
      %v814 = vunpack.c.l.b16 %v472
      %v815 = vunpack.c.l.b16 %v473
      %v816 = vunpack.c.l.b16 %v474
      %v817 = vunpack.c.l.b16 %v475
      %v818 = vunpack.c.l.b16 %v476
      %v819 = vunpack.c.l.b16 %v477
      %v820 = vunpack.c.l.b16 %v478
      %v821 = vunpack.c.l.b16 %v479
      %v822 = vunpack.c.l.b16 %v480
      %v823 = vunpack.c.l.b16 %v481
      %v824 = vunpack.c.l.b16 %v482
      %v825 = vunpack.c.l.b16 %v483
      %v826 = vunpack.c.l.b16 %v484
      %v827 = vunpack.c.l.b16 %v485
      %v828 = vunpack.c.l.b16 %v486
      %v829 = vunpack.c.l.b16 %v487
      %v830 = vunpack.c.l.b16 %v488
      %v831 = vunpack.c.l.b16 %v489
      %v832 = vunpack.c.l.b16 %v490
      %v833 = vunpack.c.l.b16 %v491
      %v834 = vunpack.c.l.b16 %v492
      %v835 = vunpack.c.l.b16 %v493
      %v836 = vunpack.c.l.b16 %v494
      %v837 = vunpack.c.l.b16 %v495
      %v838 = vunpack.c.l.b16 %v496
      %v839 = vunpack.c.l.b16 %v497
      %v840 = vunpack.c.l.b16 %v498
      %v841 = vunpack.c.l.b16 %v499
      %v842 = vunpack.c.l.b16 %v500
      %v843 = vunpack.c.l.b16 %v501
      %v844 = vunpack.c.l.b16 %v502
      %v845 = vunpack.c.l.b16 %v503
      %v846 = vunpack.c.l.b16 %v504
      %v847 = vunpack.c.l.b16 %v505
      %v848 = vunpack.c.l.b16 %v506
      %v849 = vunpack.c.l.b16 %v507
      %v850 = vunpack.c.l.b16 %v508
      %v851 = vunpack.c.l.b16 %v509
      %v852 = vunpack.c.l.b16 %v510
      %v853 = vunpack.c.l.b16 %v511
      %v854 = vunpack.c.l.b16 %v512
      %v855 = vunpack.c.l.b16 %v513
      %v856 = vunpack.c.l.b16 %v514
      %v857 = vunpack.c.l.b16 %v515
      %v858 = vunpack.c.l.b16 %v516
      %v859 = vunpack.c.l.b16 %v517
      %v860 = vunpack.c.l.b16 %v518
      %v861 = vunpack.c.l.b16 %v519
      %v862 = vunpack.c.l.b16 %v520
      %v863 = vunpack.c.l.b16 %v521
      %v864 = vunpack.c.l.b16 %v522
      %v865 = vunpack.c.l.b16 %v523
      %v866 = vunpack.c.l.b16 %v524
      %v867 = vunpack.c.l.b16 %v525
      %v868 = vunpack.c.l.b16 %v526
      %v869 = vunpack.c.l.b16 %v527
      %v870 = vunpack.c.l.b16 %v528
      %v871 = vunpack.c.l.b16 %v529
      %v872 = vunpack.c.l.b16 %v530
      %v873 = vunpack.c.l.b16 %v531
      %v874 = vunpack.c.l.b16 %v532
      %v875 = vunpack.c.l.b16 %v533
      %v876 = vunpack.c.l.b16 %v534
      %v877 = vunpack.c.l.b16 %v535
      %v878 = vunpack.c.l.b16 %v536
      %v879 = vunpack.c.l.b16 %v537
      %v880 = vunpack.c.l.b16 %v538
      %v881 = vunpack.c.l.b16 %v539
      %v882 = vunpack.c.l.b16 %v540
      %v883 = vpack.c.b16 %v740, %v739
      %v884 = vpack.c.b16 %v742, %v741
      %v885 = vpack.c.b16 %v744, %v743
      %v886 = vpack.c.b16 %v746, %v745
      %v887 = vpack.c.b16 %v748, %v747
      %v888 = vpack.c.b16 %v750, %v749
      %v889 = vpack.c.b16 %v752, %v751
      %v890 = vpack.c.b16 %v754, %v753
      %v891 = vpack.c.b16 %v756, %v755
      %v892 = vpack.c.b16 %v758, %v757
      %v893 = vpack.c.b16 %v760, %v759
      %v894 = vpack.c.b16 %v762, %v761
      %v895 = vpack.c.b16 %v764, %v763
      %v896 = vpack.c.b16 %v766, %v765
      %v897 = vpack.c.b16 %v768, %v767
      %v898 = vpack.c.b16 %v770, %v769
      %v899 = vpack.c.b16 %v772, %v771
      %v900 = vpack.c.b16 %v774, %v773
      %v901 = vpack.c.b16 %v776, %v775
      %v902 = vpack.c.b16 %v778, %v777
      %v903 = vpack.c.b16 %v780, %v779
      %v904 = vpack.c.b16 %v782, %v781
      %v905 = vpack.c.b16 %v784, %v783
      %v906 = vpack.c.b16 %v786, %v785
      %v907 = vpack.c.b16 %v788, %v787
      %v908 = vpack.c.b16 %v790, %v789
      %v909 = vpack.c.b16 %v792, %v791
      %v910 = vpack.c.b16 %v794, %v793
      %v911 = vpack.c.b16 %v796, %v795
      %v912 = vpack.c.b16 %v798, %v797
      %v913 = vpack.c.b16 %v800, %v799
      %v914 = vpack.c.b16 %v802, %v801
      %v915 = vpack.c.b16 %v804, %v803
      %v916 = vpack.c.b16 %v806, %v805
      %v917 = vpack.c.b16 %v808, %v807
      %v918 = vpack.c.b16 %v810, %v809
      %v919 = vpack.c.b16 %v812, %v811
      %v920 = vpack.c.b16 %v814, %v813
      %v921 = vpack.c.b16 %v816, %v815
      %v922 = vpack.c.b16 %v818, %v817
      %v923 = vpack.c.b16 %v820, %v819
      %v924 = vpack.c.b16 %v822, %v821
      %v925 = vpack.c.b16 %v824, %v823
      %v926 = vpack.c.b16 %v826, %v825
      %v927 = vpack.c.b16 %v828, %v827
      %v928 = vpack.c.b16 %v830, %v829
      %v929 = vpack.c.b16 %v832, %v831
      %v930 = vpack.c.b16 %v834, %v833
      %v931 = vpack.c.b16 %v836, %v835
      %v932 = vpack.c.b16 %v838, %v837
      %v933 = vpack.c.b16 %v840, %v839
      %v934 = vpack.c.b16 %v842, %v841
      %v935 = vpack.c.b16 %v844, %v843
      %v936 = vpack.c.b16 %v846, %v845
      %v937 = vpack.c.b16 %v848, %v847
      %v938 = vpack.c.b16 %v850, %v849
      %v939 = vpack.c.b16 %v852, %v851
      %v940 = vpack.c.b16 %v854, %v853
      %v941 = vpack.c.b16 %v856, %v855
      %v942 = vpack.c.b16 %v858, %v857
      %v943 = vpack.c.b16 %v860, %v859
      %v944 = vpack.c.b16 %v862, %v861
      %v945 = vpack.c.b16 %v864, %v863
      %v946 = vpack.c.b16 %v866, %v865
      %v947 = vpack.c.b16 %v868, %v867
      %v948 = vpack.c.b16 %v870, %v869
      %v949 = vpack.c.b16 %v872, %v871
      %v950 = vpack.c.b16 %v874, %v873
      %v951 = vpack.c.b16 %v876, %v875
      %v952 = vpack.c.b16 %v878, %v877
      %v953 = vpack.c.b16 %v880, %v879
      %v954 = vpack.c.b16 %v882, %v881
      %1027 = vmatprep.subr.bf16.mxu0 0
      %1028 = vmatpush1.bf16.msra.mxu0 %v890
      %1029 = vmatprep.subr.bf16.mxu0 0
      %1030 = vmatpush1.bf16.msra.mxu0 %v889
      %1031 = vmatprep.subr.bf16.mxu0 0
      %1032 = vmatpush1.bf16.msra.mxu0 %v888
      %1033 = vmatprep.subr.bf16.mxu0 0
      %1034 = vmatpush1.bf16.msra.mxu0 %v887
      %1035 = vmatprep.subr.bf16.mxu0 0
      %1036 = vmatpush1.bf16.msra.mxu0 %v886
      %1037 = vmatprep.subr.bf16.mxu0 0
      %1038 = vmatpush1.bf16.msra.mxu0 %v885
      %1039 = vmatprep.subr.bf16.mxu0 0
      %1040 = vmatpush1.bf16.msra.mxu0 %v884
      %1041 = vmatprep.subr.bf16.mxu0 0
      %1042 = vmatpush1.bf16.msra.mxu0 %v883
      %1043 = vmatprep.subr.bf16.mxu0 0
      %1044 = vmatpush2.bf16.msra.mxu0 %v898
      %1045 = vmatprep.subr.bf16.mxu0 0
      %1046 = vmatpush2.bf16.msra.mxu0 %v897
      %1047 = vmatprep.subr.bf16.mxu0 0
      %1048 = vmatpush2.bf16.msra.mxu0 %v896
      %1049 = vmatprep.subr.bf16.mxu0 0
      %1050 = vmatpush2.bf16.msra.mxu0 %v895
      %1051 = vmatprep.subr.bf16.mxu0 0
      %1052 = vmatpush2.bf16.msra.mxu0 %v894
      %1053 = vmatprep.subr.bf16.mxu0 0
      %1054 = vmatpush2.bf16.msra.mxu0 %v893
      %1055 = vmatprep.subr.bf16.mxu0 0
      %1056 = vmatpush2.bf16.msra.mxu0 %v892
      %1057 = vmatprep.subr.bf16.mxu0 0
      %1058 = vmatpush2.bf16.msra.mxu0 %v891
      %1059 = vmatprep.mubr.bf16.mxu0 %v542
      %1060 = vmatmul.mubr.bf16.gmra.mxu0 %v541
      %v1061 = vpop.f32.mrf.mxu0
      %v1062 = vadd.f32 0.0, %v1061
      %v1063 = vpop.f32.mrf.mxu0
      %v1064 = vpop.f32.mrf.mxu0
      %v1065 = vadd.f32 0.0, %v1064
      %v1066 = vpop.f32.mrf.mxu0
      %1067 = vmatprep.mubr.bf16.mxu0 %v548
      %1068 = vmatmul.mubr.bf16.gmra.mxu0 %v547
      %v1069 = vpop.f32.mrf.mxu0
      %v1070 = vadd.f32 0.0, %v1069
      %v1071 = vpop.f32.mrf.mxu0
      %v1072 = vpop.f32.mrf.mxu0
      %v1073 = vadd.f32 0.0, %v1072
      %v1074 = vpop.f32.mrf.mxu0
      %1075 = vmatprep.mubr.bf16.mxu0 %v554
      %1076 = vmatmul.mubr.bf16.gmra.mxu0 %v553
      %v1077 = vpop.f32.mrf.mxu0
      %v1078 = vadd.f32 0.0, %v1077
      %v1079 = vpop.f32.mrf.mxu0
      %v1080 = vpop.f32.mrf.mxu0
      %v1081 = vadd.f32 0.0, %v1080
      %v1082 = vpop.f32.mrf.mxu0
      %1083 = vmatprep.mubr.bf16.mxu0 %v560
      %1084 = vmatmul.mubr.bf16.gmra.mxu0 %v559
      %v1085 = vpop.f32.mrf.mxu0
      %v1086 = vadd.f32 0.0, %v1085
      %v1087 = vpop.f32.mrf.mxu0
      %v1088 = vpop.f32.mrf.mxu0
      %v1089 = vadd.f32 0.0, %v1088
      %v1090 = vpop.f32.mrf.mxu0
      %1091 = vdwg.mxu0
      %1092 = vmatprep.subr.bf16.mxu0 0
      %1093 = vmatpush1.bf16.msra.mxu0 %v906
      %1094 = vmatprep.subr.bf16.mxu0 0
      %1095 = vmatpush1.bf16.msra.mxu0 %v905
      %1096 = vmatprep.subr.bf16.mxu0 0
      %1097 = vmatpush1.bf16.msra.mxu0 %v904
      %1098 = vmatprep.subr.bf16.mxu0 0
      %1099 = vmatpush1.bf16.msra.mxu0 %v903
      %1100 = vmatprep.subr.bf16.mxu0 0
      %1101 = vmatpush1.bf16.msra.mxu0 %v902
      %1102 = vmatprep.subr.bf16.mxu0 0
      %1103 = vmatpush1.bf16.msra.mxu0 %v901
      %1104 = vmatprep.subr.bf16.mxu0 0
      %1105 = vmatpush1.bf16.msra.mxu0 %v900
      %1106 = vmatprep.subr.bf16.mxu0 0
      %1107 = vmatpush1.bf16.msra.mxu0 %v899
      %1108 = vmatprep.subr.bf16.mxu0 0
      %1109 = vmatpush2.bf16.msra.mxu0 %v914
      %1110 = vmatprep.subr.bf16.mxu0 0
      %1111 = vmatpush2.bf16.msra.mxu0 %v913
      %1112 = vmatprep.subr.bf16.mxu0 0
      %1113 = vmatpush2.bf16.msra.mxu0 %v912
      %1114 = vmatprep.subr.bf16.mxu0 0
      %1115 = vmatpush2.bf16.msra.mxu0 %v911
      %1116 = vmatprep.subr.bf16.mxu0 0
      %1117 = vmatpush2.bf16.msra.mxu0 %v910
      %1118 = vmatprep.subr.bf16.mxu0 0
      %1119 = vmatpush2.bf16.msra.mxu0 %v909
      %1120 = vmatprep.subr.bf16.mxu0 0
      %1121 = vmatpush2.bf16.msra.mxu0 %v908
      %1122 = vmatprep.subr.bf16.mxu0 0
      %1123 = vmatpush2.bf16.msra.mxu0 %v907
      %1124 = vmatprep.mubr.bf16.mxu0 %v544
      %1125 = vmatmul.mubr.bf16.gmra.mxu0 %v543
      %v1126 = vpop.f32.mrf.mxu0
      %v1127 = vadd.f32 %v1062, %v1126
      %v1128 = vpop.f32.mrf.mxu0
      %v1129 = vpop.f32.mrf.mxu0
      %v1130 = vadd.f32 %v1065, %v1129
      %v1131 = vpop.f32.mrf.mxu0
      %1132 = vmatprep.mubr.bf16.mxu0 %v550
      %1133 = vmatmul.mubr.bf16.gmra.mxu0 %v549
      %v1134 = vpop.f32.mrf.mxu0
      %v1135 = vadd.f32 %v1070, %v1134
      %v1136 = vpop.f32.mrf.mxu0
      %v1137 = vpop.f32.mrf.mxu0
      %v1138 = vadd.f32 %v1073, %v1137
      %v1139 = vpop.f32.mrf.mxu0
      %1140 = vmatprep.mubr.bf16.mxu0 %v556
      %1141 = vmatmul.mubr.bf16.gmra.mxu0 %v555
      %v1142 = vpop.f32.mrf.mxu0
      %v1143 = vadd.f32 %v1078, %v1142
      %v1144 = vpop.f32.mrf.mxu0
      %v1145 = vpop.f32.mrf.mxu0
      %v1146 = vadd.f32 %v1081, %v1145
      %v1147 = vpop.f32.mrf.mxu0
      %1148 = vmatprep.mubr.bf16.mxu0 %v562
      %1149 = vmatmul.mubr.bf16.gmra.mxu0 %v561
      %v1150 = vpop.f32.mrf.mxu0
      %v1151 = vadd.f32 %v1086, %v1150
      %v1152 = vpop.f32.mrf.mxu0
      %v1153 = vpop.f32.mrf.mxu0
      %v1154 = vadd.f32 %v1089, %v1153
      %v1155 = vpop.f32.mrf.mxu0
      %1156 = vdwg.mxu0
      %1157 = vmatprep.subr.bf16.mxu0 0
      %1158 = vmatpush1.bf16.msra.mxu0 %v922
      %1159 = vmatprep.subr.bf16.mxu0 0
      %1160 = vmatpush1.bf16.msra.mxu0 %v921
      %1161 = vmatprep.subr.bf16.mxu0 0
      %1162 = vmatpush1.bf16.msra.mxu0 %v920
      %1163 = vmatprep.subr.bf16.mxu0 0
      %1164 = vmatpush1.bf16.msra.mxu0 %v919
      %1165 = vmatprep.subr.bf16.mxu0 0
      %1166 = vmatpush1.bf16.msra.mxu0 %v918
      %1167 = vmatprep.subr.bf16.mxu0 0
      %1168 = vmatpush1.bf16.msra.mxu0 %v917
      %1169 = vmatprep.subr.bf16.mxu0 0
      %1170 = vmatpush1.bf16.msra.mxu0 %v916
      %1171 = vmatprep.subr.bf16.mxu0 0
      %1172 = vmatpush1.bf16.msra.mxu0 %v915
      %1173 = vmatprep.subr.bf16.mxu0 0
      %1174 = vmatpush2.bf16.msra.mxu0 %v930
      %1175 = vmatprep.subr.bf16.mxu0 0
      %1176 = vmatpush2.bf16.msra.mxu0 %v929
      %1177 = vmatprep.subr.bf16.mxu0 0
      %1178 = vmatpush2.bf16.msra.mxu0 %v928
      %1179 = vmatprep.subr.bf16.mxu0 0
      %1180 = vmatpush2.bf16.msra.mxu0 %v927
      %1181 = vmatprep.subr.bf16.mxu0 0
      %1182 = vmatpush2.bf16.msra.mxu0 %v926
      %1183 = vmatprep.subr.bf16.mxu0 0
      %1184 = vmatpush2.bf16.msra.mxu0 %v925
      %1185 = vmatprep.subr.bf16.mxu0 0
      %1186 = vmatpush2.bf16.msra.mxu0 %v924
      %1187 = vmatprep.subr.bf16.mxu0 0
      %1188 = vmatpush2.bf16.msra.mxu0 %v923
      %1189 = vmatprep.mubr.bf16.mxu0 %v546
      %1190 = vmatmul.mubr.bf16.gmra.mxu0 %v545
      %v1191 = vpop.f32.mrf.mxu0
      %v1192 = vadd.f32 %v1127, %v1191
      %v1193 = vpop.f32.mrf.mxu0
      %v1194 = vpop.f32.mrf.mxu0
      %v1195 = vadd.f32 %v1130, %v1194
      %v1196 = vpop.f32.mrf.mxu0
      %1197 = vmatprep.mubr.bf16.mxu0 %v552
      %1198 = vmatmul.mubr.bf16.gmra.mxu0 %v551
      %v1199 = vpop.f32.mrf.mxu0
      %v1200 = vadd.f32 %v1135, %v1199
      %v1201 = vpop.f32.mrf.mxu0
      %v1202 = vpop.f32.mrf.mxu0
      %v1203 = vadd.f32 %v1138, %v1202
      %v1204 = vpop.f32.mrf.mxu0
      %1205 = vmatprep.mubr.bf16.mxu0 %v558
      %1206 = vmatmul.mubr.bf16.gmra.mxu0 %v557
      %v1207 = vpop.f32.mrf.mxu0
      %v1208 = vadd.f32 %v1143, %v1207
      %v1209 = vpop.f32.mrf.mxu0
      %v1210 = vpop.f32.mrf.mxu0
      %v1211 = vadd.f32 %v1146, %v1210
      %v1212 = vpop.f32.mrf.mxu0
      %1213 = vmatprep.mubr.bf16.mxu0 %v564
      %1214 = vmatmul.mubr.bf16.gmra.mxu0 %v563
      %v1215 = vpop.f32.mrf.mxu0
      %v1216 = vadd.f32 %v1151, %v1215
      %v1217 = vpop.f32.mrf.mxu0
      %v1218 = vpop.f32.mrf.mxu0
      %v1219 = vadd.f32 %v1154, %v1218
      %v1220 = vpop.f32.mrf.mxu0
      %1221 = vdwg.mxu0
      %1222 = vmatprep.subr.bf16.mxu0 0
      %1223 = vmatpush1.bf16.msra.mxu0 %v938
      %1224 = vmatprep.subr.bf16.mxu0 0
      %1225 = vmatpush1.bf16.msra.mxu0 %v937
      %1226 = vmatprep.subr.bf16.mxu0 0
      %1227 = vmatpush1.bf16.msra.mxu0 %v936
      %1228 = vmatprep.subr.bf16.mxu0 0
      %1229 = vmatpush1.bf16.msra.mxu0 %v935
      %1230 = vmatprep.subr.bf16.mxu0 0
      %1231 = vmatpush1.bf16.msra.mxu0 %v934
      %1232 = vmatprep.subr.bf16.mxu0 0
      %1233 = vmatpush1.bf16.msra.mxu0 %v933
      %1234 = vmatprep.subr.bf16.mxu0 0
      %1235 = vmatpush1.bf16.msra.mxu0 %v932
      %1236 = vmatprep.subr.bf16.mxu0 0
      %1237 = vmatpush1.bf16.msra.mxu0 %v931
      %1238 = vmatprep.subr.bf16.mxu0 0
      %1239 = vmatpush2.bf16.msra.mxu0 %v946
      %1240 = vmatprep.subr.bf16.mxu0 0
      %1241 = vmatpush2.bf16.msra.mxu0 %v945
      %1242 = vmatprep.subr.bf16.mxu0 0
      %1243 = vmatpush2.bf16.msra.mxu0 %v944
      %1244 = vmatprep.subr.bf16.mxu0 0
      %1245 = vmatpush2.bf16.msra.mxu0 %v943
      %1246 = vmatprep.subr.bf16.mxu0 0
      %1247 = vmatpush2.bf16.msra.mxu0 %v942
      %1248 = vmatprep.subr.bf16.mxu0 0
      %1249 = vmatpush2.bf16.msra.mxu0 %v941
      %1250 = vmatprep.subr.bf16.mxu0 0
      %1251 = vmatpush2.bf16.msra.mxu0 %v940
      %1252 = vmatprep.subr.bf16.mxu0 0
      %1253 = vmatpush2.bf16.msra.mxu0 %v939
      %1254 = vmatprep.mubr.bf16.mxu0 %v548
      %1255 = vmatmul.mubr.bf16.gmra.mxu0 %v547
      %v1256 = vpop.f32.mrf.mxu0
      %v1257 = vadd.f32 %v1192, %v1256
      %v1258 = vpop.f32.mrf.mxu0
      %v1259 = vpop.f32.mrf.mxu0
      %v1260 = vadd.f32 %v1195, %v1259
      %v1261 = vpop.f32.mrf.mxu0
      %1262 = vmatprep.mubr.bf16.mxu0 %v554
      %1263 = vmatmul.mubr.bf16.gmra.mxu0 %v553
      %v1264 = vpop.f32.mrf.mxu0
      %v1265 = vadd.f32 %v1200, %v1264
      %v1266 = vpop.f32.mrf.mxu0
      %v1267 = vpop.f32.mrf.mxu0
      %v1268 = vadd.f32 %v1203, %v1267
      %v1269 = vpop.f32.mrf.mxu0
      %1270 = vmatprep.mubr.bf16.mxu0 %v560
      %1271 = vmatmul.mubr.bf16.gmra.mxu0 %v559
      %v1272 = vpop.f32.mrf.mxu0
      %v1273 = vadd.f32 %v1208, %v1272
      %v1274 = vpop.f32.mrf.mxu0
      %v1275 = vpop.f32.mrf.mxu0
      %v1276 = vadd.f32 %v1211, %v1275
      %v1277 = vpop.f32.mrf.mxu0
      %1278 = vmatprep.mubr.bf16.mxu0 %v566
      %1279 = vmatmul.mubr.bf16.gmra.mxu0 %v565
      %v1280 = vpop.f32.mrf.mxu0
      %v1281 = vadd.f32 %v1216, %v1280
      %v1282 = vpop.f32.mrf.mxu0
      %v1283 = vpop.f32.mrf.mxu0
      %v1284 = vadd.f32 %v1219, %v1283
      %v1285 = vpop.f32.mrf.mxu0
      %1286 = vdwg.mxu0
      %1287 = vmatprep.subr.bf16.mxu0 0
      %1288 = vmatpush1.bf16.msra.mxu0 %v954
      %1289 = vmatprep.subr.bf16.mxu0 0
      %1290 = vmatpush1.bf16.msra.mxu0 %v953
      %1291 = vmatprep.subr.bf16.mxu0 0
      %1292 = vmatpush1.bf16.msra.mxu0 %v952
      %1293 = vmatprep.subr.bf16.mxu0 0
      %1294 = vmatpush1.bf16.msra.mxu0 %v951
      %1295 = vmatprep.subr.bf16.mxu0 0
      %1296 = vmatpush1.bf16.msra.mxu0 %v950
      %1297 = vmatprep.subr.bf16.mxu0 0
      %1298 = vmatpush1.bf16.msra.mxu0 %v949
      %1299 = vmatprep.subr.bf16.mxu0 0
      %1300 = vmatpush1.bf16.msra.mxu0 %v948
      %1301 = vmatprep.subr.bf16.mxu0 0
      %1302 = vmatpush1.bf16.msra.mxu0 %v947
      %1303 = vmatprep.subr.bf16.mxu0 0
      %1304 = vmatpush2.bf16.msra.mxu0 0
      %1305 = vmatprep.subr.bf16.mxu0 0
      %1306 = vmatpush2.bf16.msra.mxu0 0
      %1307 = vmatprep.subr.bf16.mxu0 0
      %1308 = vmatpush2.bf16.msra.mxu0 0
      %1309 = vmatprep.subr.bf16.mxu0 0
      %1310 = vmatpush2.bf16.msra.mxu0 0
      %1311 = vmatprep.subr.bf16.mxu0 0
      %1312 = vmatpush2.bf16.msra.mxu0 0
      %1313 = vmatprep.subr.bf16.mxu0 0
      %1314 = vmatpush2.bf16.msra.mxu0 0
      %1315 = vmatprep.subr.bf16.mxu0 0
      %1316 = vmatpush2.bf16.msra.mxu0 0
      %1317 = vmatprep.subr.bf16.mxu0 0
      %1318 = vmatpush2.bf16.msra.mxu0 0
      %1319 = vmatprep.mubr.bf16.mxu0 0
      %1320 = vmatmul.mubr.bf16.gmra.mxu0 %v549
      %v1321 = vpop.f32.mrf.mxu0
      %v1322 = vadd.f32 %v1257, %v1321
      %v1323 = vpop.f32.mrf.mxu0
      %v1324 = vpop.f32.mrf.mxu0
      %v1325 = vadd.f32 %v1260, %v1324
      %v1326 = vpop.f32.mrf.mxu0
      %1327 = vmatprep.mubr.bf16.mxu0 0
      %1328 = vmatmul.mubr.bf16.gmra.mxu0 %v555
      %v1329 = vpop.f32.mrf.mxu0
      %v1330 = vadd.f32 %v1265, %v1329
      %v1331 = vpop.f32.mrf.mxu0
      %v1332 = vpop.f32.mrf.mxu0
      %v1333 = vadd.f32 %v1268, %v1332
      %v1334 = vpop.f32.mrf.mxu0
      %1335 = vmatprep.mubr.bf16.mxu0 0
      %1336 = vmatmul.mubr.bf16.gmra.mxu0 %v561
      %v1337 = vpop.f32.mrf.mxu0
      %v1338 = vadd.f32 %v1273, %v1337
      %v1339 = vpop.f32.mrf.mxu0
      %v1340 = vpop.f32.mrf.mxu0
      %v1341 = vadd.f32 %v1276, %v1340
      %v1342 = vpop.f32.mrf.mxu0
      %1343 = vmatprep.mubr.bf16.mxu0 0
      %1344 = vmatmul.mubr.bf16.gmra.mxu0 %v567
      %v1345 = vpop.f32.mrf.mxu0
      %v1346 = vadd.f32 %v1281, %v1345
      %v1347 = vpop.f32.mrf.mxu0
      %v1348 = vpop.f32.mrf.mxu0
      %v1349 = vadd.f32 %v1284, %v1348
      %v1350 = vpop.f32.mrf.mxu0
      %1351 = vdwg.mxu0
      %1352 = vst [vmem:[%s231] sm:$0xff] %v1322
      %1353 = vst [vmem:[%s231 + $0x8] sm:$0xff] %v1325
      %1354 = vst [vmem:[%s231 + $0x10] sm:$0xff] %v1330
      %1355 = vst [vmem:[%s231 + $0x18] sm:$0xff] %v1333
      %1356 = vst [vmem:[%s231 + $0x20] sm:$0xff] %v1338
      %1357 = vst [vmem:[%s231 + $0x28] sm:$0xff] %v1341
      %1358 = vst [vmem:[%s231 + $0x30] sm:$0xff] %v1346
      %1359 = vst [vmem:[%s231 + $0x38] sm:$0xff] %v1349
      %v1360 = vadd.f32 %v1322, %v1325
      %v1361 = vadd.f32 %v1360, %v1330
      %v1362 = vadd.f32 %v1361, %v1333
      %v1363 = vadd.f32 %v1362, %v1338
      %v1364 = vadd.f32 %v1363, %v1341
      %v1365 = vadd.f32 %v1364, %v1346
      %v1366 = vadd.f32 %v1365, %v1349
      %v1367 = vrot.slane %v1366, 4
      %v1368 = vadd.f32 %v1366, %v1367
      %v1369 = vrot.slane %v1368, 2
      %v1370 = vadd.f32 %v1368, %v1369
      %v1371 = vrot.slane %v1370, 1
      %v1372 = vadd.f32 %v1370, %v1371
      %v1373 = vmul.f32 %v1322, %v1322
      %v1374 = vmul.f32 %v1325, %v1325
      %v1375 = vmul.f32 %v1330, %v1330
      %v1376 = vmul.f32 %v1333, %v1333
      %v1377 = vmul.f32 %v1338, %v1338
      %v1378 = vmul.f32 %v1341, %v1341
      %v1379 = vmul.f32 %v1346, %v1346
      %v1380 = vmul.f32 %v1349, %v1349
      %v1381 = vadd.f32 %v1373, %v1374
      %v1382 = vadd.f32 %v1381, %v1375
      %v1383 = vadd.f32 %v1382, %v1376
      %v1384 = vadd.f32 %v1383, %v1377
      %v1385 = vadd.f32 %v1384, %v1378
      %v1386 = vadd.f32 %v1385, %v1379
      %v1387 = vadd.f32 %v1386, %v1380
      %v1388 = vrot.slane %v1387, 4
      %v1389 = vadd.f32 %v1387, %v1388
      %v1390 = vrot.slane %v1389, 2
      %v1391 = vadd.f32 %v1389, %v1390
      %v1392 = vrot.slane %v1391, 1
      %v1393 = vadd.f32 %v1391, %v1392
      %v1394 = vlaneseq
      %v1395 = vshrl.u32 %v1394, 7
      %vm1396 = vcmp.eq.s32.totalorder %v1395, 0
      %vm1397 = vcmp.eq.s32.totalorder %v1395, 1
      %v1398 = vsel %vm1397, %v1393, 0.0
      %v1399 = vsel %vm1396, %v1372, %v1398
      %1400 = vst [vmem:[%s235] sm:$0xff] %v1399
      %p1401 = scmp.lt.s32.totalorder %s17, 1
      %s1402 = scalar_select %p1401, %s17, 1
      %s1403 = smul.addr %s1402, 8
      %s1404 = smul.addr %s1403, 8
      %s1405 = scalar_lea.vmem %s4, %s1404
      %p1406 = scmp.lt.s32.totalorder %s17, 1
      %s1407 = scalar_select %p1406, %s17, 1
      %s1408 = smul.addr %s1407, 8
      %s1409 = scalar_lea.vmem %s5, %s1408
      // Predicated region
      $region37: #{bottleneck_forward.5} parent=35 // pred_check
        %p1410 = pneg %p124
      $region38: #{bottleneck_forward.5} parent=35 // pred_check_branch
        %1412 = sbr.rel (%p1410) target = $region40
      $region39: #{bottleneck_forward.5} parent=35 // pred_region
        _
      $region40: #{bottleneck_forward.5} parent=35 // pred_fallthru
        _
      // Predicated region
      $region41: #{bottleneck_forward.5} parent=35 // pred_check
        %p1413 = pneg %p150
      $region42: #{bottleneck_forward.5} parent=35 // pred_check_branch
        %1415 = sbr.rel (%p1413) target = $region44
      $region43: #{bottleneck_forward.5} parent=35 // pred_region
        _
      $region44: #{bottleneck_forward.5} parent=35 // pred_fallthru
        _
    $region36: #{bottleneck_forward.5} parent=5 // pred_fallthru
      _
    %p1416 = scmp.le.s32.totalorder 2, %s12
    // Predicated region
    $region45: #{bottleneck_forward.5} parent=5 // pred_check
      %p1417 = pneg %p1416
    $region46: #{bottleneck_forward.5} parent=5 // pred_check_branch
      %1419 = sbr.rel (%p1417) target = $region48
    $region47: #{bottleneck_forward.5} parent=5 // pred_region
      %s1420 = ssub.s32 %s12, 2
      // Predicated region
      $region49: #{bottleneck_forward.5} parent=47 // pred_check
        %p1421 = pneg %p130
      $region50: #{bottleneck_forward.5} parent=47 // pred_check_branch
        %1423 = sbr.rel (%p1421) target = $region52
      $region51: #{bottleneck_forward.5} parent=47 // pred_region
        %p1424 = scmp.lt.s32.totalorder %s18, 1
        %s1425 = scalar_select %p1424, %s18, 1
        %s1426 = smul.addr %s1425, 8
        %s1427 = smul.addr %s1426, 8
        %s1428 = scalar_lea.vmem %s4, %s1427
      $region52: #{bottleneck_forward.5} parent=47 // pred_fallthru
        _
      // Predicated region
      $region53: #{bottleneck_forward.5} parent=47 // pred_check
        %p1429 = pneg %p156
      $region54: #{bottleneck_forward.5} parent=47 // pred_check_branch
        %1431 = sbr.rel (%p1429) target = $region56
      $region55: #{bottleneck_forward.5} parent=47 // pred_region
        %p1432 = scmp.lt.s32.totalorder %s18, 1
        %s1433 = scalar_select %p1432, %s18, 1
        %s1434 = smul.addr %s1433, 8
        %s1435 = scalar_lea.vmem %s5, %s1434
      $region56: #{bottleneck_forward.5} parent=47 // pred_fallthru
        _
    $region48: #{bottleneck_forward.5} parent=5 // pred_fallthru
      _
  $region6: #{bottleneck_forward.5} parent=0 // loop_footer
    %s16 = sadd.s32 1, %s12
  $region7: #{bottleneck_forward.5} parent=0 // loop_footer_branch
    %11 = sbr.rel target = $region3
  $region8: #{bottleneck_forward.5} parent=0 // loop_exit
    _

// kernel: bottleneck_forward.7
$region0: #{bottleneck_forward.7}
  #allocation0 [shape = 'u32[]', space=smem, size = 0x4, offset = 0x4, fixed_abs, tag = 'smem constant byte address 0x4 - core index']
  #allocation1 [shape = 'u32[144,128]{1,0:T(1,128)}', space=vmem, size = 0x12000, scoped, tag = 'internal scratch']
  %s0 = inlined_call_operand.vmem [shape: f32[128,512], index: 0, kind: input, shape index: {}]
  %s1 = inlined_call_operand.vmem [shape: f32[128,512], index: 1, kind: input, shape index: {}]
  %s2 = inlined_call_operand.vmem [shape: f32[1,512], index: 2, kind: input, shape index: {}]
  %s3 = inlined_call_operand.vmem [shape: f32[1,512], index: 3, kind: input, shape index: {}]
  %s4 = inlined_call_operand.hbm [shape: f32[128,512], index: 4, kind: output, shape index: {}]
  %s5 = sld [smem:[#allocation0]]
  $region49: #{bottleneck_forward.7} parent=0
    _
  %s7 = ssub.s32 1, %s5
  %s8 = scalar_select 0, %s7, %s5
  $region1: #{bottleneck_forward.7} parent=0
    #allocation2 [shape = 'u8[262144]{0}', space=vmem, size = 0x40000, scoped, tag = 'output window, operand 0']
    #allocation3 [shape = 's32[2]{0}', space=sflag, size = 0x8, scoped, tag = 'scoped memory for bottleneck_forward.7']
    %9 = vsyncpa [#allocation3], 0
    %s10 = scalar_lea.sflag [#allocation3], 1
    %11 = vsyncpa %s10, 0
    loop: start=0, step=1, limit=4
    $region2: #{bottleneck_forward.7} parent=1 // loop_pre_header
      _
    $region3: #{bottleneck_forward.7} parent=1 // loop_header
      %s13 = sphi 0, %s17
      %p14 = scmp.ge.s32.totalorder %s13, 4
      %s23 = sphi 0, %s25
      %s26 = sphi 0, %s23
      %s27 = sphi 0, %s26
      %s43 = sphi 0, %s27
      %s49 = sphi 0, %s51
      %s52 = sphi 0, %s49
      %s53 = sphi 0, %s52
      %s69 = sphi 0, %s53
      %s73 = sphi 0, %s73
      %s75 = sphi 0, %s73
      %s76 = sphi 0, %s75
      %s90 = sphi 0, %s76
      %s94 = sphi 0, %s94
      %s96 = sphi 0, %s94
      %s97 = sphi 0, %s96
      %s111 = sphi 0, %s97
      %s117 = sphi 0, %s119
      %s120 = sphi 0, %s117
      %s121 = sphi 0, %s120
      %s137 = sphi 0, %s121
    $region4: #{bottleneck_forward.7} parent=1 // loop_header_branch
      %16 = sbr.rel (%p14) target = $region8
    $region5: #{bottleneck_forward.7} parent=1 // loop_body
      %s18 = ssub.s32 %s13, 1
      %s19 = ssub.s32 %s13, 2
      %s20 = sadd.s32 %s13, 1
      %s21 = ssub.s32 %s13, %s20
      %p22 = scmp.eq.s32.totalorder %s21, 0
      %s24 = sadd.s32 %s23, 1
      %s25 = scalar_select %p22, %s23, %s24
      %p28 = pneg %p22
      %p29 = scmp.eq.s32.totalorder %s13, 1
      %p30 = por %p28, %p29
      %p31 = scmp.ne.s32.totalorder %s23, %s26
      %p32 = scmp.eq.s32.totalorder %s13, 0
      %p33 = por %p31, %p32
      %p34 = scmp.ne.s32.totalorder %s23, %s26
      %p35 = scmp.eq.s32.totalorder %s18, 1
      %p36 = por %p34, %p35
      %p37 = scmp.ne.s32.totalorder %s26, %s27
      %p38 = scmp.eq.s32.totalorder %s18, 0
      %p39 = por %p37, %p38
      %p40 = scmp.ne.s32.totalorder %s26, %s27
      %p41 = scmp.eq.s32.totalorder %s19, 1
      %p42 = por %p40, %p41
      %p44 = scmp.ne.s32.totalorder %s27, %s43
      %p45 = scmp.eq.s32.totalorder %s19, 0
      %p46 = por %p44, %p45
      %s47 = ssub.s32 %s13, %s20
      %p48 = scmp.eq.s32.totalorder %s47, 0
      %s50 = sadd.s32 %s49, 1
      %s51 = scalar_select %p48, %s49, %s50
      %p54 = pneg %p48
      %p55 = scmp.eq.s32.totalorder %s13, 1
      %p56 = por %p54, %p55
      %p57 = scmp.ne.s32.totalorder %s49, %s52
      %p58 = scmp.eq.s32.totalorder %s13, 0
      %p59 = por %p57, %p58
      %p60 = scmp.ne.s32.totalorder %s49, %s52
      %p61 = scmp.eq.s32.totalorder %s18, 1
      %p62 = por %p60, %p61
      %p63 = scmp.ne.s32.totalorder %s52, %s53
      %p64 = scmp.eq.s32.totalorder %s18, 0
      %p65 = por %p63, %p64
      %p66 = scmp.ne.s32.totalorder %s52, %s53
      %p67 = scmp.eq.s32.totalorder %s19, 1
      %p68 = por %p66, %p67
      %p70 = scmp.ne.s32.totalorder %s53, %s69
      %p71 = scmp.eq.s32.totalorder %s19, 0
      %p72 = por %p70, %p71
      %s74 = sadd.s32 %s73, 1
      %p77 = scmp.eq.s32.totalorder %s13, 1
      %p78 = scmp.ne.s32.totalorder %s73, %s75
      %p79 = scmp.eq.s32.totalorder %s13, 0
      %p80 = por %p78, %p79
      %p81 = scmp.ne.s32.totalorder %s73, %s75
      %p82 = scmp.eq.s32.totalorder %s18, 1
      %p83 = por %p81, %p82
      %p84 = scmp.ne.s32.totalorder %s75, %s76
      %p85 = scmp.eq.s32.totalorder %s18, 0
      %p86 = por %p84, %p85
      %p87 = scmp.ne.s32.totalorder %s75, %s76
      %p88 = scmp.eq.s32.totalorder %s19, 1
      %p89 = por %p87, %p88
      %p91 = scmp.ne.s32.totalorder %s76, %s90
      %p92 = scmp.eq.s32.totalorder %s19, 0
      %p93 = por %p91, %p92
      %s95 = sadd.s32 %s94, 1
      %p98 = scmp.eq.s32.totalorder %s13, 1
      %p99 = scmp.ne.s32.totalorder %s94, %s96
      %p100 = scmp.eq.s32.totalorder %s13, 0
      %p101 = por %p99, %p100
      %p102 = scmp.ne.s32.totalorder %s94, %s96
      %p103 = scmp.eq.s32.totalorder %s18, 1
      %p104 = por %p102, %p103
      %p105 = scmp.ne.s32.totalorder %s96, %s97
      %p106 = scmp.eq.s32.totalorder %s18, 0
      %p107 = por %p105, %p106
      %p108 = scmp.ne.s32.totalorder %s96, %s97
      %p109 = scmp.eq.s32.totalorder %s19, 1
      %p110 = por %p108, %p109
      %p112 = scmp.ne.s32.totalorder %s97, %s111
      %p113 = scmp.eq.s32.totalorder %s19, 0
      %p114 = por %p112, %p113
      %s115 = ssub.s32 %s13, %s20
      %p116 = scmp.eq.s32.totalorder %s115, 0
      %s118 = sadd.s32 %s117, 1
      %s119 = scalar_select %p116, %s117, %s118
      %p122 = pneg %p116
      %p123 = scmp.eq.s32.totalorder %s13, 1
      %p124 = por %p122, %p123
      %p125 = scmp.ne.s32.totalorder %s117, %s120
      %p126 = scmp.eq.s32.totalorder %s13, 0
      %p127 = por %p125, %p126
      %p128 = scmp.ne.s32.totalorder %s117, %s120
      %p129 = scmp.eq.s32.totalorder %s18, 1
      %p130 = por %p128, %p129
      %p131 = scmp.ne.s32.totalorder %s120, %s121
      %p132 = scmp.eq.s32.totalorder %s18, 0
      %p133 = por %p131, %p132
      %p134 = scmp.ne.s32.totalorder %s120, %s121
      %p135 = scmp.eq.s32.totalorder %s19, 1
      %p136 = por %p134, %p135
      %p138 = scmp.ne.s32.totalorder %s121, %s137
      %p139 = scmp.eq.s32.totalorder %s19, 0
      %p140 = por %p138, %p139
      %p141 = scmp.le.s32.totalorder 1, %s13
      %p142 = scmp.lt.s32.totalorder %s13, 3
      %p143 = pnand %p141, %p142
      %p144 = pneg %p143
      // Predicated region
      $region9: #{bottleneck_forward.7} parent=5 // pred_check
        _
      $region10: #{bottleneck_forward.7} parent=5 // pred_check_branch
        %146 = sbr.rel (%p143) target = $region12
      $region11: #{bottleneck_forward.7} parent=5 // pred_region
        %s147 = ssub.s32 %s13, 1
        // Predicated region
        $region13: #{bottleneck_forward.7} parent=11 // pred_check
          %p148 = pneg %p86
        $region14: #{bottleneck_forward.7} parent=11 // pred_check_branch
          %150 = sbr.rel (%p148) target = $region16
        $region15: #{bottleneck_forward.7} parent=11 // pred_region
          _
        $region16: #{bottleneck_forward.7} parent=11 // pred_fallthru
          _
        // Predicated region
        $region17: #{bottleneck_forward.7} parent=11 // pred_check
          %p151 = pneg %p107
        $region18: #{bottleneck_forward.7} parent=11 // pred_check_branch
          %153 = sbr.rel (%p151) target = $region20
        $region19: #{bottleneck_forward.7} parent=11 // pred_region
          _
        $region20: #{bottleneck_forward.7} parent=11 // pred_fallthru
          _
      $region12: #{bottleneck_forward.7} parent=5 // pred_fallthru
        _
      %p154 = scmp.lt.s32.totalorder %s13, 2
      // Predicated region
      $region21: #{bottleneck_forward.7} parent=5 // pred_check
        %p155 = pneg %p154
      $region22: #{bottleneck_forward.7} parent=5 // pred_check_branch
        %157 = sbr.rel (%p155) target = $region24
      $region23: #{bottleneck_forward.7} parent=5 // pred_region
        // Predicated region
        $region25: #{bottleneck_forward.7} parent=23 // pred_check
          %p158 = pneg %p33
        $region26: #{bottleneck_forward.7} parent=23 // pred_check_branch
          %160 = sbr.rel (%p158) target = $region28
        $region27: #{bottleneck_forward.7} parent=23 // pred_region
          %s161 = smul.u32 8, %s13
          %p162 = scmp.lt.s32.totalorder %s161, 15
          %s163 = scalar_select %p162, %s161, 15
          %s164 = smul.addr %s163, 4
          %s165 = smul.addr %s164, 8
          %s166 = scalar_lea.vmem %s0, %s165
          %s167 = smul.u32 8, %s13
        $region28: #{bottleneck_forward.7} parent=23 // pred_fallthru
          _
        // Predicated region
        $region29: #{bottleneck_forward.7} parent=23 // pred_check
          %p168 = pneg %p59
        $region30: #{bottleneck_forward.7} parent=23 // pred_check_branch
          %170 = sbr.rel (%p168) target = $region32
        $region31: #{bottleneck_forward.7} parent=23 // pred_region
          %s171 = smul.u32 8, %s13
          %p172 = scmp.lt.s32.totalorder %s171, 15
          %s173 = scalar_select %p172, %s171, 15
          %s174 = smul.addr %s173, 4
          %s175 = smul.addr %s174, 8
          %s176 = scalar_lea.vmem %s1, %s175
          %s177 = smul.u32 8, %s13
        $region32: #{bottleneck_forward.7} parent=23 // pred_fallthru
          _
      $region24: #{bottleneck_forward.7} parent=5 // pred_fallthru
        _
      %p178 = scmp.le.s32.totalorder 1, %s13
      %p179 = scmp.lt.s32.totalorder %s13, 3
      %p180 = pnand %p178, %p179
      %p181 = pneg %p180
      // Predicated region
      $region33: #{bottleneck_forward.7} parent=5 // pred_check
        _
      $region34: #{bottleneck_forward.7} parent=5 // pred_check_branch
        %183 = sbr.rel (%p180) target = $region36
      $region35: #{bottleneck_forward.7} parent=5 // pred_region
        %s184 = ssub.s32 %s13, 1
        %s185 = smul.u32 8, %s18
        %p186 = scmp.lt.s32.totalorder %s185, 15
        %s187 = scalar_select %p186, %s185, 15
        %s188 = smul.addr %s187, 4
        %s189 = smul.addr %s188, 8
        %s190 = scalar_lea.vmem %s0, %s189
        %p191 = pneg %p39
        %p192 = pneg %p36
        %s193 = smul.u32 8, %s18
        %p194 = scmp.lt.s32.totalorder %s193, 15
        %s195 = scalar_select %p194, %s193, 15
        %s196 = smul.addr %s195, 4
        %s197 = smul.addr %s196, 8
        %s198 = scalar_lea.vmem %s1, %s197
        %p199 = pneg %p65
        %p200 = pneg %p62
        %p201 = pneg %p86
        %p202 = pneg %p83
        %p203 = pneg %p107
        %p204 = pneg %p104
        %p205 = pneg %p133
        %p206 = pneg %p130
        %s207 = sand.u32 %s120, 1
        %s208 = scalar_lea.sflag [#allocation3], %s207
        %s209 = sand.u32 %s120, 1
        %s210 = smul.addr %s209, 256
        %s211 = scalar_lea.vmem [#allocation2], %s210
        %s212 = smul.u32 8, %s18
        %p213 = scmp.lt.s32.totalorder %s212, 15
        %s214 = scalar_select %p213, %s212, 15
        %s215 = smul.addr %s214, 4
        %s216 = smul.addr %s215, 8
        %s217 = scalar_lea.vmem %s0, %s216
        %s218 = smul.u32 8, %s18
        %s219 = smul.u32 8, %s18
        %p220 = scmp.lt.s32.totalorder %s219, 15
        %s221 = scalar_select %p220, %s219, 15
        %s222 = smul.addr %s221, 4
        %s223 = smul.addr %s222, 8
        %s224 = scalar_lea.vmem %s1, %s223
        %s225 = smul.u32 8, %s18
        %s226 = smul.u32 8, %s18
        %v227 = vld [vmem:[%s217] sm:$0xff]
        %v228 = vld [vmem:[%s217 + $0x8] sm:$0xff]
        %v229 = vld [vmem:[%s217 + $0x10] sm:$0xff]
        %v230 = vld [vmem:[%s217 + $0x18] sm:$0xff]
        %v231 = vld [vmem:[%s217 + $0x20] sm:$0xff]
        %v232 = vld [vmem:[%s217 + $0x28] sm:$0xff]
        %v233 = vld [vmem:[%s217 + $0x30] sm:$0xff]
        %v234 = vld [vmem:[%s217 + $0x38] sm:$0xff]
        %v235 = vld [vmem:[%s217 + $0x40] sm:$0xff]
        %v236 = vld [vmem:[%s217 + $0x48] sm:$0xff]
        %v237 = vld [vmem:[%s217 + $0x50] sm:$0xff]
        %v238 = vld [vmem:[%s217 + $0x58] sm:$0xff]
        %v239 = vld [vmem:[%s217 + $0x60] sm:$0xff]
        %v240 = vld [vmem:[%s217 + $0x68] sm:$0xff]
        %v241 = vld [vmem:[%s217 + $0x70] sm:$0xff]
        %v242 = vld [vmem:[%s217 + $0x78] sm:$0xff]
        %v243 = vld [vmem:[%s217 + $0x80] sm:$0xff]
        %v244 = vld [vmem:[%s217 + $0x88] sm:$0xff]
        %v245 = vld [vmem:[%s217 + $0x90] sm:$0xff]
        %v246 = vld [vmem:[%s217 + $0x98] sm:$0xff]
        %v247 = vld [vmem:[%s217 + $0xa0] sm:$0xff]
        %v248 = vld [vmem:[%s217 + $0xa8] sm:$0xff]
        %v249 = vld [vmem:[%s217 + $0xb0] sm:$0xff]
        %v250 = vld [vmem:[%s217 + $0xb8] sm:$0xff]
        %v251 = vld [vmem:[%s217 + $0xc0] sm:$0xff]
        %v252 = vld [vmem:[%s217 + $0xc8] sm:$0xff]
        %v253 = vld [vmem:[%s217 + $0xd0] sm:$0xff]
        %v254 = vld [vmem:[%s217 + $0xd8] sm:$0xff]
        %v255 = vld [vmem:[%s217 + $0xe0] sm:$0xff]
        %v256 = vld [vmem:[%s217 + $0xe8] sm:$0xff]
        %v257 = vld [vmem:[%s217 + $0xf0] sm:$0xff]
        %v258 = vld [vmem:[%s217 + $0xf8] sm:$0xff]
        %v259 = vld [vmem:[%s2] sm:$0xf]
        %v261 = vlaneseq
        %v262 = vshrl.u32 %v261, 7
        %v263 = vsub.s32 0, %v262
        %v264 = vrot.slane %v259, %v263
        %v265 = vlaneseq
        %v266 = vshrl.u32 %v265, 7
        %v267 = vsub.s32 1, %v266
        %v268 = vrot.slane %v259, %v267
        %v269 = vlaneseq
        %v270 = vshrl.u32 %v269, 7
        %v271 = vsub.s32 2, %v270
        %v272 = vrot.slane %v259, %v271
        %v273 = vlaneseq
        %v274 = vshrl.u32 %v273, 7
        %v275 = vsub.s32 3, %v274
        %v276 = vrot.slane %v259, %v275
        %v281 = vmul.f32 %v227, %v264
        %v282 = vmul.f32 %v228, %v268
        %v283 = vmul.f32 %v229, %v272
        %v284 = vmul.f32 %v230, %v276
        %v285 = vmul.f32 %v231, %v264
        %v286 = vmul.f32 %v232, %v268
        %v287 = vmul.f32 %v233, %v272
        %v288 = vmul.f32 %v234, %v276
        %v289 = vmul.f32 %v235, %v264
        %v290 = vmul.f32 %v236, %v268
        %v291 = vmul.f32 %v237, %v272
        %v292 = vmul.f32 %v238, %v276
        %v293 = vmul.f32 %v239, %v264
        %v294 = vmul.f32 %v240, %v268
        %v295 = vmul.f32 %v241, %v272
        %v296 = vmul.f32 %v242, %v276
        %v297 = vmul.f32 %v243, %v264
        %v298 = vmul.f32 %v244, %v268
        %v299 = vmul.f32 %v245, %v272
        %v300 = vmul.f32 %v246, %v276
        %v301 = vmul.f32 %v247, %v264
        %v302 = vmul.f32 %v248, %v268
        %v303 = vmul.f32 %v249, %v272
        %v304 = vmul.f32 %v250, %v276
        %v305 = vmul.f32 %v251, %v264
        %v306 = vmul.f32 %v252, %v268
        %v307 = vmul.f32 %v253, %v272
        %v308 = vmul.f32 %v254, %v276
        %v309 = vmul.f32 %v255, %v264
        %v310 = vmul.f32 %v256, %v268
        %v311 = vmul.f32 %v257, %v272
        %v312 = vmul.f32 %v258, %v276
        %v313 = vld [vmem:[%s3] sm:$0xf]
        %v315 = vlaneseq
        %v316 = vshrl.u32 %v315, 7
        %v317 = vsub.s32 0, %v316
        %v318 = vrot.slane %v313, %v317
        %v319 = vlaneseq
        %v320 = vshrl.u32 %v319, 7
        %v321 = vsub.s32 1, %v320
        %v322 = vrot.slane %v313, %v321
        %v323 = vlaneseq
        %v324 = vshrl.u32 %v323, 7
        %v325 = vsub.s32 2, %v324
        %v326 = vrot.slane %v313, %v325
        %v327 = vlaneseq
        %v328 = vshrl.u32 %v327, 7
        %v329 = vsub.s32 3, %v328
        %v330 = vrot.slane %v313, %v329
        %v335 = vadd.f32 %v281, %v318
        %v336 = vadd.f32 %v282, %v322
        %v337 = vadd.f32 %v283, %v326
        %v338 = vadd.f32 %v284, %v330
        %v339 = vadd.f32 %v285, %v318
        %v340 = vadd.f32 %v286, %v322
        %v341 = vadd.f32 %v287, %v326
        %v342 = vadd.f32 %v288, %v330
        %v343 = vadd.f32 %v289, %v318
        %v344 = vadd.f32 %v290, %v322
        %v345 = vadd.f32 %v291, %v326
        %v346 = vadd.f32 %v292, %v330
        %v347 = vadd.f32 %v293, %v318
        %v348 = vadd.f32 %v294, %v322
        %v349 = vadd.f32 %v295, %v326
        %v350 = vadd.f32 %v296, %v330
        %v351 = vadd.f32 %v297, %v318
        %v352 = vadd.f32 %v298, %v322
        %v353 = vadd.f32 %v299, %v326
        %v354 = vadd.f32 %v300, %v330
        %v355 = vadd.f32 %v301, %v318
        %v356 = vadd.f32 %v302, %v322
        %v357 = vadd.f32 %v303, %v326
        %v358 = vadd.f32 %v304, %v330
        %v359 = vadd.f32 %v305, %v318
        %v360 = vadd.f32 %v306, %v322
        %v361 = vadd.f32 %v307, %v326
        %v362 = vadd.f32 %v308, %v330
        %v363 = vadd.f32 %v309, %v318
        %v364 = vadd.f32 %v310, %v322
        %v365 = vadd.f32 %v311, %v326
        %v366 = vadd.f32 %v312, %v330
        %v367 = vld [vmem:[%s224] sm:$0xff]
        %v368 = vld [vmem:[%s224 + $0x8] sm:$0xff]
        %v369 = vld [vmem:[%s224 + $0x10] sm:$0xff]
        %v370 = vld [vmem:[%s224 + $0x18] sm:$0xff]
        %v371 = vld [vmem:[%s224 + $0x20] sm:$0xff]
        %v372 = vld [vmem:[%s224 + $0x28] sm:$0xff]
        %v373 = vld [vmem:[%s224 + $0x30] sm:$0xff]
        %v374 = vld [vmem:[%s224 + $0x38] sm:$0xff]
        %v375 = vld [vmem:[%s224 + $0x40] sm:$0xff]
        %v376 = vld [vmem:[%s224 + $0x48] sm:$0xff]
        %v377 = vld [vmem:[%s224 + $0x50] sm:$0xff]
        %v378 = vld [vmem:[%s224 + $0x58] sm:$0xff]
        %v379 = vld [vmem:[%s224 + $0x60] sm:$0xff]
        %v380 = vld [vmem:[%s224 + $0x68] sm:$0xff]
        %v381 = vld [vmem:[%s224 + $0x70] sm:$0xff]
        %v382 = vld [vmem:[%s224 + $0x78] sm:$0xff]
        %v383 = vld [vmem:[%s224 + $0x80] sm:$0xff]
        %v384 = vld [vmem:[%s224 + $0x88] sm:$0xff]
        %v385 = vld [vmem:[%s224 + $0x90] sm:$0xff]
        %v386 = vld [vmem:[%s224 + $0x98] sm:$0xff]
        %v387 = vld [vmem:[%s224 + $0xa0] sm:$0xff]
        %v388 = vld [vmem:[%s224 + $0xa8] sm:$0xff]
        %v389 = vld [vmem:[%s224 + $0xb0] sm:$0xff]
        %v390 = vld [vmem:[%s224 + $0xb8] sm:$0xff]
        %v391 = vld [vmem:[%s224 + $0xc0] sm:$0xff]
        %v392 = vld [vmem:[%s224 + $0xc8] sm:$0xff]
        %v393 = vld [vmem:[%s224 + $0xd0] sm:$0xff]
        %v394 = vld [vmem:[%s224 + $0xd8] sm:$0xff]
        %v395 = vld [vmem:[%s224 + $0xe0] sm:$0xff]
        %v396 = vld [vmem:[%s224 + $0xe8] sm:$0xff]
        %v397 = vld [vmem:[%s224 + $0xf0] sm:$0xff]
        %v398 = vld [vmem:[%s224 + $0xf8] sm:$0xff]
        %v399 = vadd.f32 %v335, %v367
        %v400 = vadd.f32 %v336, %v368
        %v401 = vadd.f32 %v337, %v369
        %v402 = vadd.f32 %v338, %v370
        %v403 = vadd.f32 %v339, %v371
        %v404 = vadd.f32 %v340, %v372
        %v405 = vadd.f32 %v341, %v373
        %v406 = vadd.f32 %v342, %v374
        %v407 = vadd.f32 %v343, %v375
        %v408 = vadd.f32 %v344, %v376
        %v409 = vadd.f32 %v345, %v377
        %v410 = vadd.f32 %v346, %v378
        %v411 = vadd.f32 %v347, %v379
        %v412 = vadd.f32 %v348, %v380
        %v413 = vadd.f32 %v349, %v381
        %v414 = vadd.f32 %v350, %v382
        %v415 = vadd.f32 %v351, %v383
        %v416 = vadd.f32 %v352, %v384
        %v417 = vadd.f32 %v353, %v385
        %v418 = vadd.f32 %v354, %v386
        %v419 = vadd.f32 %v355, %v387
        %v420 = vadd.f32 %v356, %v388
        %v421 = vadd.f32 %v357, %v389
        %v422 = vadd.f32 %v358, %v390
        %v423 = vadd.f32 %v359, %v391
        %v424 = vadd.f32 %v360, %v392
        %v425 = vadd.f32 %v361, %v393
        %v426 = vadd.f32 %v362, %v394
        %v427 = vadd.f32 %v363, %v395
        %v428 = vadd.f32 %v364, %v396
        %v429 = vadd.f32 %v365, %v397
        %v430 = vadd.f32 %v366, %v398
        %v431 = vmax.f32 %v399, 0.0
        %v432 = vmax.f32 %v400, 0.0
        %v433 = vmax.f32 %v401, 0.0
        %v434 = vmax.f32 %v402, 0.0
        %v435 = vmax.f32 %v403, 0.0
        %v436 = vmax.f32 %v404, 0.0
        %v437 = vmax.f32 %v405, 0.0
        %v438 = vmax.f32 %v406, 0.0
        %v439 = vmax.f32 %v407, 0.0
        %v440 = vmax.f32 %v408, 0.0
        %v441 = vmax.f32 %v409, 0.0
        %v442 = vmax.f32 %v410, 0.0
        %v443 = vmax.f32 %v411, 0.0
        %v444 = vmax.f32 %v412, 0.0
        %v445 = vmax.f32 %v413, 0.0
        %v446 = vmax.f32 %v414, 0.0
        %v447 = vmax.f32 %v415, 0.0
        %v448 = vmax.f32 %v416, 0.0
        %v449 = vmax.f32 %v417, 0.0
        %v450 = vmax.f32 %v418, 0.0
        %v451 = vmax.f32 %v419, 0.0
        %v452 = vmax.f32 %v420, 0.0
        %v453 = vmax.f32 %v421, 0.0
        %v454 = vmax.f32 %v422, 0.0
        %v455 = vmax.f32 %v423, 0.0
        %v456 = vmax.f32 %v424, 0.0
        %v457 = vmax.f32 %v425, 0.0
        %v458 = vmax.f32 %v426, 0.0
        %v459 = vmax.f32 %v427, 0.0
        %v460 = vmax.f32 %v428, 0.0
        %v461 = vmax.f32 %v429, 0.0
        %v462 = vmax.f32 %v430, 0.0
        %463 = vst [vmem:[%s211] sm:$0xff] %v431
        %464 = vst [vmem:[%s211 + $0x8] sm:$0xff] %v432
        %465 = vst [vmem:[%s211 + $0x10] sm:$0xff] %v433
        %466 = vst [vmem:[%s211 + $0x18] sm:$0xff] %v434
        %467 = vst [vmem:[%s211 + $0x20] sm:$0xff] %v435
        %468 = vst [vmem:[%s211 + $0x28] sm:$0xff] %v436
        %469 = vst [vmem:[%s211 + $0x30] sm:$0xff] %v437
        %470 = vst [vmem:[%s211 + $0x38] sm:$0xff] %v438
        %471 = vst [vmem:[%s211 + $0x40] sm:$0xff] %v439
        %472 = vst [vmem:[%s211 + $0x48] sm:$0xff] %v440
        %473 = vst [vmem:[%s211 + $0x50] sm:$0xff] %v441
        %474 = vst [vmem:[%s211 + $0x58] sm:$0xff] %v442
        %475 = vst [vmem:[%s211 + $0x60] sm:$0xff] %v443
        %476 = vst [vmem:[%s211 + $0x68] sm:$0xff] %v444
        %477 = vst [vmem:[%s211 + $0x70] sm:$0xff] %v445
        %478 = vst [vmem:[%s211 + $0x78] sm:$0xff] %v446
        %479 = vst [vmem:[%s211 + $0x80] sm:$0xff] %v447
        %480 = vst [vmem:[%s211 + $0x88] sm:$0xff] %v448
        %481 = vst [vmem:[%s211 + $0x90] sm:$0xff] %v449
        %482 = vst [vmem:[%s211 + $0x98] sm:$0xff] %v450
        %483 = vst [vmem:[%s211 + $0xa0] sm:$0xff] %v451
        %484 = vst [vmem:[%s211 + $0xa8] sm:$0xff] %v452
        %485 = vst [vmem:[%s211 + $0xb0] sm:$0xff] %v453
        %486 = vst [vmem:[%s211 + $0xb8] sm:$0xff] %v454
        %487 = vst [vmem:[%s211 + $0xc0] sm:$0xff] %v455
        %488 = vst [vmem:[%s211 + $0xc8] sm:$0xff] %v456
        %489 = vst [vmem:[%s211 + $0xd0] sm:$0xff] %v457
        %490 = vst [vmem:[%s211 + $0xd8] sm:$0xff] %v458
        %491 = vst [vmem:[%s211 + $0xe0] sm:$0xff] %v459
        %492 = vst [vmem:[%s211 + $0xe8] sm:$0xff] %v460
        %493 = vst [vmem:[%s211 + $0xf0] sm:$0xff] %v461
        %494 = vst [vmem:[%s211 + $0xf8] sm:$0xff] %v462
        %s495 = sand.u32 %s120, 1
        %s496 = scalar_lea.sflag [#allocation3], %s495
        %s497 = sand.u32 %s120, 1
        %s498 = smul.addr %s497, 256
        %s499 = scalar_lea.vmem [#allocation2], %s498
        // Predicated region
        $region37: #{bottleneck_forward.7} parent=35 // pred_check
          %p500 = pneg %p130
        $region38: #{bottleneck_forward.7} parent=35 // pred_check_branch
          %502 = sbr.rel (%p500) target = $region40
        $region39: #{bottleneck_forward.7} parent=35 // pred_region
          %s503 = smul.u32 8, %s18
          %s505 = ssub.s32 4096, 4096
          %506 = vsyncadd %s496, %s505
          %s507 = smul.addr %s503, 4
          %s508 = smul.addr %s507, 128
          %s509 = scalar_lea.hbm %s4, %s508
          %s510 = sshll.u32 %s499, 4
          %s511 = int_to_ptr.vmem [resolvable:$true] %s510
          %516 = dma.vmem_to_hbm [thread:$0]  %s511, 4096, %s509, %s496, 512, 512, 32
        $region40: #{bottleneck_forward.7} parent=35 // pred_fallthru
          _
      $region36: #{bottleneck_forward.7} parent=5 // pred_fallthru
        _
      %p517 = scmp.le.s32.totalorder 2, %s13
      // Predicated region
      $region41: #{bottleneck_forward.7} parent=5 // pred_check
        %p518 = pneg %p517
      $region42: #{bottleneck_forward.7} parent=5 // pred_check_branch
        %520 = sbr.rel (%p518) target = $region44
      $region43: #{bottleneck_forward.7} parent=5 // pred_region
        %s521 = ssub.s32 %s13, 2
        // Predicated region
        $region45: #{bottleneck_forward.7} parent=43 // pred_check
          %p522 = pneg %p136
        $region46: #{bottleneck_forward.7} parent=43 // pred_check_branch
          %524 = sbr.rel (%p522) target = $region48
        $region47: #{bottleneck_forward.7} parent=43 // pred_region
          %s525 = sand.u32 %s121, 1
          %s526 = scalar_lea.sflag [#allocation3], %s525
          %s527 = sand.u32 %s121, 1
          %s528 = smul.addr %s527, 256
          %s529 = scalar_lea.vmem [#allocation2], %s528
          %530 = dma.done %s526, 4096
        $region48: #{bottleneck_forward.7} parent=43 // pred_fallthru
          _
      $region44: #{bottleneck_forward.7} parent=5 // pred_fallthru
        _
    $region6: #{bottleneck_forward.7} parent=1 // loop_footer
      %s17 = sadd.s32 1, %s13
    $region7: #{bottleneck_forward.7} parent=1 // loop_footer_branch
      %12 = sbr.rel target = $region3
    $region8: #{bottleneck_forward.7} parent=1 // loop_exit
      _
    %531 = vsyncpa [#allocation3], 1
    %s532 = scalar_lea.sflag [#allocation3], 1
    %533 = vsyncpa %s532, 1

</llo_original>
